<compile_context>
chip_gen: v6e
topology: v6e:2x2x1
jax: 0.10.0
libtpu: 0.0.40
codegen_flags: <defaults>
</compile_context>

<pallas_src>
import functools

import jax
import jax.numpy as jnp
from jax.experimental import pallas as pl
from jax.experimental.pallas import tpu as pltpu

LEAKY_SLOPE = 0.2
BN_EPS = 1e-5
VMEM_LIMIT = 32 * 1024 * 1024  # conservative; valid on v5e / v6e / v7x


# ----------------------------------------------------------------------------
# Pallas kernels
# ----------------------------------------------------------------------------
def _conv_bn_lrelu_kernel(x_ref, w_ref, shift_ref, o_ref, *, taps, cin, ho, wo):
    """Fused 3x3 conv + folded eval-mode BN + LeakyReLU(0.2) for one image.

    x_ref:     (Hi, Wi, Cg) bf16 padded input block (Cg = cin, or 4*cin for the
               space-to-depth stride-2 form).
    w_ref:     (9*cin, Cout) bf16 weights with the BN scale pre-folded in.
    shift_ref: (1, Cout) f32 BN shift.
    o_ref:     (ho*wo, Cout) f32 output ("NHWC-flat", row index = i*wo + j).
    taps:      static tuple of (dy, dx, c0) window offsets, one per (ky, kx).
    """
    # Load once (bf16 over HBM/DMA); do the layout work in f32 (robust
    # lowering + keeps all post-MXU elementwise math f32, which v5e wants).
    x = x_ref[...].astype(jnp.float32)
    parts = [x[dy:dy + ho, dx:dx + wo, c0:c0 + cin] for (dy, dx, c0) in taps]
    patch = jnp.concatenate(parts, axis=-1)              # (ho, wo, 9*cin)
    patch = patch.reshape(ho * wo, len(taps) * cin)      # collapse spatial dims
    y = jnp.dot(patch.astype(jnp.bfloat16), w_ref[...],  # MXU in bf16
                preferred_element_type=jnp.float32)      # f32 accumulation
    y = y + shift_ref[...]                               # BN shift (scale in w)
    o_ref[...] = jnp.where(y >= 0.0, y, LEAKY_SLOPE * y)


def _gate_fc_kernel(att_ref, w1_ref, w2_ref, depth_ref, o_ref):
    """gate_fc (Linear -> ReLU -> Linear -> Sigmoid) fused with depth * gate.

    One image, NHWC-flat layout: columns are channels, so the per-(n, c) FC of
    the reference is exactly W2 @ relu(W1 @ A) — no transposes needed.
    """
    h = jnp.dot(w1_ref[...], att_ref[...], preferred_element_type=jnp.float32)
    h = jnp.maximum(h, 0.0).astype(w2_ref.dtype)          # back to bf16 for MXU
    g = jnp.dot(w2_ref[...], h, preferred_element_type=jnp.float32)
    gate = pl.reciprocal(1.0 + jnp.exp(-g), approx=True)  # sigmoid on EUP
    o_ref[...] = depth_ref[...] * gate


# ----------------------------------------------------------------------------
# Wrappers (padding, space-to-depth, BN folding, BlockSpecs)
# ----------------------------------------------------------------------------
def conv_bn_lrelu_layer(x_nhwc, w_ochw, bn_params, stride):
    """3x3 replicate-padded conv + eval-mode BN + LeakyReLU.

    Input (N, H, W, Cin) NHWC -> output (N, Ho*Wo, Cout) NHWC-flat f32.
    """
    gamma, beta, mean, var = bn_params
    cout, cin, ks, _ = w_ochw.shape
    assert ks == 3
    n, h, w, c = x_nhwc.shape
    assert c == cin

    xb = x_nhwc.astype(jnp.bfloat16)                      # halve HBM/DMA traffic
    xp = jnp.pad(xb, ((0, 0), (1, 1), (1, 1), (0, 0)), mode="edge")  # replicate

    if stride == 1:
        ho, wo = h, w
        xin = xp
        taps = tuple((ky, kx, 0) for ky in range(3) for kx in range(3))
    else:
        assert stride == 2
        ho, wo = (h - 1) // 2 + 1, (w - 1) // 2 + 1
        hp, wp = h + 2, w + 2
        if hp % 2:  # keep space-to-depth legal; the extra edge row is never read
            xp = jnp.pad(xp, ((0, 0), (0, 1), (0, 0), (0, 0)), mode="edge")
            hp += 1
        if wp % 2:
            xp = jnp.pad(xp, ((0, 0), (0, 0), (0, 1), (0, 0)), mode="edge")
            wp += 1
        # Space-to-depth: a single pass over the input (no 9x im2col blow-up).
        # Channel layout is (py, px, c), so tap (ky, kx) reads channels
        # [(2*(ky%2) + (kx%2))*cin : +cin] at spatial offset (ky//2, kx//2).
        xin = (xp.reshape(n, hp // 2, 2, wp // 2, 2, cin)
                 .transpose(0, 1, 3, 2, 4, 5)
                 .reshape(n, hp // 2, wp // 2, 4 * cin))
        taps = tuple((ky // 2, kx // 2, (2 * (ky % 2) + (kx % 2)) * cin)
                     for ky in range(3) for kx in range(3))

    # Fold the BN scale into the weights; only the shift survives in-kernel.
    inv_std = gamma / jnp.sqrt(var + BN_EPS)
    wmat = jnp.transpose(w_ochw, (2, 3, 1, 0)).reshape(9 * cin, cout)
    wmat = (wmat * inv_std[None, :]).astype(jnp.bfloat16)
    shift = (beta - mean * inv_std).reshape(1, cout).astype(jnp.float32)

    hi, wi, cg = xin.shape[1], xin.shape[2], xin.shape[3]
    kernel = functools.partial(_conv_bn_lrelu_kernel,
                               taps=taps, cin=cin, ho=ho, wo=wo)
    out = pl.pallas_call(
        kernel,
        out_shape=jax.ShapeDtypeStruct((n, ho * wo, cout), jnp.float32),
        grid=(n,),
        in_specs=[
            pl.BlockSpec((None, hi, wi, cg), lambda i: (i, 0, 0, 0)),
            pl.BlockSpec((9 * cin, cout), lambda i: (0, 0)),   # resident weights
            pl.BlockSpec((1, cout), lambda i: (0, 0)),
        ],
        out_specs=pl.BlockSpec((None, ho * wo, cout), lambda i: (i, 0, 0)),
        compiler_params=pltpu.CompilerParams(
            dimension_semantics=("parallel",),
            vmem_limit_bytes=VMEM_LIMIT),
    )(xin, wmat, shift)
    return out, (ho, wo)


def gate_fc_mul(att_flat, fc1_w, fc2_w, depth_flat):
    """out[n, :, c] = depth[n, :, c] * sigmoid(fc2_w @ relu(fc1_w @ att[n, :, c]))."""
    n, s, c = att_flat.shape
    hh = fc1_w.shape[0]
    return pl.pallas_call(
        _gate_fc_kernel,
        out_shape=jax.ShapeDtypeStruct((n, s, c), jnp.float32),
        grid=(n,),
        in_specs=[
            pl.BlockSpec((None, s, c), lambda i: (i, 0, 0)),
            pl.BlockSpec((hh, s), lambda i: (0, 0)),           # resident weights
            pl.BlockSpec((s, hh), lambda i: (0, 0)),
            pl.BlockSpec((None, s, c), lambda i: (i, 0, 0)),
        ],
        out_specs=pl.BlockSpec((None, s, c), lambda i: (i, 0, 0)),
        compiler_params=pltpu.CompilerParams(
            dimension_semantics=("parallel",),
            vmem_limit_bytes=VMEM_LIMIT),
    )(att_flat.astype(jnp.bfloat16), fc1_w.astype(jnp.bfloat16),
      fc2_w.astype(jnp.bfloat16), depth_flat)


def agg_conv_forward(params, depth_nchw, rgb_nchw):
    n = depth_nchw.shape[0]
    depth = jnp.transpose(depth_nchw, (0, 2, 3, 1))       # NCHW -> NHWC (API edge)
    rgb = jnp.transpose(rgb_nchw, (0, 2, 3, 1))

    # self.conv: conv(s=1)+BN+LReLU -> conv(s=2)+BN+LReLU
    x, (h1, w1) = conv_bn_lrelu_layer(depth, params["conv1_w"], params["bn1"], stride=1)
    x = x.reshape(n, h1, w1, -1)                          # flat -> spatial (free view)
    depth_ds, (ho, wo) = conv_bn_lrelu_layer(x, params["conv2_w"], params["bn2"], stride=2)
    c = depth_ds.shape[-1]

    # mask = gate_conv(cat([depth, rgb], dim=1))
    mask_in = jnp.concatenate([depth_ds.reshape(n, ho, wo, c), rgb], axis=-1)
    mask, _ = conv_bn_lrelu_layer(mask_in, params["gate_conv_w"], params["bn3"], stride=1)

    # attention = gate_conv(mask)   (second application, as in the reference)
    att, _ = conv_bn_lrelu_layer(mask.reshape(n, ho, wo, c),
                                 params["gate_conv_w"], params["bn3"], stride=1)

    # gate_fc + depth * attention, computed directly on the NHWC-flat layout
    # (no HBM transposes of depth_ds / att before the FC).
    out_flat = gate_fc_mul(att, params["fc1_w"], params["fc2_w"], depth_ds)
    return jnp.transpose(out_flat.reshape(n, ho, wo, c), (0, 3, 1, 2))  # NCHW


# ----------------------------------------------------------------------------
# Deterministic parameter init (shapes from AGGConv.__init__)
# ----------------------------------------------------------------------------
def init_params(key, in_ch, out_ch, rgb_ch, size, ksize=3, ratio_linear=1):
    ks = jax.random.split(key, 8)

    def w(k, shape, s=0.2):
        return s * jax.random.normal(k, shape, jnp.float32)

    def bn(k, c):
        k1, k2, k3, k4 = jax.random.split(k, 4)
        gamma = 1.0 + 0.1 * jax.random.normal(k1, (c,), jnp.float32)
        beta = 0.1 * jax.random.normal(k2, (c,), jnp.float32)
        mean = 0.1 * jax.random.normal(k3, (c,), jnp.float32)
        var = 0.5 + jax.random.uniform(k4, (c,), dtype=jnp.float32)
        return gamma, beta, mean, var

    return {
        "conv1_w": w(ks[0], (out_ch, in_ch, ksize, ksize)),
        "bn1": bn(ks[1], out_ch),
        "conv2_w": w(ks[2], (out_ch, out_ch, ksize, ksize)),
        "bn2": bn(ks[3], out_ch),
        "gate_conv_w": w(ks[4], (out_ch, out_ch + rgb_ch, ksize, ksize)),
        "bn3": bn(ks[5], out_ch),
        "fc1_w": w(ks[6], (size * ratio_linear, size), 0.1),  # torch Linear (out, in)
        "fc2_w": w(ks[7], (size, size * ratio_linear), 0.1),
    }


if __name__ == "__main__":
    in_ch, out_ch, rgb_ch = 4, 8, 0  # rgb_ch must be 0 (see fidelity note above)
    H0 = W0 = 16
    h = wd = H0 // 2                 # gate_fc operates on h*w after the stride-2 conv

    key = jax.random.PRNGKey(0)
    kp, kd, kr = jax.random.split(key, 3)
    params = init_params(kp, in_ch, out_ch, rgb_ch, size=h * wd)

    depth = jax.random.normal(kd, (2, in_ch, H0, W0), jnp.float32)
    rgb = jax.random.normal(kr, (2, rgb_ch, h, wd), jnp.float32)

    out = jax.jit(agg_conv_forward)(params, depth, rgb)
    out = jax.block_until_ready(out)
    assert out.shape == (2, out_ch, h, wd)
    print("KERNEL_OK")
</pallas_src>

<mosaic_0001>
module attributes {stable_mosaic.version = 11 : i64} {
  func.func @_conv_bn_lrelu_kernel(%arg0: i32, %arg1: memref<1x18x18x4xbf16, #tpu.memory_space<vmem>>, %arg2: memref<36x8xbf16, #tpu.memory_space<vmem>>, %arg3: memref<1x8xf32, #tpu.memory_space<vmem>>, %arg4: memref<1x256x8xf32, #tpu.memory_space<vmem>>) attributes {dimension_semantics = [#tpu.dimension_semantics<parallel>], iteration_bounds = array<i64: 2>, scalar_prefetch = 0 : i64, scratch_operands = 0 : i64, tpu.core_type = #tpu.core_type<tc>, window_params = [{transform_indices = @transform_0, window_bounds = array<i64: 1, 18, 18, 4>}, {pipeline_mode = #tpu.pipeline_mode<synchronous>, transform_indices = @transform_1, window_bounds = array<i64: 36, 8>}, {pipeline_mode = #tpu.pipeline_mode<synchronous>, transform_indices = @transform_2, window_bounds = array<i64: 1, 8>}, {transform_indices = @transform_3, window_bounds = array<i64: 1, 256, 8>}]} {
    %c0 = arith.constant 0 : index
    %c0_0 = arith.constant 0 : index
    %c0_1 = arith.constant 0 : index
    %c0_2 = arith.constant 0 : index
    %0 = vector.load %arg1[%c0, %c0_0, %c0_1, %c0_2] : memref<1x18x18x4xbf16, #tpu.memory_space<vmem>>, vector<1x18x18x4xbf16>
    %1 = vector.shape_cast %0 : vector<1x18x18x4xbf16> to vector<18x18x4xbf16>
    %2 = arith.extf %1 : vector<18x18x4xbf16> to vector<18x18x4xf32>
    %3 = vector.extract_strided_slice %2 {offsets = [0, 0, 0], sizes = [16, 16, 4], strides = [1, 1, 1]} : vector<18x18x4xf32> to vector<16x16x4xf32>
    %4 = vector.extract_strided_slice %2 {offsets = [0, 1, 0], sizes = [16, 16, 4], strides = [1, 1, 1]} : vector<18x18x4xf32> to vector<16x16x4xf32>
    %5 = vector.extract_strided_slice %2 {offsets = [0, 2, 0], sizes = [16, 16, 4], strides = [1, 1, 1]} : vector<18x18x4xf32> to vector<16x16x4xf32>
    %6 = vector.extract_strided_slice %2 {offsets = [1, 0, 0], sizes = [16, 16, 4], strides = [1, 1, 1]} : vector<18x18x4xf32> to vector<16x16x4xf32>
    %7 = vector.extract_strided_slice %2 {offsets = [1, 1, 0], sizes = [16, 16, 4], strides = [1, 1, 1]} : vector<18x18x4xf32> to vector<16x16x4xf32>
    %8 = vector.extract_strided_slice %2 {offsets = [1, 2, 0], sizes = [16, 16, 4], strides = [1, 1, 1]} : vector<18x18x4xf32> to vector<16x16x4xf32>
    %9 = vector.extract_strided_slice %2 {offsets = [2, 0, 0], sizes = [16, 16, 4], strides = [1, 1, 1]} : vector<18x18x4xf32> to vector<16x16x4xf32>
    %10 = vector.extract_strided_slice %2 {offsets = [2, 1, 0], sizes = [16, 16, 4], strides = [1, 1, 1]} : vector<18x18x4xf32> to vector<16x16x4xf32>
    %11 = vector.extract_strided_slice %2 {offsets = [2, 2, 0], sizes = [16, 16, 4], strides = [1, 1, 1]} : vector<18x18x4xf32> to vector<16x16x4xf32>
    %12 = tpu.concatenate %3, %4, %5, %6, %7, %8, %9, %10, %11 in 2 : vector<16x16x4xf32>, vector<16x16x4xf32>, vector<16x16x4xf32>, vector<16x16x4xf32>, vector<16x16x4xf32>, vector<16x16x4xf32>, vector<16x16x4xf32>, vector<16x16x4xf32>, vector<16x16x4xf32> -> vector<16x16x36xf32>
    %13 = vector.shape_cast %12 : vector<16x16x36xf32> to vector<256x36xf32>
    %14 = arith.truncf %13 : vector<256x36xf32> to vector<256x36xbf16>
    %c0_3 = arith.constant 0 : index
    %c0_4 = arith.constant 0 : index
    %15 = vector.load %arg2[%c0_3, %c0_4] : memref<36x8xbf16, #tpu.memory_space<vmem>>, vector<36x8xbf16>
    %cst = arith.constant dense<0.000000e+00> : vector<256x8xf32>
    %16 = tpu.matmul %14, %15, %cst {dimension_numbers = #tpu.dot_dimension_numbers<[1], [0], [0], [1], [0, 0, 1, 1], [], []>} : vector<256x36xbf16>, vector<36x8xbf16>, vector<256x8xf32> -> vector<256x8xf32>
    %c0_5 = arith.constant 0 : index
    %c0_6 = arith.constant 0 : index
    %17 = vector.load %arg3[%c0_5, %c0_6] : memref<1x8xf32, #tpu.memory_space<vmem>>, vector<1x8xf32>
    %18 = vector.broadcast %17 : vector<1x8xf32> to vector<256x8xf32>
    %19 = arith.addf %16, %18 : vector<256x8xf32>
    %cst_7 = arith.constant 0.000000e+00 : f32
    %20 = vector.broadcast %cst_7 : f32 to vector<256x8xf32>
    %21 = arith.cmpf oge, %19, %20 : vector<256x8xf32>
    %cst_8 = arith.constant 2.000000e-01 : f32
    %22 = vector.broadcast %cst_8 : f32 to vector<256x8xf32>
    %23 = arith.mulf %22, %19 : vector<256x8xf32>
    %24 = arith.select %21, %19, %23 : vector<256x8xi1>, vector<256x8xf32>
    %c0_9 = arith.constant 0 : index
    %c0_10 = arith.constant 0 : index
    %c0_11 = arith.constant 0 : index
    %25 = vector.load %arg4[%c0_9, %c0_10, %c0_11] : memref<1x256x8xf32, #tpu.memory_space<vmem>>, vector<1x256x8xf32>
    %26 = vector.shape_cast %25 : vector<1x256x8xf32> to vector<256x8xf32>
    %27 = vector.shape_cast %24 : vector<256x8xf32> to vector<1x256x8xf32>
    tpu.vector_store %arg4[%c0_9, %c0_10, %c0_11], %27 {strides = array<i32>} : memref<1x256x8xf32, #tpu.memory_space<vmem>>, vector<1x256x8xf32>,
    return
  }
  func.func @transform_0(%arg0: i32) -> (i32, i32, i32, i32) {
    %c0_i32 = arith.constant 0 : i32
    %c0_i32_0 = arith.constant 0 : i32
    %c0_i32_1 = arith.constant 0 : i32
    %c0_i32_2 = arith.constant 0 : i32
    return %arg0, %c0_i32, %c0_i32_0, %c0_i32_1 : i32, i32, i32, i32
  }
  func.func @transform_1(%arg0: i32) -> (i32, i32) {
    %c0_i32 = arith.constant 0 : i32
    %c0_i32_0 = arith.constant 0 : i32
    %c0_i32_1 = arith.constant 0 : i32
    return %c0_i32, %c0_i32_0 : i32, i32
  }
  func.func @transform_2(%arg0: i32) -> (i32, i32) {
    %c0_i32 = arith.constant 0 : i32
    %c0_i32_0 = arith.constant 0 : i32
    %c0_i32_1 = arith.constant 0 : i32
    return %c0_i32, %c0_i32_0 : i32, i32
  }
  func.func @transform_3(%arg0: i32) -> (i32, i32, i32) {
    %c0_i32 = arith.constant 0 : i32
    %c0_i32_0 = arith.constant 0 : i32
    %c0_i32_1 = arith.constant 0 : i32
    return %arg0, %c0_i32, %c0_i32_0 : i32, i32, i32
  }
}

module attributes {stable_mosaic.version = 11 : i64} {
  func.func @_conv_bn_lrelu_kernel(%arg0: i32, %arg1: memref<1x9x9x32xbf16, #tpu.memory_space<vmem>>, %arg2: memref<72x8xbf16, #tpu.memory_space<vmem>>, %arg3: memref<1x8xf32, #tpu.memory_space<vmem>>, %arg4: memref<1x64x8xf32, #tpu.memory_space<vmem>>) attributes {dimension_semantics = [#tpu.dimension_semantics<parallel>], iteration_bounds = array<i64: 2>, scalar_prefetch = 0 : i64, scratch_operands = 0 : i64, tpu.core_type = #tpu.core_type<tc>, window_params = [{transform_indices = @transform_0, window_bounds = array<i64: 1, 9, 9, 32>}, {pipeline_mode = #tpu.pipeline_mode<synchronous>, transform_indices = @transform_1, window_bounds = array<i64: 72, 8>}, {pipeline_mode = #tpu.pipeline_mode<synchronous>, transform_indices = @transform_2, window_bounds = array<i64: 1, 8>}, {transform_indices = @transform_3, window_bounds = array<i64: 1, 64, 8>}]} {
    %c0 = arith.constant 0 : index
    %c0_0 = arith.constant 0 : index
    %c0_1 = arith.constant 0 : index
    %c0_2 = arith.constant 0 : index
    %0 = vector.load %arg1[%c0, %c0_0, %c0_1, %c0_2] : memref<1x9x9x32xbf16, #tpu.memory_space<vmem>>, vector<1x9x9x32xbf16>
    %1 = vector.shape_cast %0 : vector<1x9x9x32xbf16> to vector<9x9x32xbf16>
    %2 = arith.extf %1 : vector<9x9x32xbf16> to vector<9x9x32xf32>
    %3 = vector.extract_strided_slice %2 {offsets = [0, 0, 0], sizes = [8, 8, 8], strides = [1, 1, 1]} : vector<9x9x32xf32> to vector<8x8x8xf32>
    %4 = vector.extract_strided_slice %2 {offsets = [0, 0, 8], sizes = [8, 8, 8], strides = [1, 1, 1]} : vector<9x9x32xf32> to vector<8x8x8xf32>
    %5 = vector.extract_strided_slice %2 {offsets = [0, 1, 0], sizes = [8, 8, 8], strides = [1, 1, 1]} : vector<9x9x32xf32> to vector<8x8x8xf32>
    %6 = vector.extract_strided_slice %2 {offsets = [0, 0, 16], sizes = [8, 8, 8], strides = [1, 1, 1]} : vector<9x9x32xf32> to vector<8x8x8xf32>
    %7 = vector.extract_strided_slice %2 {offsets = [0, 0, 24], sizes = [8, 8, 8], strides = [1, 1, 1]} : vector<9x9x32xf32> to vector<8x8x8xf32>
    %8 = vector.extract_strided_slice %2 {offsets = [0, 1, 16], sizes = [8, 8, 8], strides = [1, 1, 1]} : vector<9x9x32xf32> to vector<8x8x8xf32>
    %9 = vector.extract_strided_slice %2 {offsets = [1, 0, 0], sizes = [8, 8, 8], strides = [1, 1, 1]} : vector<9x9x32xf32> to vector<8x8x8xf32>
    %10 = vector.extract_strided_slice %2 {offsets = [1, 0, 8], sizes = [8, 8, 8], strides = [1, 1, 1]} : vector<9x9x32xf32> to vector<8x8x8xf32>
    %11 = vector.extract_strided_slice %2 {offsets = [1, 1, 0], sizes = [8, 8, 8], strides = [1, 1, 1]} : vector<9x9x32xf32> to vector<8x8x8xf32>
    %12 = tpu.concatenate %3, %4, %5, %6, %7, %8, %9, %10, %11 in 2 : vector<8x8x8xf32>, vector<8x8x8xf32>, vector<8x8x8xf32>, vector<8x8x8xf32>, vector<8x8x8xf32>, vector<8x8x8xf32>, vector<8x8x8xf32>, vector<8x8x8xf32>, vector<8x8x8xf32> -> vector<8x8x72xf32>
    %13 = vector.shape_cast %12 : vector<8x8x72xf32> to vector<64x72xf32>
    %14 = arith.truncf %13 : vector<64x72xf32> to vector<64x72xbf16>
    %c0_3 = arith.constant 0 : index
    %c0_4 = arith.constant 0 : index
    %15 = vector.load %arg2[%c0_3, %c0_4] : memref<72x8xbf16, #tpu.memory_space<vmem>>, vector<72x8xbf16>
    %cst = arith.constant dense<0.000000e+00> : vector<64x8xf32>
    %16 = tpu.matmul %14, %15, %cst {dimension_numbers = #tpu.dot_dimension_numbers<[1], [0], [0], [1], [0, 0, 1, 1], [], []>} : vector<64x72xbf16>, vector<72x8xbf16>, vector<64x8xf32> -> vector<64x8xf32>
    %c0_5 = arith.constant 0 : index
    %c0_6 = arith.constant 0 : index
    %17 = vector.load %arg3[%c0_5, %c0_6] : memref<1x8xf32, #tpu.memory_space<vmem>>, vector<1x8xf32>
    %18 = vector.broadcast %17 : vector<1x8xf32> to vector<64x8xf32>
    %19 = arith.addf %16, %18 : vector<64x8xf32>
    %cst_7 = arith.constant 0.000000e+00 : f32
    %20 = vector.broadcast %cst_7 : f32 to vector<64x8xf32>
    %21 = arith.cmpf oge, %19, %20 : vector<64x8xf32>
    %cst_8 = arith.constant 2.000000e-01 : f32
    %22 = vector.broadcast %cst_8 : f32 to vector<64x8xf32>
    %23 = arith.mulf %22, %19 : vector<64x8xf32>
    %24 = arith.select %21, %19, %23 : vector<64x8xi1>, vector<64x8xf32>
    %c0_9 = arith.constant 0 : index
    %c0_10 = arith.constant 0 : index
    %c0_11 = arith.constant 0 : index
    %25 = vector.load %arg4[%c0_9, %c0_10, %c0_11] : memref<1x64x8xf32, #tpu.memory_space<vmem>>, vector<1x64x8xf32>
    %26 = vector.shape_cast %25 : vector<1x64x8xf32> to vector<64x8xf32>
    %27 = vector.shape_cast %24 : vector<64x8xf32> to vector<1x64x8xf32>
    tpu.vector_store %arg4[%c0_9, %c0_10, %c0_11], %27 {strides = array<i32>} : memref<1x64x8xf32, #tpu.memory_space<vmem>>, vector<1x64x8xf32>,
    return
  }
  func.func @transform_0(%arg0: i32) -> (i32, i32, i32, i32) {
    %c0_i32 = arith.constant 0 : i32
    %c0_i32_0 = arith.constant 0 : i32
    %c0_i32_1 = arith.constant 0 : i32
    %c0_i32_2 = arith.constant 0 : i32
    return %arg0, %c0_i32, %c0_i32_0, %c0_i32_1 : i32, i32, i32, i32
  }
  func.func @transform_1(%arg0: i32) -> (i32, i32) {
    %c0_i32 = arith.constant 0 : i32
    %c0_i32_0 = arith.constant 0 : i32
    %c0_i32_1 = arith.constant 0 : i32
    return %c0_i32, %c0_i32_0 : i32, i32
  }
  func.func @transform_2(%arg0: i32) -> (i32, i32) {
    %c0_i32 = arith.constant 0 : i32
    %c0_i32_0 = arith.constant 0 : i32
    %c0_i32_1 = arith.constant 0 : i32
    return %c0_i32, %c0_i32_0 : i32, i32
  }
  func.func @transform_3(%arg0: i32) -> (i32, i32, i32) {
    %c0_i32 = arith.constant 0 : i32
    %c0_i32_0 = arith.constant 0 : i32
    %c0_i32_1 = arith.constant 0 : i32
    return %arg0, %c0_i32, %c0_i32_0 : i32, i32, i32
  }
}

module attributes {stable_mosaic.version = 11 : i64} {
  func.func @_conv_bn_lrelu_kernel(%arg0: i32, %arg1: memref<1x10x10x8xbf16, #tpu.memory_space<vmem>>, %arg2: memref<72x8xbf16, #tpu.memory_space<vmem>>, %arg3: memref<1x8xf32, #tpu.memory_space<vmem>>, %arg4: memref<1x64x8xf32, #tpu.memory_space<vmem>>) attributes {dimension_semantics = [#tpu.dimension_semantics<parallel>], iteration_bounds = array<i64: 2>, scalar_prefetch = 0 : i64, scratch_operands = 0 : i64, tpu.core_type = #tpu.core_type<tc>, window_params = [{transform_indices = @transform_0, window_bounds = array<i64: 1, 10, 10, 8>}, {pipeline_mode = #tpu.pipeline_mode<synchronous>, transform_indices = @transform_1, window_bounds = array<i64: 72, 8>}, {pipeline_mode = #tpu.pipeline_mode<synchronous>, transform_indices = @transform_2, window_bounds = array<i64: 1, 8>}, {transform_indices = @transform_3, window_bounds = array<i64: 1, 64, 8>}]} {
    %c0 = arith.constant 0 : index
    %c0_0 = arith.constant 0 : index
    %c0_1 = arith.constant 0 : index
    %c0_2 = arith.constant 0 : index
    %0 = vector.load %arg1[%c0, %c0_0, %c0_1, %c0_2] : memref<1x10x10x8xbf16, #tpu.memory_space<vmem>>, vector<1x10x10x8xbf16>
    %1 = vector.shape_cast %0 : vector<1x10x10x8xbf16> to vector<10x10x8xbf16>
    %2 = arith.extf %1 : vector<10x10x8xbf16> to vector<10x10x8xf32>
    %3 = vector.extract_strided_slice %2 {offsets = [0, 0, 0], sizes = [8, 8, 8], strides = [1, 1, 1]} : vector<10x10x8xf32> to vector<8x8x8xf32>
    %4 = vector.extract_strided_slice %2 {offsets = [0, 1, 0], sizes = [8, 8, 8], strides = [1, 1, 1]} : vector<10x10x8xf32> to vector<8x8x8xf32>
    %5 = vector.extract_strided_slice %2 {offsets = [0, 2, 0], sizes = [8, 8, 8], strides = [1, 1, 1]} : vector<10x10x8xf32> to vector<8x8x8xf32>
    %6 = vector.extract_strided_slice %2 {offsets = [1, 0, 0], sizes = [8, 8, 8], strides = [1, 1, 1]} : vector<10x10x8xf32> to vector<8x8x8xf32>
    %7 = vector.extract_strided_slice %2 {offsets = [1, 1, 0], sizes = [8, 8, 8], strides = [1, 1, 1]} : vector<10x10x8xf32> to vector<8x8x8xf32>
    %8 = vector.extract_strided_slice %2 {offsets = [1, 2, 0], sizes = [8, 8, 8], strides = [1, 1, 1]} : vector<10x10x8xf32> to vector<8x8x8xf32>
    %9 = vector.extract_strided_slice %2 {offsets = [2, 0, 0], sizes = [8, 8, 8], strides = [1, 1, 1]} : vector<10x10x8xf32> to vector<8x8x8xf32>
    %10 = vector.extract_strided_slice %2 {offsets = [2, 1, 0], sizes = [8, 8, 8], strides = [1, 1, 1]} : vector<10x10x8xf32> to vector<8x8x8xf32>
    %11 = vector.extract_strided_slice %2 {offsets = [2, 2, 0], sizes = [8, 8, 8], strides = [1, 1, 1]} : vector<10x10x8xf32> to vector<8x8x8xf32>
    %12 = tpu.concatenate %3, %4, %5, %6, %7, %8, %9, %10, %11 in 2 : vector<8x8x8xf32>, vector<8x8x8xf32>, vector<8x8x8xf32>, vector<8x8x8xf32>, vector<8x8x8xf32>, vector<8x8x8xf32>, vector<8x8x8xf32>, vector<8x8x8xf32>, vector<8x8x8xf32> -> vector<8x8x72xf32>
    %13 = vector.shape_cast %12 : vector<8x8x72xf32> to vector<64x72xf32>
    %14 = arith.truncf %13 : vector<64x72xf32> to vector<64x72xbf16>
    %c0_3 = arith.constant 0 : index
    %c0_4 = arith.constant 0 : index
    %15 = vector.load %arg2[%c0_3, %c0_4] : memref<72x8xbf16, #tpu.memory_space<vmem>>, vector<72x8xbf16>
    %cst = arith.constant dense<0.000000e+00> : vector<64x8xf32>
    %16 = tpu.matmul %14, %15, %cst {dimension_numbers = #tpu.dot_dimension_numbers<[1], [0], [0], [1], [0, 0, 1, 1], [], []>} : vector<64x72xbf16>, vector<72x8xbf16>, vector<64x8xf32> -> vector<64x8xf32>
    %c0_5 = arith.constant 0 : index
    %c0_6 = arith.constant 0 : index
    %17 = vector.load %arg3[%c0_5, %c0_6] : memref<1x8xf32, #tpu.memory_space<vmem>>, vector<1x8xf32>
    %18 = vector.broadcast %17 : vector<1x8xf32> to vector<64x8xf32>
    %19 = arith.addf %16, %18 : vector<64x8xf32>
    %cst_7 = arith.constant 0.000000e+00 : f32
    %20 = vector.broadcast %cst_7 : f32 to vector<64x8xf32>
    %21 = arith.cmpf oge, %19, %20 : vector<64x8xf32>
    %cst_8 = arith.constant 2.000000e-01 : f32
    %22 = vector.broadcast %cst_8 : f32 to vector<64x8xf32>
    %23 = arith.mulf %22, %19 : vector<64x8xf32>
    %24 = arith.select %21, %19, %23 : vector<64x8xi1>, vector<64x8xf32>
    %c0_9 = arith.constant 0 : index
    %c0_10 = arith.constant 0 : index
    %c0_11 = arith.constant 0 : index
    %25 = vector.load %arg4[%c0_9, %c0_10, %c0_11] : memref<1x64x8xf32, #tpu.memory_space<vmem>>, vector<1x64x8xf32>
    %26 = vector.shape_cast %25 : vector<1x64x8xf32> to vector<64x8xf32>
    %27 = vector.shape_cast %24 : vector<64x8xf32> to vector<1x64x8xf32>
    tpu.vector_store %arg4[%c0_9, %c0_10, %c0_11], %27 {strides = array<i32>} : memref<1x64x8xf32, #tpu.memory_space<vmem>>, vector<1x64x8xf32>,
    return
  }
  func.func @transform_0(%arg0: i32) -> (i32, i32, i32, i32) {
    %c0_i32 = arith.constant 0 : i32
    %c0_i32_0 = arith.constant 0 : i32
    %c0_i32_1 = arith.constant 0 : i32
    %c0_i32_2 = arith.constant 0 : i32
    return %arg0, %c0_i32, %c0_i32_0, %c0_i32_1 : i32, i32, i32, i32
  }
  func.func @transform_1(%arg0: i32) -> (i32, i32) {
    %c0_i32 = arith.constant 0 : i32
    %c0_i32_0 = arith.constant 0 : i32
    %c0_i32_1 = arith.constant 0 : i32
    return %c0_i32, %c0_i32_0 : i32, i32
  }
  func.func @transform_2(%arg0: i32) -> (i32, i32) {
    %c0_i32 = arith.constant 0 : i32
    %c0_i32_0 = arith.constant 0 : i32
    %c0_i32_1 = arith.constant 0 : i32
    return %c0_i32, %c0_i32_0 : i32, i32
  }
  func.func @transform_3(%arg0: i32) -> (i32, i32, i32) {
    %c0_i32 = arith.constant 0 : i32
    %c0_i32_0 = arith.constant 0 : i32
    %c0_i32_1 = arith.constant 0 : i32
    return %arg0, %c0_i32, %c0_i32_0 : i32, i32, i32
  }
}

module attributes {stable_mosaic.version = 11 : i64} {
  func.func @_gate_fc_kernel(%arg0: i32, %arg1: memref<1x64x8xbf16, #tpu.memory_space<vmem>>, %arg2: memref<64x64xbf16, #tpu.memory_space<vmem>>, %arg3: memref<64x64xbf16, #tpu.memory_space<vmem>>, %arg4: memref<1x64x8xf32, #tpu.memory_space<vmem>>, %arg5: memref<1x64x8xf32, #tpu.memory_space<vmem>>) attributes {dimension_semantics = [#tpu.dimension_semantics<parallel>], iteration_bounds = array<i64: 2>, scalar_prefetch = 0 : i64, scratch_operands = 0 : i64, tpu.core_type = #tpu.core_type<tc>, window_params = [{transform_indices = @transform_0, window_bounds = array<i64: 1, 64, 8>}, {pipeline_mode = #tpu.pipeline_mode<synchronous>, transform_indices = @transform_1, window_bounds = array<i64: 64, 64>}, {pipeline_mode = #tpu.pipeline_mode<synchronous>, transform_indices = @transform_2, window_bounds = array<i64: 64, 64>}, {transform_indices = @transform_3, window_bounds = array<i64: 1, 64, 8>}, {transform_indices = @transform_4, window_bounds = array<i64: 1, 64, 8>}]} {
    %c0 = arith.constant 0 : index
    %c0_0 = arith.constant 0 : index
    %0 = vector.load %arg2[%c0, %c0_0] : memref<64x64xbf16, #tpu.memory_space<vmem>>, vector<64x64xbf16>
    %c0_1 = arith.constant 0 : index
    %c0_2 = arith.constant 0 : index
    %c0_3 = arith.constant 0 : index
    %1 = vector.load %arg1[%c0_1, %c0_2, %c0_3] : memref<1x64x8xbf16, #tpu.memory_space<vmem>>, vector<1x64x8xbf16>
    %2 = vector.shape_cast %1 : vector<1x64x8xbf16> to vector<64x8xbf16>
    %cst = arith.constant dense<0.000000e+00> : vector<64x8xf32>
    %3 = tpu.matmul %0, %2, %cst {dimension_numbers = #tpu.dot_dimension_numbers<[1], [0], [0], [1], [0, 0, 1, 1], [], []>} : vector<64x64xbf16>, vector<64x8xbf16>, vector<64x8xf32> -> vector<64x8xf32>
    %cst_4 = arith.constant 0.000000e+00 : f32
    %4 = vector.broadcast %cst_4 : f32 to vector<64x8xf32>
    %5 = arith.maximumf %3, %4 : vector<64x8xf32>
    %6 = arith.truncf %5 : vector<64x8xf32> to vector<64x8xbf16>
    %c0_5 = arith.constant 0 : index
    %c0_6 = arith.constant 0 : index
    %7 = vector.load %arg3[%c0_5, %c0_6] : memref<64x64xbf16, #tpu.memory_space<vmem>>, vector<64x64xbf16>
    %cst_7 = arith.constant dense<0.000000e+00> : vector<64x8xf32>
    %8 = tpu.matmul %7, %6, %cst_7 {dimension_numbers = #tpu.dot_dimension_numbers<[1], [0], [0], [1], [0, 0, 1, 1], [], []>} : vector<64x64xbf16>, vector<64x8xbf16>, vector<64x8xf32> -> vector<64x8xf32>
    %cst_8 = arith.constant 0.000000e+00 : f32
    %9 = vector.broadcast %cst_8 : f32 to vector<64x8xf32>
    %10 = arith.subf %9, %8 : vector<64x8xf32>
    %11 = math.exp %10 : vector<64x8xf32>
    %cst_9 = arith.constant 1.000000e+00 : f32
    %12 = vector.broadcast %cst_9 : f32 to vector<64x8xf32>
    %13 = arith.addf %12, %11 : vector<64x8xf32>
    %14 = tpu.reciprocal %13 {approx = true} : vector<64x8xf32> -> vector<64x8xf32>
    %c0_10 = arith.constant 0 : index
    %c0_11 = arith.constant 0 : index
    %c0_12 = arith.constant 0 : index
    %15 = vector.load %arg4[%c0_10, %c0_11, %c0_12] : memref<1x64x8xf32, #tpu.memory_space<vmem>>, vector<1x64x8xf32>
    %16 = vector.shape_cast %15 : vector<1x64x8xf32> to vector<64x8xf32>
    %17 = arith.mulf %16, %14 : vector<64x8xf32>
    %c0_13 = arith.constant 0 : index
    %c0_14 = arith.constant 0 : index
    %c0_15 = arith.constant 0 : index
    %18 = vector.load %arg5[%c0_13, %c0_14, %c0_15] : memref<1x64x8xf32, #tpu.memory_space<vmem>>, vector<1x64x8xf32>
    %19 = vector.shape_cast %18 : vector<1x64x8xf32> to vector<64x8xf32>
    %20 = vector.shape_cast %17 : vector<64x8xf32> to vector<1x64x8xf32>
    tpu.vector_store %arg5[%c0_13, %c0_14, %c0_15], %20 {strides = array<i32>} : memref<1x64x8xf32, #tpu.memory_space<vmem>>, vector<1x64x8xf32>,
    return
  }
  func.func @transform_0(%arg0: i32) -> (i32, i32, i32) {
    %c0_i32 = arith.constant 0 : i32
    %c0_i32_0 = arith.constant 0 : i32
    %c0_i32_1 = arith.constant 0 : i32
    return %arg0, %c0_i32, %c0_i32_0 : i32, i32, i32
  }
  func.func @transform_1(%arg0: i32) -> (i32, i32) {
    %c0_i32 = arith.constant 0 : i32
    %c0_i32_0 = arith.constant 0 : i32
    %c0_i32_1 = arith.constant 0 : i32
    return %c0_i32, %c0_i32_0 : i32, i32
  }
  func.func @transform_2(%arg0: i32) -> (i32, i32) {
    %c0_i32 = arith.constant 0 : i32
    %c0_i32_0 = arith.constant 0 : i32
    %c0_i32_1 = arith.constant 0 : i32
    return %c0_i32, %c0_i32_0 : i32, i32
  }
  func.func @transform_3(%arg0: i32) -> (i32, i32, i32) {
    %c0_i32 = arith.constant 0 : i32
    %c0_i32_0 = arith.constant 0 : i32
    %c0_i32_1 = arith.constant 0 : i32
    return %arg0, %c0_i32, %c0_i32_0 : i32, i32, i32
  }
  func.func @transform_4(%arg0: i32) -> (i32, i32, i32) {
    %c0_i32 = arith.constant 0 : i32
    %c0_i32_0 = arith.constant 0 : i32
    %c0_i32_1 = arith.constant 0 : i32
    return %arg0, %c0_i32, %c0_i32_0 : i32, i32, i32
  }
}

</mosaic_0001>

<llo_original>
// kernel: agg_conv_forward.5
$region0: #{agg_conv_forward.5}
  #allocation0 [shape = 'u32[]', space=smem, size = 0x4, offset = 0x4, fixed_abs, tag = 'smem constant byte address 0x4 - core index']
  #allocation1 [shape = 'u32[144,128]{1,0:T(1,128)}', space=vmem, size = 0x12000, scoped, tag = 'internal scratch']
  %s0 = inlined_call_operand.vmem [shape: bf16[2,18,18,4], index: 0, kind: input, shape index: {}]
  %s1 = inlined_call_operand.vmem [shape: bf16[36,8], index: 1, kind: input, shape index: {}]
  %s2 = inlined_call_operand.vmem [shape: f32[1,8], index: 2, kind: input, shape index: {}]
  %s3 = inlined_call_operand.vmem [shape: f32[2,256,8], index: 3, kind: output, shape index: {}]
  %s4 = sld [smem:[#allocation0]]
  $region45: #{agg_conv_forward.5} parent=0
    _
  %s6 = ssub.s32 1, %s4
  %s7 = scalar_select 0, %s6, %s4
  loop: start=0, step=1, limit=4
  $region2: #{agg_conv_forward.5} parent=0 // loop_pre_header
    _
  $region3: #{agg_conv_forward.5} parent=0 // loop_header
    %s9 = sphi 0, %s13
    %p10 = scmp.ge.s32.totalorder %s9, 4
    %s19 = sphi 0, %s21
    %s22 = sphi 0, %s19
    %s23 = sphi 0, %s22
    %s39 = sphi 0, %s23
    %s43 = sphi 0, %s43
    %s45 = sphi 0, %s43
    %s46 = sphi 0, %s45
    %s60 = sphi 0, %s46
    %s64 = sphi 0, %s64
    %s66 = sphi 0, %s64
    %s67 = sphi 0, %s66
    %s81 = sphi 0, %s67
    %s87 = sphi 0, %s89
    %s90 = sphi 0, %s87
    %s91 = sphi 0, %s90
    %s107 = sphi 0, %s91
  $region4: #{agg_conv_forward.5} parent=0 // loop_header_branch
    %12 = sbr.rel (%p10) target = $region8
  $region5: #{agg_conv_forward.5} parent=0 // loop_body
    %s14 = ssub.s32 %s9, 1
    %s15 = ssub.s32 %s9, 2
    %s16 = sadd.s32 %s9, 1
    %s17 = ssub.s32 %s9, %s16
    %p18 = scmp.eq.s32.totalorder %s17, 0
    %s20 = sadd.s32 %s19, 1
    %s21 = scalar_select %p18, %s19, %s20
    %p24 = pneg %p18
    %p25 = scmp.eq.s32.totalorder %s9, 1
    %p26 = por %p24, %p25
    %p27 = scmp.ne.s32.totalorder %s19, %s22
    %p28 = scmp.eq.s32.totalorder %s9, 0
    %p29 = por %p27, %p28
    %p30 = scmp.ne.s32.totalorder %s19, %s22
    %p31 = scmp.eq.s32.totalorder %s14, 1
    %p32 = por %p30, %p31
    %p33 = scmp.ne.s32.totalorder %s22, %s23
    %p34 = scmp.eq.s32.totalorder %s14, 0
    %p35 = por %p33, %p34
    %p36 = scmp.ne.s32.totalorder %s22, %s23
    %p37 = scmp.eq.s32.totalorder %s15, 1
    %p38 = por %p36, %p37
    %p40 = scmp.ne.s32.totalorder %s23, %s39
    %p41 = scmp.eq.s32.totalorder %s15, 0
    %p42 = por %p40, %p41
    %s44 = sadd.s32 %s43, 1
    %p47 = scmp.eq.s32.totalorder %s9, 1
    %p48 = scmp.ne.s32.totalorder %s43, %s45
    %p49 = scmp.eq.s32.totalorder %s9, 0
    %p50 = por %p48, %p49
    %p51 = scmp.ne.s32.totalorder %s43, %s45
    %p52 = scmp.eq.s32.totalorder %s14, 1
    %p53 = por %p51, %p52
    %p54 = scmp.ne.s32.totalorder %s45, %s46
    %p55 = scmp.eq.s32.totalorder %s14, 0
    %p56 = por %p54, %p55
    %p57 = scmp.ne.s32.totalorder %s45, %s46
    %p58 = scmp.eq.s32.totalorder %s15, 1
    %p59 = por %p57, %p58
    %p61 = scmp.ne.s32.totalorder %s46, %s60
    %p62 = scmp.eq.s32.totalorder %s15, 0
    %p63 = por %p61, %p62
    %s65 = sadd.s32 %s64, 1
    %p68 = scmp.eq.s32.totalorder %s9, 1
    %p69 = scmp.ne.s32.totalorder %s64, %s66
    %p70 = scmp.eq.s32.totalorder %s9, 0
    %p71 = por %p69, %p70
    %p72 = scmp.ne.s32.totalorder %s64, %s66
    %p73 = scmp.eq.s32.totalorder %s14, 1
    %p74 = por %p72, %p73
    %p75 = scmp.ne.s32.totalorder %s66, %s67
    %p76 = scmp.eq.s32.totalorder %s14, 0
    %p77 = por %p75, %p76
    %p78 = scmp.ne.s32.totalorder %s66, %s67
    %p79 = scmp.eq.s32.totalorder %s15, 1
    %p80 = por %p78, %p79
    %p82 = scmp.ne.s32.totalorder %s67, %s81
    %p83 = scmp.eq.s32.totalorder %s15, 0
    %p84 = por %p82, %p83
    %s85 = ssub.s32 %s9, %s16
    %p86 = scmp.eq.s32.totalorder %s85, 0
    %s88 = sadd.s32 %s87, 1
    %s89 = scalar_select %p86, %s87, %s88
    %p92 = pneg %p86
    %p93 = scmp.eq.s32.totalorder %s9, 1
    %p94 = por %p92, %p93
    %p95 = scmp.ne.s32.totalorder %s87, %s90
    %p96 = scmp.eq.s32.totalorder %s9, 0
    %p97 = por %p95, %p96
    %p98 = scmp.ne.s32.totalorder %s87, %s90
    %p99 = scmp.eq.s32.totalorder %s14, 1
    %p100 = por %p98, %p99
    %p101 = scmp.ne.s32.totalorder %s90, %s91
    %p102 = scmp.eq.s32.totalorder %s14, 0
    %p103 = por %p101, %p102
    %p104 = scmp.ne.s32.totalorder %s90, %s91
    %p105 = scmp.eq.s32.totalorder %s15, 1
    %p106 = por %p104, %p105
    %p108 = scmp.ne.s32.totalorder %s91, %s107
    %p109 = scmp.eq.s32.totalorder %s15, 0
    %p110 = por %p108, %p109
    %p111 = scmp.le.s32.totalorder 1, %s9
    %p112 = scmp.lt.s32.totalorder %s9, 3
    %p113 = pnand %p111, %p112
    %p114 = pneg %p113
    // Predicated region
    $region9: #{agg_conv_forward.5} parent=5 // pred_check
      _
    $region10: #{agg_conv_forward.5} parent=5 // pred_check_branch
      %116 = sbr.rel (%p113) target = $region12
    $region11: #{agg_conv_forward.5} parent=5 // pred_region
      %s117 = ssub.s32 %s9, 1
      // Predicated region
      $region13: #{agg_conv_forward.5} parent=11 // pred_check
        %p118 = pneg %p56
      $region14: #{agg_conv_forward.5} parent=11 // pred_check_branch
        %120 = sbr.rel (%p118) target = $region16
      $region15: #{agg_conv_forward.5} parent=11 // pred_region
        _
      $region16: #{agg_conv_forward.5} parent=11 // pred_fallthru
        _
      // Predicated region
      $region17: #{agg_conv_forward.5} parent=11 // pred_check
        %p121 = pneg %p77
      $region18: #{agg_conv_forward.5} parent=11 // pred_check_branch
        %123 = sbr.rel (%p121) target = $region20
      $region19: #{agg_conv_forward.5} parent=11 // pred_region
        _
      $region20: #{agg_conv_forward.5} parent=11 // pred_fallthru
        _
    $region12: #{agg_conv_forward.5} parent=5 // pred_fallthru
      _
    %p124 = scmp.lt.s32.totalorder %s9, 2
    // Predicated region
    $region21: #{agg_conv_forward.5} parent=5 // pred_check
      %p125 = pneg %p124
    $region22: #{agg_conv_forward.5} parent=5 // pred_check_branch
      %127 = sbr.rel (%p125) target = $region24
    $region23: #{agg_conv_forward.5} parent=5 // pred_region
      // Predicated region
      $region25: #{agg_conv_forward.5} parent=23 // pred_check
        %p128 = pneg %p29
      $region26: #{agg_conv_forward.5} parent=23 // pred_check_branch
        %130 = sbr.rel (%p128) target = $region28
      $region27: #{agg_conv_forward.5} parent=23 // pred_region
        %p131 = scmp.lt.s32.totalorder %s9, 1
        %s132 = scalar_select %p131, %s9, 1
        %s133 = smul.addr %s132, 54
        %s134 = smul.addr %s133, 4
        %s135 = scalar_lea.vmem %s0, %s134
      $region28: #{agg_conv_forward.5} parent=23 // pred_fallthru
        _
    $region24: #{agg_conv_forward.5} parent=5 // pred_fallthru
      _
    %p136 = scmp.le.s32.totalorder 1, %s9
    %p137 = scmp.lt.s32.totalorder %s9, 3
    %p138 = pnand %p136, %p137
    %p139 = pneg %p138
    // Predicated region
    $region29: #{agg_conv_forward.5} parent=5 // pred_check
      _
    $region30: #{agg_conv_forward.5} parent=5 // pred_check_branch
      %141 = sbr.rel (%p138) target = $region32
    $region31: #{agg_conv_forward.5} parent=5 // pred_region
      %s142 = ssub.s32 %s9, 1
      %p143 = scmp.lt.s32.totalorder %s14, 1
      %s144 = scalar_select %p143, %s14, 1
      %s145 = smul.addr %s144, 54
      %s146 = smul.addr %s145, 4
      %s147 = scalar_lea.vmem %s0, %s146
      %p148 = pneg %p35
      %p149 = pneg %p32
      %p150 = pneg %p56
      %p151 = pneg %p53
      %p152 = pneg %p77
      %p153 = pneg %p74
      %p154 = pneg %p103
      %p155 = pneg %p100
      %p156 = scmp.lt.s32.totalorder %s14, 1
      %s157 = scalar_select %p156, %s14, 1
      %s158 = smul.addr %s157, 32
      %s159 = smul.addr %s158, 8
      %s160 = scalar_lea.vmem %s3, %s159
      %p161 = scmp.lt.s32.totalorder %s14, 1
      %s162 = scalar_select %p161, %s14, 1
      %s163 = smul.addr %s162, 54
      %s164 = smul.addr %s163, 4
      %s165 = scalar_lea.vmem %s0, %s164
      %p166 = scmp.lt.s32.totalorder %s14, 1
      %s167 = scalar_select %p166, %s14, 1
      %s168 = smul.addr %s167, 32
      %s169 = smul.addr %s168, 8
      %s170 = scalar_lea.vmem %s3, %s169
      %v172 = vld [vmem:[%s165] sm:$0xf]
      %v173 = vld [vmem:[%s165 + $0x4] sm:$0xf]
      %v174 = vld [vmem:[%s165 + $0x8] sm:$0x1]
      %v175 = vld [vmem:[%s165 + $0xc] sm:$0xf]
      %v176 = vld [vmem:[%s165 + $0x10] sm:$0xf]
      %v177 = vld [vmem:[%s165 + $0x14] sm:$0x1]
      %v178 = vld [vmem:[%s165 + $0x18] sm:$0xf]
      %v179 = vld [vmem:[%s165 + $0x1c] sm:$0xf]
      %v180 = vld [vmem:[%s165 + $0x20] sm:$0x1]
      %v181 = vld [vmem:[%s165 + $0x24] sm:$0xf]
      %v182 = vld [vmem:[%s165 + $0x28] sm:$0xf]
      %v183 = vld [vmem:[%s165 + $0x2c] sm:$0x1]
      %v184 = vld [vmem:[%s165 + $0x30] sm:$0xf]
      %v185 = vld [vmem:[%s165 + $0x34] sm:$0xf]
      %v186 = vld [vmem:[%s165 + $0x38] sm:$0x1]
      %v187 = vld [vmem:[%s165 + $0x3c] sm:$0xf]
      %v188 = vld [vmem:[%s165 + $0x40] sm:$0xf]
      %v189 = vld [vmem:[%s165 + $0x44] sm:$0x1]
      %v190 = vld [vmem:[%s165 + $0x48] sm:$0xf]
      %v191 = vld [vmem:[%s165 + $0x4c] sm:$0xf]
      %v192 = vld [vmem:[%s165 + $0x50] sm:$0x1]
      %v193 = vld [vmem:[%s165 + $0x54] sm:$0xf]
      %v194 = vld [vmem:[%s165 + $0x58] sm:$0xf]
      %v195 = vld [vmem:[%s165 + $0x5c] sm:$0x1]
      %v196 = vld [vmem:[%s165 + $0x60] sm:$0xf]
      %v197 = vld [vmem:[%s165 + $0x64] sm:$0xf]
      %v198 = vld [vmem:[%s165 + $0x68] sm:$0x1]
      %v199 = vld [vmem:[%s165 + $0x6c] sm:$0xf]
      %v200 = vld [vmem:[%s165 + $0x70] sm:$0xf]
      %v201 = vld [vmem:[%s165 + $0x74] sm:$0x1]
      %v202 = vld [vmem:[%s165 + $0x78] sm:$0xf]
      %v203 = vld [vmem:[%s165 + $0x7c] sm:$0xf]
      %v204 = vld [vmem:[%s165 + $0x80] sm:$0x1]
      %v205 = vld [vmem:[%s165 + $0x84] sm:$0xf]
      %v206 = vld [vmem:[%s165 + $0x88] sm:$0xf]
      %v207 = vld [vmem:[%s165 + $0x8c] sm:$0x1]
      %v208 = vld [vmem:[%s165 + $0x90] sm:$0xf]
      %v209 = vld [vmem:[%s165 + $0x94] sm:$0xf]
      %v210 = vld [vmem:[%s165 + $0x98] sm:$0x1]
      %v211 = vld [vmem:[%s165 + $0x9c] sm:$0xf]
      %v212 = vld [vmem:[%s165 + $0xa0] sm:$0xf]
      %v213 = vld [vmem:[%s165 + $0xa4] sm:$0x1]
      %v214 = vld [vmem:[%s165 + $0xa8] sm:$0xf]
      %v215 = vld [vmem:[%s165 + $0xac] sm:$0xf]
      %v216 = vld [vmem:[%s165 + $0xb0] sm:$0x1]
      %v217 = vld [vmem:[%s165 + $0xb4] sm:$0xf]
      %v218 = vld [vmem:[%s165 + $0xb8] sm:$0xf]
      %v219 = vld [vmem:[%s165 + $0xbc] sm:$0x1]
      %v220 = vld [vmem:[%s165 + $0xc0] sm:$0xf]
      %v221 = vld [vmem:[%s165 + $0xc4] sm:$0xf]
      %v222 = vld [vmem:[%s165 + $0xc8] sm:$0x1]
      %v223 = vld [vmem:[%s165 + $0xcc] sm:$0xf]
      %v224 = vld [vmem:[%s165 + $0xd0] sm:$0xf]
      %v225 = vld [vmem:[%s165 + $0xd4] sm:$0x1]
      %v226 = vunpack.c.l.bf16 %v172
      %v227 = vunpack.c.l.bf16 %v173
      %v228 = vunpack.c.l.bf16 %v174
      %v229 = vunpack.c.l.bf16 %v175
      %v230 = vunpack.c.l.bf16 %v176
      %v231 = vunpack.c.l.bf16 %v177
      %v232 = vunpack.c.l.bf16 %v178
      %v233 = vunpack.c.l.bf16 %v179
      %v234 = vunpack.c.l.bf16 %v180
      %v235 = vunpack.c.l.bf16 %v181
      %v236 = vunpack.c.l.bf16 %v182
      %v237 = vunpack.c.l.bf16 %v183
      %v238 = vunpack.c.l.bf16 %v184
      %v239 = vunpack.c.l.bf16 %v185
      %v240 = vunpack.c.l.bf16 %v186
      %v241 = vunpack.c.l.bf16 %v187
      %v242 = vunpack.c.l.bf16 %v188
      %v243 = vunpack.c.l.bf16 %v189
      %v244 = vunpack.c.l.bf16 %v190
      %v245 = vunpack.c.l.bf16 %v191
      %v246 = vunpack.c.l.bf16 %v192
      %v247 = vunpack.c.l.bf16 %v193
      %v248 = vunpack.c.l.bf16 %v194
      %v249 = vunpack.c.l.bf16 %v195
      %v250 = vunpack.c.l.bf16 %v196
      %v251 = vunpack.c.l.bf16 %v197
      %v252 = vunpack.c.l.bf16 %v198
      %v253 = vunpack.c.l.bf16 %v199
      %v254 = vunpack.c.l.bf16 %v200
      %v255 = vunpack.c.l.bf16 %v201
      %v256 = vunpack.c.l.bf16 %v202
      %v257 = vunpack.c.l.bf16 %v203
      %v258 = vunpack.c.l.bf16 %v204
      %v259 = vunpack.c.l.bf16 %v205
      %v260 = vunpack.c.l.bf16 %v206
      %v261 = vunpack.c.l.bf16 %v207
      %v262 = vunpack.c.l.bf16 %v208
      %v263 = vunpack.c.l.bf16 %v209
      %v264 = vunpack.c.l.bf16 %v210
      %v265 = vunpack.c.l.bf16 %v211
      %v266 = vunpack.c.l.bf16 %v212
      %v267 = vunpack.c.l.bf16 %v213
      %v268 = vunpack.c.l.bf16 %v214
      %v269 = vunpack.c.l.bf16 %v215
      %v270 = vunpack.c.l.bf16 %v216
      %v271 = vunpack.c.l.bf16 %v217
      %v272 = vunpack.c.l.bf16 %v218
      %v273 = vunpack.c.l.bf16 %v219
      %v274 = vunpack.c.l.bf16 %v220
      %v275 = vunpack.c.l.bf16 %v221
      %v276 = vunpack.c.l.bf16 %v222
      %v277 = vunpack.c.l.bf16 %v223
      %v278 = vunpack.c.l.bf16 %v224
      %v279 = vunpack.c.l.bf16 %v225
      %vm328 = vcmask 1046528
      %v329 = vrot.slane %v226, 1
      %v330 = vrot.slane %v227, 1
      %v331 = vsel %vm328, %v329, %v330
      %v332 = vrot.slane %v228, 1
      %v333 = vsel %vm328, %v330, %v332
      %v334 = vrot.slane %v229, 1
      %v335 = vrot.slane %v230, 1
      %v336 = vsel %vm328, %v334, %v335
      %v337 = vrot.slane %v231, 1
      %v338 = vsel %vm328, %v335, %v337
      %v339 = vrot.slane %v232, 1
      %v340 = vrot.slane %v233, 1
      %v341 = vsel %vm328, %v339, %v340
      %v342 = vrot.slane %v234, 1
      %v343 = vsel %vm328, %v340, %v342
      %v344 = vrot.slane %v235, 1
      %v345 = vrot.slane %v236, 1
      %v346 = vsel %vm328, %v344, %v345
      %v347 = vrot.slane %v237, 1
      %v348 = vsel %vm328, %v345, %v347
      %v349 = vrot.slane %v238, 1
      %v350 = vrot.slane %v239, 1
      %v351 = vsel %vm328, %v349, %v350
      %v352 = vrot.slane %v240, 1
      %v353 = vsel %vm328, %v350, %v352
      %v354 = vrot.slane %v241, 1
      %v355 = vrot.slane %v242, 1
      %v356 = vsel %vm328, %v354, %v355
      %v357 = vrot.slane %v243, 1
      %v358 = vsel %vm328, %v355, %v357
      %v359 = vrot.slane %v244, 1
      %v360 = vrot.slane %v245, 1
      %v361 = vsel %vm328, %v359, %v360
      %v362 = vrot.slane %v246, 1
      %v363 = vsel %vm328, %v360, %v362
      %v364 = vrot.slane %v247, 1
      %v365 = vrot.slane %v248, 1
      %v366 = vsel %vm328, %v364, %v365
      %v367 = vrot.slane %v249, 1
      %v368 = vsel %vm328, %v365, %v367
      %v369 = vrot.slane %v250, 1
      %v370 = vrot.slane %v251, 1
      %v371 = vsel %vm328, %v369, %v370
      %v372 = vrot.slane %v252, 1
      %v373 = vsel %vm328, %v370, %v372
      %v374 = vrot.slane %v253, 1
      %v375 = vrot.slane %v254, 1
      %v376 = vsel %vm328, %v374, %v375
      %v377 = vrot.slane %v255, 1
      %v378 = vsel %vm328, %v375, %v377
      %v379 = vrot.slane %v256, 1
      %v380 = vrot.slane %v257, 1
      %v381 = vsel %vm328, %v379, %v380
      %v382 = vrot.slane %v258, 1
      %v383 = vsel %vm328, %v380, %v382
      %v384 = vrot.slane %v259, 1
      %v385 = vrot.slane %v260, 1
      %v386 = vsel %vm328, %v384, %v385
      %v387 = vrot.slane %v261, 1
      %v388 = vsel %vm328, %v385, %v387
      %v389 = vrot.slane %v262, 1
      %v390 = vrot.slane %v263, 1
      %v391 = vsel %vm328, %v389, %v390
      %v392 = vrot.slane %v264, 1
      %v393 = vsel %vm328, %v390, %v392
      %v394 = vrot.slane %v265, 1
      %v395 = vrot.slane %v266, 1
      %v396 = vsel %vm328, %v394, %v395
      %v397 = vrot.slane %v267, 1
      %v398 = vsel %vm328, %v395, %v397
      %v399 = vrot.slane %v268, 1
      %v400 = vrot.slane %v269, 1
      %v401 = vsel %vm328, %v399, %v400
      %v402 = vrot.slane %v270, 1
      %v403 = vsel %vm328, %v400, %v402
      %v404 = vrot.slane %v271, 1
      %v405 = vrot.slane %v272, 1
      %v406 = vsel %vm328, %v404, %v405
      %v407 = vrot.slane %v273, 1
      %v408 = vsel %vm328, %v405, %v407
      %409 = vrot.lane.b32.xlu0 %v331, 4
      %v410 = vpop.permute.xlu0 %409
      %411 = vrot.lane.b32.xlu0 %v333, 4
      %v412 = vpop.permute.xlu0 %411
      %413 = vrot.lane.b32.xlu0 %v336, 4
      %v414 = vpop.permute.xlu0 %413
      %415 = vrot.lane.b32.xlu0 %v338, 4
      %v416 = vpop.permute.xlu0 %415
      %417 = vrot.lane.b32.xlu0 %v341, 4
      %v418 = vpop.permute.xlu0 %417
      %419 = vrot.lane.b32.xlu0 %v343, 4
      %v420 = vpop.permute.xlu0 %419
      %421 = vrot.lane.b32.xlu0 %v346, 4
      %v422 = vpop.permute.xlu0 %421
      %423 = vrot.lane.b32.xlu0 %v348, 4
      %v424 = vpop.permute.xlu0 %423
      %425 = vrot.lane.b32.xlu0 %v351, 4
      %v426 = vpop.permute.xlu0 %425
      %427 = vrot.lane.b32.xlu0 %v353, 4
      %v428 = vpop.permute.xlu0 %427
      %429 = vrot.lane.b32.xlu0 %v356, 4
      %v430 = vpop.permute.xlu0 %429
      %431 = vrot.lane.b32.xlu0 %v358, 4
      %v432 = vpop.permute.xlu0 %431
      %433 = vrot.lane.b32.xlu0 %v361, 4
      %v434 = vpop.permute.xlu0 %433
      %435 = vrot.lane.b32.xlu0 %v363, 4
      %v436 = vpop.permute.xlu0 %435
      %437 = vrot.lane.b32.xlu0 %v366, 4
      %v438 = vpop.permute.xlu0 %437
      %439 = vrot.lane.b32.xlu0 %v368, 4
      %v440 = vpop.permute.xlu0 %439
      %441 = vrot.lane.b32.xlu0 %v371, 4
      %v442 = vpop.permute.xlu0 %441
      %443 = vrot.lane.b32.xlu0 %v373, 4
      %v444 = vpop.permute.xlu0 %443
      %445 = vrot.lane.b32.xlu0 %v376, 4
      %v446 = vpop.permute.xlu0 %445
      %447 = vrot.lane.b32.xlu0 %v378, 4
      %v448 = vpop.permute.xlu0 %447
      %449 = vrot.lane.b32.xlu0 %v381, 4
      %v450 = vpop.permute.xlu0 %449
      %451 = vrot.lane.b32.xlu0 %v383, 4
      %v452 = vpop.permute.xlu0 %451
      %453 = vrot.lane.b32.xlu0 %v386, 4
      %v454 = vpop.permute.xlu0 %453
      %455 = vrot.lane.b32.xlu0 %v388, 4
      %v456 = vpop.permute.xlu0 %455
      %457 = vrot.lane.b32.xlu0 %v391, 4
      %v458 = vpop.permute.xlu0 %457
      %459 = vrot.lane.b32.xlu0 %v393, 4
      %v460 = vpop.permute.xlu0 %459
      %461 = vrot.lane.b32.xlu0 %v396, 4
      %v462 = vpop.permute.xlu0 %461
      %463 = vrot.lane.b32.xlu0 %v398, 4
      %v464 = vpop.permute.xlu0 %463
      %465 = vrot.lane.b32.xlu0 %v401, 4
      %v466 = vpop.permute.xlu0 %465
      %467 = vrot.lane.b32.xlu0 %v403, 4
      %v468 = vpop.permute.xlu0 %467
      %469 = vrot.lane.b32.xlu0 %v406, 4
      %v470 = vpop.permute.xlu0 %469
      %471 = vrot.lane.b32.xlu0 %v408, 4
      %v472 = vpop.permute.xlu0 %471
      %vm505 = vcmask 1045504
      %v506 = vrot.slane %v226, 2
      %v507 = vrot.slane %v227, 2
      %v508 = vsel %vm505, %v506, %v507
      %v509 = vrot.slane %v228, 2
      %v510 = vsel %vm505, %v507, %v509
      %v511 = vrot.slane %v229, 2
      %v512 = vrot.slane %v230, 2
      %v513 = vsel %vm505, %v511, %v512
      %v514 = vrot.slane %v231, 2
      %v515 = vsel %vm505, %v512, %v514
      %v516 = vrot.slane %v232, 2
      %v517 = vrot.slane %v233, 2
      %v518 = vsel %vm505, %v516, %v517
      %v519 = vrot.slane %v234, 2
      %v520 = vsel %vm505, %v517, %v519
      %v521 = vrot.slane %v235, 2
      %v522 = vrot.slane %v236, 2
      %v523 = vsel %vm505, %v521, %v522
      %v524 = vrot.slane %v237, 2
      %v525 = vsel %vm505, %v522, %v524
      %v526 = vrot.slane %v238, 2
      %v527 = vrot.slane %v239, 2
      %v528 = vsel %vm505, %v526, %v527
      %v529 = vrot.slane %v240, 2
      %v530 = vsel %vm505, %v527, %v529
      %v531 = vrot.slane %v241, 2
      %v532 = vrot.slane %v242, 2
      %v533 = vsel %vm505, %v531, %v532
      %v534 = vrot.slane %v243, 2
      %v535 = vsel %vm505, %v532, %v534
      %v536 = vrot.slane %v244, 2
      %v537 = vrot.slane %v245, 2
      %v538 = vsel %vm505, %v536, %v537
      %v539 = vrot.slane %v246, 2
      %v540 = vsel %vm505, %v537, %v539
      %v541 = vrot.slane %v247, 2
      %v542 = vrot.slane %v248, 2
      %v543 = vsel %vm505, %v541, %v542
      %v544 = vrot.slane %v249, 2
      %v545 = vsel %vm505, %v542, %v544
      %v546 = vrot.slane %v250, 2
      %v547 = vrot.slane %v251, 2
      %v548 = vsel %vm505, %v546, %v547
      %v549 = vrot.slane %v252, 2
      %v550 = vsel %vm505, %v547, %v549
      %v551 = vrot.slane %v253, 2
      %v552 = vrot.slane %v254, 2
      %v553 = vsel %vm505, %v551, %v552
      %v554 = vrot.slane %v255, 2
      %v555 = vsel %vm505, %v552, %v554
      %v556 = vrot.slane %v256, 2
      %v557 = vrot.slane %v257, 2
      %v558 = vsel %vm505, %v556, %v557
      %v559 = vrot.slane %v258, 2
      %v560 = vsel %vm505, %v557, %v559
      %v561 = vrot.slane %v259, 2
      %v562 = vrot.slane %v260, 2
      %v563 = vsel %vm505, %v561, %v562
      %v564 = vrot.slane %v261, 2
      %v565 = vsel %vm505, %v562, %v564
      %v566 = vrot.slane %v262, 2
      %v567 = vrot.slane %v263, 2
      %v568 = vsel %vm505, %v566, %v567
      %v569 = vrot.slane %v264, 2
      %v570 = vsel %vm505, %v567, %v569
      %v571 = vrot.slane %v265, 2
      %v572 = vrot.slane %v266, 2
      %v573 = vsel %vm505, %v571, %v572
      %v574 = vrot.slane %v267, 2
      %v575 = vsel %vm505, %v572, %v574
      %v576 = vrot.slane %v268, 2
      %v577 = vrot.slane %v269, 2
      %v578 = vsel %vm505, %v576, %v577
      %v579 = vrot.slane %v270, 2
      %v580 = vsel %vm505, %v577, %v579
      %v581 = vrot.slane %v271, 2
      %v582 = vrot.slane %v272, 2
      %v583 = vsel %vm505, %v581, %v582
      %v584 = vrot.slane %v273, 2
      %v585 = vsel %vm505, %v582, %v584
      %586 = vrot.lane.b32.xlu0 %v508, 8
      %v587 = vpop.permute.xlu0 %586
      %588 = vrot.lane.b32.xlu0 %v510, 8
      %v589 = vpop.permute.xlu0 %588
      %590 = vrot.lane.b32.xlu0 %v513, 8
      %v591 = vpop.permute.xlu0 %590
      %592 = vrot.lane.b32.xlu0 %v515, 8
      %v593 = vpop.permute.xlu0 %592
      %594 = vrot.lane.b32.xlu0 %v518, 8
      %v595 = vpop.permute.xlu0 %594
      %596 = vrot.lane.b32.xlu0 %v520, 8
      %v597 = vpop.permute.xlu0 %596
      %598 = vrot.lane.b32.xlu0 %v523, 8
      %v599 = vpop.permute.xlu0 %598
      %600 = vrot.lane.b32.xlu0 %v525, 8
      %v601 = vpop.permute.xlu0 %600
      %602 = vrot.lane.b32.xlu0 %v528, 8
      %v603 = vpop.permute.xlu0 %602
      %604 = vrot.lane.b32.xlu0 %v530, 8
      %v605 = vpop.permute.xlu0 %604
      %606 = vrot.lane.b32.xlu0 %v533, 8
      %v607 = vpop.permute.xlu0 %606
      %608 = vrot.lane.b32.xlu0 %v535, 8
      %v609 = vpop.permute.xlu0 %608
      %610 = vrot.lane.b32.xlu0 %v538, 8
      %v611 = vpop.permute.xlu0 %610
      %612 = vrot.lane.b32.xlu0 %v540, 8
      %v613 = vpop.permute.xlu0 %612
      %614 = vrot.lane.b32.xlu0 %v543, 8
      %v615 = vpop.permute.xlu0 %614
      %616 = vrot.lane.b32.xlu0 %v545, 8
      %v617 = vpop.permute.xlu0 %616
      %618 = vrot.lane.b32.xlu0 %v548, 8
      %v619 = vpop.permute.xlu0 %618
      %620 = vrot.lane.b32.xlu0 %v550, 8
      %v621 = vpop.permute.xlu0 %620
      %622 = vrot.lane.b32.xlu0 %v553, 8
      %v623 = vpop.permute.xlu0 %622
      %624 = vrot.lane.b32.xlu0 %v555, 8
      %v625 = vpop.permute.xlu0 %624
      %626 = vrot.lane.b32.xlu0 %v558, 8
      %v627 = vpop.permute.xlu0 %626
      %628 = vrot.lane.b32.xlu0 %v560, 8
      %v629 = vpop.permute.xlu0 %628
      %630 = vrot.lane.b32.xlu0 %v563, 8
      %v631 = vpop.permute.xlu0 %630
      %632 = vrot.lane.b32.xlu0 %v565, 8
      %v633 = vpop.permute.xlu0 %632
      %634 = vrot.lane.b32.xlu0 %v568, 8
      %v635 = vpop.permute.xlu0 %634
      %636 = vrot.lane.b32.xlu0 %v570, 8
      %v637 = vpop.permute.xlu0 %636
      %638 = vrot.lane.b32.xlu0 %v573, 8
      %v639 = vpop.permute.xlu0 %638
      %640 = vrot.lane.b32.xlu0 %v575, 8
      %v641 = vpop.permute.xlu0 %640
      %642 = vrot.lane.b32.xlu0 %v578, 8
      %v643 = vpop.permute.xlu0 %642
      %644 = vrot.lane.b32.xlu0 %v580, 8
      %v645 = vpop.permute.xlu0 %644
      %646 = vrot.lane.b32.xlu0 %v583, 8
      %v647 = vpop.permute.xlu0 %646
      %648 = vrot.lane.b32.xlu0 %v585, 8
      %v649 = vpop.permute.xlu0 %648
      %684 = vrot.lane.b32.xlu0 %v229, 12
      %v685 = vpop.permute.xlu0 %684
      %686 = vrot.lane.b32.xlu0 %v230, 12
      %v687 = vpop.permute.xlu0 %686
      %688 = vrot.lane.b32.xlu0 %v232, 12
      %v689 = vpop.permute.xlu0 %688
      %690 = vrot.lane.b32.xlu0 %v233, 12
      %v691 = vpop.permute.xlu0 %690
      %692 = vrot.lane.b32.xlu0 %v235, 12
      %v693 = vpop.permute.xlu0 %692
      %694 = vrot.lane.b32.xlu0 %v236, 12
      %v695 = vpop.permute.xlu0 %694
      %696 = vrot.lane.b32.xlu0 %v238, 12
      %v697 = vpop.permute.xlu0 %696
      %698 = vrot.lane.b32.xlu0 %v239, 12
      %v699 = vpop.permute.xlu0 %698
      %700 = vrot.lane.b32.xlu0 %v241, 12
      %v701 = vpop.permute.xlu0 %700
      %702 = vrot.lane.b32.xlu0 %v242, 12
      %v703 = vpop.permute.xlu0 %702
      %704 = vrot.lane.b32.xlu0 %v244, 12
      %v705 = vpop.permute.xlu0 %704
      %706 = vrot.lane.b32.xlu0 %v245, 12
      %v707 = vpop.permute.xlu0 %706
      %708 = vrot.lane.b32.xlu0 %v247, 12
      %v709 = vpop.permute.xlu0 %708
      %710 = vrot.lane.b32.xlu0 %v248, 12
      %v711 = vpop.permute.xlu0 %710
      %712 = vrot.lane.b32.xlu0 %v250, 12
      %v713 = vpop.permute.xlu0 %712
      %714 = vrot.lane.b32.xlu0 %v251, 12
      %v715 = vpop.permute.xlu0 %714
      %716 = vrot.lane.b32.xlu0 %v253, 12
      %v717 = vpop.permute.xlu0 %716
      %718 = vrot.lane.b32.xlu0 %v254, 12
      %v719 = vpop.permute.xlu0 %718
      %720 = vrot.lane.b32.xlu0 %v256, 12
      %v721 = vpop.permute.xlu0 %720
      %722 = vrot.lane.b32.xlu0 %v257, 12
      %v723 = vpop.permute.xlu0 %722
      %724 = vrot.lane.b32.xlu0 %v259, 12
      %v725 = vpop.permute.xlu0 %724
      %726 = vrot.lane.b32.xlu0 %v260, 12
      %v727 = vpop.permute.xlu0 %726
      %728 = vrot.lane.b32.xlu0 %v262, 12
      %v729 = vpop.permute.xlu0 %728
      %730 = vrot.lane.b32.xlu0 %v263, 12
      %v731 = vpop.permute.xlu0 %730
      %732 = vrot.lane.b32.xlu0 %v265, 12
      %v733 = vpop.permute.xlu0 %732
      %734 = vrot.lane.b32.xlu0 %v266, 12
      %v735 = vpop.permute.xlu0 %734
      %736 = vrot.lane.b32.xlu0 %v268, 12
      %v737 = vpop.permute.xlu0 %736
      %738 = vrot.lane.b32.xlu0 %v269, 12
      %v739 = vpop.permute.xlu0 %738
      %740 = vrot.lane.b32.xlu0 %v271, 12
      %v741 = vpop.permute.xlu0 %740
      %742 = vrot.lane.b32.xlu0 %v272, 12
      %v743 = vpop.permute.xlu0 %742
      %744 = vrot.lane.b32.xlu0 %v274, 12
      %v745 = vpop.permute.xlu0 %744
      %746 = vrot.lane.b32.xlu0 %v275, 12
      %v747 = vpop.permute.xlu0 %746
      %v781 = vrot.slane %v274, 1
      %v782 = vrot.slane %v275, 1
      %v783 = vsel %vm328, %v781, %v782
      %v784 = vrot.slane %v276, 1
      %v785 = vsel %vm328, %v782, %v784
      %786 = vrot.lane.b32.xlu0 %v336, 16
      %v787 = vpop.permute.xlu0 %786
      %788 = vrot.lane.b32.xlu0 %v338, 16
      %v789 = vpop.permute.xlu0 %788
      %790 = vrot.lane.b32.xlu0 %v341, 16
      %v791 = vpop.permute.xlu0 %790
      %792 = vrot.lane.b32.xlu0 %v343, 16
      %v793 = vpop.permute.xlu0 %792
      %794 = vrot.lane.b32.xlu0 %v346, 16
      %v795 = vpop.permute.xlu0 %794
      %796 = vrot.lane.b32.xlu0 %v348, 16
      %v797 = vpop.permute.xlu0 %796
      %798 = vrot.lane.b32.xlu0 %v351, 16
      %v799 = vpop.permute.xlu0 %798
      %800 = vrot.lane.b32.xlu0 %v353, 16
      %v801 = vpop.permute.xlu0 %800
      %802 = vrot.lane.b32.xlu0 %v356, 16
      %v803 = vpop.permute.xlu0 %802
      %804 = vrot.lane.b32.xlu0 %v358, 16
      %v805 = vpop.permute.xlu0 %804
      %806 = vrot.lane.b32.xlu0 %v361, 16
      %v807 = vpop.permute.xlu0 %806
      %808 = vrot.lane.b32.xlu0 %v363, 16
      %v809 = vpop.permute.xlu0 %808
      %810 = vrot.lane.b32.xlu0 %v366, 16
      %v811 = vpop.permute.xlu0 %810
      %812 = vrot.lane.b32.xlu0 %v368, 16
      %v813 = vpop.permute.xlu0 %812
      %814 = vrot.lane.b32.xlu0 %v371, 16
      %v815 = vpop.permute.xlu0 %814
      %816 = vrot.lane.b32.xlu0 %v373, 16
      %v817 = vpop.permute.xlu0 %816
      %818 = vrot.lane.b32.xlu0 %v376, 16
      %v819 = vpop.permute.xlu0 %818
      %820 = vrot.lane.b32.xlu0 %v378, 16
      %v821 = vpop.permute.xlu0 %820
      %822 = vrot.lane.b32.xlu0 %v381, 16
      %v823 = vpop.permute.xlu0 %822
      %824 = vrot.lane.b32.xlu0 %v383, 16
      %v825 = vpop.permute.xlu0 %824
      %826 = vrot.lane.b32.xlu0 %v386, 16
      %v827 = vpop.permute.xlu0 %826
      %828 = vrot.lane.b32.xlu0 %v388, 16
      %v829 = vpop.permute.xlu0 %828
      %830 = vrot.lane.b32.xlu0 %v391, 16
      %v831 = vpop.permute.xlu0 %830
      %832 = vrot.lane.b32.xlu0 %v393, 16
      %v833 = vpop.permute.xlu0 %832
      %834 = vrot.lane.b32.xlu0 %v396, 16
      %v835 = vpop.permute.xlu0 %834
      %836 = vrot.lane.b32.xlu0 %v398, 16
      %v837 = vpop.permute.xlu0 %836
      %838 = vrot.lane.b32.xlu0 %v401, 16
      %v839 = vpop.permute.xlu0 %838
      %840 = vrot.lane.b32.xlu0 %v403, 16
      %v841 = vpop.permute.xlu0 %840
      %842 = vrot.lane.b32.xlu0 %v406, 16
      %v843 = vpop.permute.xlu0 %842
      %844 = vrot.lane.b32.xlu0 %v408, 16
      %v845 = vpop.permute.xlu0 %844
      %846 = vrot.lane.b32.xlu0 %v783, 16
      %v847 = vpop.permute.xlu0 %846
      %848 = vrot.lane.b32.xlu0 %v785, 16
      %v849 = vpop.permute.xlu0 %848
      %v882 = vrot.slane %v274, 2
      %v883 = vrot.slane %v275, 2
      %v884 = vsel %vm505, %v882, %v883
      %v885 = vrot.slane %v276, 2
      %v886 = vsel %vm505, %v883, %v885
      %887 = vrot.lane.b32.xlu0 %v513, 20
      %v888 = vpop.permute.xlu0 %887
      %889 = vrot.lane.b32.xlu0 %v515, 20
      %v890 = vpop.permute.xlu0 %889
      %891 = vrot.lane.b32.xlu0 %v518, 20
      %v892 = vpop.permute.xlu0 %891
      %893 = vrot.lane.b32.xlu0 %v520, 20
      %v894 = vpop.permute.xlu0 %893
      %895 = vrot.lane.b32.xlu0 %v523, 20
      %v896 = vpop.permute.xlu0 %895
      %897 = vrot.lane.b32.xlu0 %v525, 20
      %v898 = vpop.permute.xlu0 %897
      %899 = vrot.lane.b32.xlu0 %v528, 20
      %v900 = vpop.permute.xlu0 %899
      %901 = vrot.lane.b32.xlu0 %v530, 20
      %v902 = vpop.permute.xlu0 %901
      %903 = vrot.lane.b32.xlu0 %v533, 20
      %v904 = vpop.permute.xlu0 %903
      %905 = vrot.lane.b32.xlu0 %v535, 20
      %v906 = vpop.permute.xlu0 %905
      %907 = vrot.lane.b32.xlu0 %v538, 20
      %v908 = vpop.permute.xlu0 %907
      %909 = vrot.lane.b32.xlu0 %v540, 20
      %v910 = vpop.permute.xlu0 %909
      %911 = vrot.lane.b32.xlu0 %v543, 20
      %v912 = vpop.permute.xlu0 %911
      %913 = vrot.lane.b32.xlu0 %v545, 20
      %v914 = vpop.permute.xlu0 %913
      %915 = vrot.lane.b32.xlu0 %v548, 20
      %v916 = vpop.permute.xlu0 %915
      %917 = vrot.lane.b32.xlu0 %v550, 20
      %v918 = vpop.permute.xlu0 %917
      %919 = vrot.lane.b32.xlu0 %v553, 20
      %v920 = vpop.permute.xlu0 %919
      %921 = vrot.lane.b32.xlu0 %v555, 20
      %v922 = vpop.permute.xlu0 %921
      %923 = vrot.lane.b32.xlu0 %v558, 20
      %v924 = vpop.permute.xlu0 %923
      %925 = vrot.lane.b32.xlu0 %v560, 20
      %v926 = vpop.permute.xlu0 %925
      %927 = vrot.lane.b32.xlu0 %v563, 20
      %v928 = vpop.permute.xlu0 %927
      %929 = vrot.lane.b32.xlu0 %v565, 20
      %v930 = vpop.permute.xlu0 %929
      %931 = vrot.lane.b32.xlu0 %v568, 20
      %v932 = vpop.permute.xlu0 %931
      %933 = vrot.lane.b32.xlu0 %v570, 20
      %v934 = vpop.permute.xlu0 %933
      %935 = vrot.lane.b32.xlu0 %v573, 20
      %v936 = vpop.permute.xlu0 %935
      %937 = vrot.lane.b32.xlu0 %v575, 20
      %v938 = vpop.permute.xlu0 %937
      %939 = vrot.lane.b32.xlu0 %v578, 20
      %v940 = vpop.permute.xlu0 %939
      %941 = vrot.lane.b32.xlu0 %v580, 20
      %v942 = vpop.permute.xlu0 %941
      %943 = vrot.lane.b32.xlu0 %v583, 20
      %v944 = vpop.permute.xlu0 %943
      %945 = vrot.lane.b32.xlu0 %v585, 20
      %v946 = vpop.permute.xlu0 %945
      %947 = vrot.lane.b32.xlu0 %v884, 20
      %v948 = vpop.permute.xlu0 %947
      %949 = vrot.lane.b32.xlu0 %v886, 20
      %v950 = vpop.permute.xlu0 %949
      %985 = vrot.lane.b32.xlu0 %v232, 24
      %v986 = vpop.permute.xlu0 %985
      %987 = vrot.lane.b32.xlu0 %v233, 24
      %v988 = vpop.permute.xlu0 %987
      %989 = vrot.lane.b32.xlu0 %v235, 24
      %v990 = vpop.permute.xlu0 %989
      %991 = vrot.lane.b32.xlu0 %v236, 24
      %v992 = vpop.permute.xlu0 %991
      %993 = vrot.lane.b32.xlu0 %v238, 24
      %v994 = vpop.permute.xlu0 %993
      %995 = vrot.lane.b32.xlu0 %v239, 24
      %v996 = vpop.permute.xlu0 %995
      %997 = vrot.lane.b32.xlu0 %v241, 24
      %v998 = vpop.permute.xlu0 %997
      %999 = vrot.lane.b32.xlu0 %v242, 24
      %v1000 = vpop.permute.xlu0 %999
      %1001 = vrot.lane.b32.xlu0 %v244, 24
      %v1002 = vpop.permute.xlu0 %1001
      %1003 = vrot.lane.b32.xlu0 %v245, 24
      %v1004 = vpop.permute.xlu0 %1003
      %1005 = vrot.lane.b32.xlu0 %v247, 24
      %v1006 = vpop.permute.xlu0 %1005
      %1007 = vrot.lane.b32.xlu0 %v248, 24
      %v1008 = vpop.permute.xlu0 %1007
      %1009 = vrot.lane.b32.xlu0 %v250, 24
      %v1010 = vpop.permute.xlu0 %1009
      %1011 = vrot.lane.b32.xlu0 %v251, 24
      %v1012 = vpop.permute.xlu0 %1011
      %1013 = vrot.lane.b32.xlu0 %v253, 24
      %v1014 = vpop.permute.xlu0 %1013
      %1015 = vrot.lane.b32.xlu0 %v254, 24
      %v1016 = vpop.permute.xlu0 %1015
      %1017 = vrot.lane.b32.xlu0 %v256, 24
      %v1018 = vpop.permute.xlu0 %1017
      %1019 = vrot.lane.b32.xlu0 %v257, 24
      %v1020 = vpop.permute.xlu0 %1019
      %1021 = vrot.lane.b32.xlu0 %v259, 24
      %v1022 = vpop.permute.xlu0 %1021
      %1023 = vrot.lane.b32.xlu0 %v260, 24
      %v1024 = vpop.permute.xlu0 %1023
      %1025 = vrot.lane.b32.xlu0 %v262, 24
      %v1026 = vpop.permute.xlu0 %1025
      %1027 = vrot.lane.b32.xlu0 %v263, 24
      %v1028 = vpop.permute.xlu0 %1027
      %1029 = vrot.lane.b32.xlu0 %v265, 24
      %v1030 = vpop.permute.xlu0 %1029
      %1031 = vrot.lane.b32.xlu0 %v266, 24
      %v1032 = vpop.permute.xlu0 %1031
      %1033 = vrot.lane.b32.xlu0 %v268, 24
      %v1034 = vpop.permute.xlu0 %1033
      %1035 = vrot.lane.b32.xlu0 %v269, 24
      %v1036 = vpop.permute.xlu0 %1035
      %1037 = vrot.lane.b32.xlu0 %v271, 24
      %v1038 = vpop.permute.xlu0 %1037
      %1039 = vrot.lane.b32.xlu0 %v272, 24
      %v1040 = vpop.permute.xlu0 %1039
      %1041 = vrot.lane.b32.xlu0 %v274, 24
      %v1042 = vpop.permute.xlu0 %1041
      %1043 = vrot.lane.b32.xlu0 %v275, 24
      %v1044 = vpop.permute.xlu0 %1043
      %1045 = vrot.lane.b32.xlu0 %v277, 24
      %v1046 = vpop.permute.xlu0 %1045
      %1047 = vrot.lane.b32.xlu0 %v278, 24
      %v1048 = vpop.permute.xlu0 %1047
      %v1082 = vrot.slane %v277, 1
      %v1083 = vrot.slane %v278, 1
      %v1084 = vsel %vm328, %v1082, %v1083
      %v1085 = vrot.slane %v279, 1
      %v1086 = vsel %vm328, %v1083, %v1085
      %1087 = vrot.lane.b32.xlu0 %v341, 28
      %v1088 = vpop.permute.xlu0 %1087
      %1089 = vrot.lane.b32.xlu0 %v343, 28
      %v1090 = vpop.permute.xlu0 %1089
      %1091 = vrot.lane.b32.xlu0 %v346, 28
      %v1092 = vpop.permute.xlu0 %1091
      %1093 = vrot.lane.b32.xlu0 %v348, 28
      %v1094 = vpop.permute.xlu0 %1093
      %1095 = vrot.lane.b32.xlu0 %v351, 28
      %v1096 = vpop.permute.xlu0 %1095
      %1097 = vrot.lane.b32.xlu0 %v353, 28
      %v1098 = vpop.permute.xlu0 %1097
      %1099 = vrot.lane.b32.xlu0 %v356, 28
      %v1100 = vpop.permute.xlu0 %1099
      %1101 = vrot.lane.b32.xlu0 %v358, 28
      %v1102 = vpop.permute.xlu0 %1101
      %1103 = vrot.lane.b32.xlu0 %v361, 28
      %v1104 = vpop.permute.xlu0 %1103
      %1105 = vrot.lane.b32.xlu0 %v363, 28
      %v1106 = vpop.permute.xlu0 %1105
      %1107 = vrot.lane.b32.xlu0 %v366, 28
      %v1108 = vpop.permute.xlu0 %1107
      %1109 = vrot.lane.b32.xlu0 %v368, 28
      %v1110 = vpop.permute.xlu0 %1109
      %1111 = vrot.lane.b32.xlu0 %v371, 28
      %v1112 = vpop.permute.xlu0 %1111
      %1113 = vrot.lane.b32.xlu0 %v373, 28
      %v1114 = vpop.permute.xlu0 %1113
      %1115 = vrot.lane.b32.xlu0 %v376, 28
      %v1116 = vpop.permute.xlu0 %1115
      %1117 = vrot.lane.b32.xlu0 %v378, 28
      %v1118 = vpop.permute.xlu0 %1117
      %1119 = vrot.lane.b32.xlu0 %v381, 28
      %v1120 = vpop.permute.xlu0 %1119
      %1121 = vrot.lane.b32.xlu0 %v383, 28
      %v1122 = vpop.permute.xlu0 %1121
      %1123 = vrot.lane.b32.xlu0 %v386, 28
      %v1124 = vpop.permute.xlu0 %1123
      %1125 = vrot.lane.b32.xlu0 %v388, 28
      %v1126 = vpop.permute.xlu0 %1125
      %1127 = vrot.lane.b32.xlu0 %v391, 28
      %v1128 = vpop.permute.xlu0 %1127
      %1129 = vrot.lane.b32.xlu0 %v393, 28
      %v1130 = vpop.permute.xlu0 %1129
      %1131 = vrot.lane.b32.xlu0 %v396, 28
      %v1132 = vpop.permute.xlu0 %1131
      %1133 = vrot.lane.b32.xlu0 %v398, 28
      %v1134 = vpop.permute.xlu0 %1133
      %1135 = vrot.lane.b32.xlu0 %v401, 28
      %v1136 = vpop.permute.xlu0 %1135
      %1137 = vrot.lane.b32.xlu0 %v403, 28
      %v1138 = vpop.permute.xlu0 %1137
      %1139 = vrot.lane.b32.xlu0 %v406, 28
      %v1140 = vpop.permute.xlu0 %1139
      %1141 = vrot.lane.b32.xlu0 %v408, 28
      %v1142 = vpop.permute.xlu0 %1141
      %1143 = vrot.lane.b32.xlu0 %v783, 28
      %v1144 = vpop.permute.xlu0 %1143
      %1145 = vrot.lane.b32.xlu0 %v785, 28
      %v1146 = vpop.permute.xlu0 %1145
      %1147 = vrot.lane.b32.xlu0 %v1084, 28
      %v1148 = vpop.permute.xlu0 %1147
      %1149 = vrot.lane.b32.xlu0 %v1086, 28
      %v1150 = vpop.permute.xlu0 %1149
      %v1183 = vrot.slane %v277, 2
      %v1184 = vrot.slane %v278, 2
      %v1185 = vsel %vm505, %v1183, %v1184
      %v1186 = vrot.slane %v279, 2
      %v1187 = vsel %vm505, %v1184, %v1186
      %1188 = vrot.lane.b32.xlu0 %v518, 32
      %v1189 = vpop.permute.xlu0 %1188
      %1190 = vrot.lane.b32.xlu0 %v520, 32
      %v1191 = vpop.permute.xlu0 %1190
      %1192 = vrot.lane.b32.xlu0 %v523, 32
      %v1193 = vpop.permute.xlu0 %1192
      %1194 = vrot.lane.b32.xlu0 %v525, 32
      %v1195 = vpop.permute.xlu0 %1194
      %1196 = vrot.lane.b32.xlu0 %v528, 32
      %v1197 = vpop.permute.xlu0 %1196
      %1198 = vrot.lane.b32.xlu0 %v530, 32
      %v1199 = vpop.permute.xlu0 %1198
      %1200 = vrot.lane.b32.xlu0 %v533, 32
      %v1201 = vpop.permute.xlu0 %1200
      %1202 = vrot.lane.b32.xlu0 %v535, 32
      %v1203 = vpop.permute.xlu0 %1202
      %1204 = vrot.lane.b32.xlu0 %v538, 32
      %v1205 = vpop.permute.xlu0 %1204
      %1206 = vrot.lane.b32.xlu0 %v540, 32
      %v1207 = vpop.permute.xlu0 %1206
      %1208 = vrot.lane.b32.xlu0 %v543, 32
      %v1209 = vpop.permute.xlu0 %1208
      %1210 = vrot.lane.b32.xlu0 %v545, 32
      %v1211 = vpop.permute.xlu0 %1210
      %1212 = vrot.lane.b32.xlu0 %v548, 32
      %v1213 = vpop.permute.xlu0 %1212
      %1214 = vrot.lane.b32.xlu0 %v550, 32
      %v1215 = vpop.permute.xlu0 %1214
      %1216 = vrot.lane.b32.xlu0 %v553, 32
      %v1217 = vpop.permute.xlu0 %1216
      %1218 = vrot.lane.b32.xlu0 %v555, 32
      %v1219 = vpop.permute.xlu0 %1218
      %1220 = vrot.lane.b32.xlu0 %v558, 32
      %v1221 = vpop.permute.xlu0 %1220
      %1222 = vrot.lane.b32.xlu0 %v560, 32
      %v1223 = vpop.permute.xlu0 %1222
      %1224 = vrot.lane.b32.xlu0 %v563, 32
      %v1225 = vpop.permute.xlu0 %1224
      %1226 = vrot.lane.b32.xlu0 %v565, 32
      %v1227 = vpop.permute.xlu0 %1226
      %1228 = vrot.lane.b32.xlu0 %v568, 32
      %v1229 = vpop.permute.xlu0 %1228
      %1230 = vrot.lane.b32.xlu0 %v570, 32
      %v1231 = vpop.permute.xlu0 %1230
      %1232 = vrot.lane.b32.xlu0 %v573, 32
      %v1233 = vpop.permute.xlu0 %1232
      %1234 = vrot.lane.b32.xlu0 %v575, 32
      %v1235 = vpop.permute.xlu0 %1234
      %1236 = vrot.lane.b32.xlu0 %v578, 32
      %v1237 = vpop.permute.xlu0 %1236
      %1238 = vrot.lane.b32.xlu0 %v580, 32
      %v1239 = vpop.permute.xlu0 %1238
      %1240 = vrot.lane.b32.xlu0 %v583, 32
      %v1241 = vpop.permute.xlu0 %1240
      %1242 = vrot.lane.b32.xlu0 %v585, 32
      %v1243 = vpop.permute.xlu0 %1242
      %1244 = vrot.lane.b32.xlu0 %v884, 32
      %v1245 = vpop.permute.xlu0 %1244
      %1246 = vrot.lane.b32.xlu0 %v886, 32
      %v1247 = vpop.permute.xlu0 %1246
      %1248 = vrot.lane.b32.xlu0 %v1185, 32
      %v1249 = vpop.permute.xlu0 %1248
      %1250 = vrot.lane.b32.xlu0 %v1187, 32
      %v1251 = vpop.permute.xlu0 %1250
      %vm1284 = vcmask 31744
      %v1285 = vsel %vm1284, %v226, %v410
      %v1286 = vsel %vm1284, %v227, %v412
      %v1287 = vsel %vm1284, %v229, %v414
      %v1288 = vsel %vm1284, %v230, %v416
      %v1289 = vsel %vm1284, %v232, %v418
      %v1290 = vsel %vm1284, %v233, %v420
      %v1291 = vsel %vm1284, %v235, %v422
      %v1292 = vsel %vm1284, %v236, %v424
      %v1293 = vsel %vm1284, %v238, %v426
      %v1294 = vsel %vm1284, %v239, %v428
      %v1295 = vsel %vm1284, %v241, %v430
      %v1296 = vsel %vm1284, %v242, %v432
      %v1297 = vsel %vm1284, %v244, %v434
      %v1298 = vsel %vm1284, %v245, %v436
      %v1299 = vsel %vm1284, %v247, %v438
      %v1300 = vsel %vm1284, %v248, %v440
      %v1301 = vsel %vm1284, %v250, %v442
      %v1302 = vsel %vm1284, %v251, %v444
      %v1303 = vsel %vm1284, %v253, %v446
      %v1304 = vsel %vm1284, %v254, %v448
      %v1305 = vsel %vm1284, %v256, %v450
      %v1306 = vsel %vm1284, %v257, %v452
      %v1307 = vsel %vm1284, %v259, %v454
      %v1308 = vsel %vm1284, %v260, %v456
      %v1309 = vsel %vm1284, %v262, %v458
      %v1310 = vsel %vm1284, %v263, %v460
      %v1311 = vsel %vm1284, %v265, %v462
      %v1312 = vsel %vm1284, %v266, %v464
      %v1313 = vsel %vm1284, %v268, %v466
      %v1314 = vsel %vm1284, %v269, %v468
      %v1315 = vsel %vm1284, %v271, %v470
      %v1316 = vsel %vm1284, %v272, %v472
      %vm1317 = vcmask 64512
      %v1318 = vsel %vm1317, %v1285, %v587
      %v1319 = vsel %vm1317, %v1286, %v589
      %v1320 = vsel %vm1317, %v1287, %v591
      %v1321 = vsel %vm1317, %v1288, %v593
      %v1322 = vsel %vm1317, %v1289, %v595
      %v1323 = vsel %vm1317, %v1290, %v597
      %v1324 = vsel %vm1317, %v1291, %v599
      %v1325 = vsel %vm1317, %v1292, %v601
      %v1326 = vsel %vm1317, %v1293, %v603
      %v1327 = vsel %vm1317, %v1294, %v605
      %v1328 = vsel %vm1317, %v1295, %v607
      %v1329 = vsel %vm1317, %v1296, %v609
      %v1330 = vsel %vm1317, %v1297, %v611
      %v1331 = vsel %vm1317, %v1298, %v613
      %v1332 = vsel %vm1317, %v1299, %v615
      %v1333 = vsel %vm1317, %v1300, %v617
      %v1334 = vsel %vm1317, %v1301, %v619
      %v1335 = vsel %vm1317, %v1302, %v621
      %v1336 = vsel %vm1317, %v1303, %v623
      %v1337 = vsel %vm1317, %v1304, %v625
      %v1338 = vsel %vm1317, %v1305, %v627
      %v1339 = vsel %vm1317, %v1306, %v629
      %v1340 = vsel %vm1317, %v1307, %v631
      %v1341 = vsel %vm1317, %v1308, %v633
      %v1342 = vsel %vm1317, %v1309, %v635
      %v1343 = vsel %vm1317, %v1310, %v637
      %v1344 = vsel %vm1317, %v1311, %v639
      %v1345 = vsel %vm1317, %v1312, %v641
      %v1346 = vsel %vm1317, %v1313, %v643
      %v1347 = vsel %vm1317, %v1314, %v645
      %v1348 = vsel %vm1317, %v1315, %v647
      %v1349 = vsel %vm1317, %v1316, %v649
      %vm1350 = vcmask 97280
      %v1351 = vsel %vm1350, %v1318, %v685
      %v1352 = vsel %vm1350, %v1319, %v687
      %v1353 = vsel %vm1350, %v1320, %v689
      %v1354 = vsel %vm1350, %v1321, %v691
      %v1355 = vsel %vm1350, %v1322, %v693
      %v1356 = vsel %vm1350, %v1323, %v695
      %v1357 = vsel %vm1350, %v1324, %v697
      %v1358 = vsel %vm1350, %v1325, %v699
      %v1359 = vsel %vm1350, %v1326, %v701
      %v1360 = vsel %vm1350, %v1327, %v703
      %v1361 = vsel %vm1350, %v1328, %v705
      %v1362 = vsel %vm1350, %v1329, %v707
      %v1363 = vsel %vm1350, %v1330, %v709
      %v1364 = vsel %vm1350, %v1331, %v711
      %v1365 = vsel %vm1350, %v1332, %v713
      %v1366 = vsel %vm1350, %v1333, %v715
      %v1367 = vsel %vm1350, %v1334, %v717
      %v1368 = vsel %vm1350, %v1335, %v719
      %v1369 = vsel %vm1350, %v1336, %v721
      %v1370 = vsel %vm1350, %v1337, %v723
      %v1371 = vsel %vm1350, %v1338, %v725
      %v1372 = vsel %vm1350, %v1339, %v727
      %v1373 = vsel %vm1350, %v1340, %v729
      %v1374 = vsel %vm1350, %v1341, %v731
      %v1375 = vsel %vm1350, %v1342, %v733
      %v1376 = vsel %vm1350, %v1343, %v735
      %v1377 = vsel %vm1350, %v1344, %v737
      %v1378 = vsel %vm1350, %v1345, %v739
      %v1379 = vsel %vm1350, %v1346, %v741
      %v1380 = vsel %vm1350, %v1347, %v743
      %v1381 = vsel %vm1350, %v1348, %v745
      %v1382 = vsel %vm1350, %v1349, %v747
      %vm1383 = vcmask 130048
      %v1384 = vsel %vm1383, %v1351, %v787
      %v1385 = vsel %vm1383, %v1352, %v789
      %v1386 = vsel %vm1383, %v1353, %v791
      %v1387 = vsel %vm1383, %v1354, %v793
      %v1388 = vsel %vm1383, %v1355, %v795
      %v1389 = vsel %vm1383, %v1356, %v797
      %v1390 = vsel %vm1383, %v1357, %v799
      %v1391 = vsel %vm1383, %v1358, %v801
      %v1392 = vsel %vm1383, %v1359, %v803
      %v1393 = vsel %vm1383, %v1360, %v805
      %v1394 = vsel %vm1383, %v1361, %v807
      %v1395 = vsel %vm1383, %v1362, %v809
      %v1396 = vsel %vm1383, %v1363, %v811
      %v1397 = vsel %vm1383, %v1364, %v813
      %v1398 = vsel %vm1383, %v1365, %v815
      %v1399 = vsel %vm1383, %v1366, %v817
      %v1400 = vsel %vm1383, %v1367, %v819
      %v1401 = vsel %vm1383, %v1368, %v821
      %v1402 = vsel %vm1383, %v1369, %v823
      %v1403 = vsel %vm1383, %v1370, %v825
      %v1404 = vsel %vm1383, %v1371, %v827
      %v1405 = vsel %vm1383, %v1372, %v829
      %v1406 = vsel %vm1383, %v1373, %v831
      %v1407 = vsel %vm1383, %v1374, %v833
      %v1408 = vsel %vm1383, %v1375, %v835
      %v1409 = vsel %vm1383, %v1376, %v837
      %v1410 = vsel %vm1383, %v1377, %v839
      %v1411 = vsel %vm1383, %v1378, %v841
      %v1412 = vsel %vm1383, %v1379, %v843
      %v1413 = vsel %vm1383, %v1380, %v845
      %v1414 = vsel %vm1383, %v1381, %v847
      %v1415 = vsel %vm1383, %v1382, %v849
      %vm1416 = vcmask 162816
      %v1417 = vsel %vm1416, %v1384, %v888
      %v1418 = vsel %vm1416, %v1385, %v890
      %v1419 = vsel %vm1416, %v1386, %v892
      %v1420 = vsel %vm1416, %v1387, %v894
      %v1421 = vsel %vm1416, %v1388, %v896
      %v1422 = vsel %vm1416, %v1389, %v898
      %v1423 = vsel %vm1416, %v1390, %v900
      %v1424 = vsel %vm1416, %v1391, %v902
      %v1425 = vsel %vm1416, %v1392, %v904
      %v1426 = vsel %vm1416, %v1393, %v906
      %v1427 = vsel %vm1416, %v1394, %v908
      %v1428 = vsel %vm1416, %v1395, %v910
      %v1429 = vsel %vm1416, %v1396, %v912
      %v1430 = vsel %vm1416, %v1397, %v914
      %v1431 = vsel %vm1416, %v1398, %v916
      %v1432 = vsel %vm1416, %v1399, %v918
      %v1433 = vsel %vm1416, %v1400, %v920
      %v1434 = vsel %vm1416, %v1401, %v922
      %v1435 = vsel %vm1416, %v1402, %v924
      %v1436 = vsel %vm1416, %v1403, %v926
      %v1437 = vsel %vm1416, %v1404, %v928
      %v1438 = vsel %vm1416, %v1405, %v930
      %v1439 = vsel %vm1416, %v1406, %v932
      %v1440 = vsel %vm1416, %v1407, %v934
      %v1441 = vsel %vm1416, %v1408, %v936
      %v1442 = vsel %vm1416, %v1409, %v938
      %v1443 = vsel %vm1416, %v1410, %v940
      %v1444 = vsel %vm1416, %v1411, %v942
      %v1445 = vsel %vm1416, %v1412, %v944
      %v1446 = vsel %vm1416, %v1413, %v946
      %v1447 = vsel %vm1416, %v1414, %v948
      %v1448 = vsel %vm1416, %v1415, %v950
      %vm1449 = vcmask 195584
      %v1450 = vsel %vm1449, %v1417, %v986
      %v1451 = vsel %vm1449, %v1418, %v988
      %v1452 = vsel %vm1449, %v1419, %v990
      %v1453 = vsel %vm1449, %v1420, %v992
      %v1454 = vsel %vm1449, %v1421, %v994
      %v1455 = vsel %vm1449, %v1422, %v996
      %v1456 = vsel %vm1449, %v1423, %v998
      %v1457 = vsel %vm1449, %v1424, %v1000
      %v1458 = vsel %vm1449, %v1425, %v1002
      %v1459 = vsel %vm1449, %v1426, %v1004
      %v1460 = vsel %vm1449, %v1427, %v1006
      %v1461 = vsel %vm1449, %v1428, %v1008
      %v1462 = vsel %vm1449, %v1429, %v1010
      %v1463 = vsel %vm1449, %v1430, %v1012
      %v1464 = vsel %vm1449, %v1431, %v1014
      %v1465 = vsel %vm1449, %v1432, %v1016
      %v1466 = vsel %vm1449, %v1433, %v1018
      %v1467 = vsel %vm1449, %v1434, %v1020
      %v1468 = vsel %vm1449, %v1435, %v1022
      %v1469 = vsel %vm1449, %v1436, %v1024
      %v1470 = vsel %vm1449, %v1437, %v1026
      %v1471 = vsel %vm1449, %v1438, %v1028
      %v1472 = vsel %vm1449, %v1439, %v1030
      %v1473 = vsel %vm1449, %v1440, %v1032
      %v1474 = vsel %vm1449, %v1441, %v1034
      %v1475 = vsel %vm1449, %v1442, %v1036
      %v1476 = vsel %vm1449, %v1443, %v1038
      %v1477 = vsel %vm1449, %v1444, %v1040
      %v1478 = vsel %vm1449, %v1445, %v1042
      %v1479 = vsel %vm1449, %v1446, %v1044
      %v1480 = vsel %vm1449, %v1447, %v1046
      %v1481 = vsel %vm1449, %v1448, %v1048
      %vm1482 = vcmask 228352
      %v1483 = vsel %vm1482, %v1450, %v1088
      %v1484 = vsel %vm1482, %v1451, %v1090
      %v1485 = vsel %vm1482, %v1452, %v1092
      %v1486 = vsel %vm1482, %v1453, %v1094
      %v1487 = vsel %vm1482, %v1454, %v1096
      %v1488 = vsel %vm1482, %v1455, %v1098
      %v1489 = vsel %vm1482, %v1456, %v1100
      %v1490 = vsel %vm1482, %v1457, %v1102
      %v1491 = vsel %vm1482, %v1458, %v1104
      %v1492 = vsel %vm1482, %v1459, %v1106
      %v1493 = vsel %vm1482, %v1460, %v1108
      %v1494 = vsel %vm1482, %v1461, %v1110
      %v1495 = vsel %vm1482, %v1462, %v1112
      %v1496 = vsel %vm1482, %v1463, %v1114
      %v1497 = vsel %vm1482, %v1464, %v1116
      %v1498 = vsel %vm1482, %v1465, %v1118
      %v1499 = vsel %vm1482, %v1466, %v1120
      %v1500 = vsel %vm1482, %v1467, %v1122
      %v1501 = vsel %vm1482, %v1468, %v1124
      %v1502 = vsel %vm1482, %v1469, %v1126
      %v1503 = vsel %vm1482, %v1470, %v1128
      %v1504 = vsel %vm1482, %v1471, %v1130
      %v1505 = vsel %vm1482, %v1472, %v1132
      %v1506 = vsel %vm1482, %v1473, %v1134
      %v1507 = vsel %vm1482, %v1474, %v1136
      %v1508 = vsel %vm1482, %v1475, %v1138
      %v1509 = vsel %vm1482, %v1476, %v1140
      %v1510 = vsel %vm1482, %v1477, %v1142
      %v1511 = vsel %vm1482, %v1478, %v1144
      %v1512 = vsel %vm1482, %v1479, %v1146
      %v1513 = vsel %vm1482, %v1480, %v1148
      %v1514 = vsel %vm1482, %v1481, %v1150
      %vm1515 = vcmask 261120
      %v1516 = vsel %vm1515, %v1483, %v1189
      %v1517 = vsel %vm1515, %v1484, %v1191
      %v1518 = vsel %vm1515, %v1485, %v1193
      %v1519 = vsel %vm1515, %v1486, %v1195
      %v1520 = vsel %vm1515, %v1487, %v1197
      %v1521 = vsel %vm1515, %v1488, %v1199
      %v1522 = vsel %vm1515, %v1489, %v1201
      %v1523 = vsel %vm1515, %v1490, %v1203
      %v1524 = vsel %vm1515, %v1491, %v1205
      %v1525 = vsel %vm1515, %v1492, %v1207
      %v1526 = vsel %vm1515, %v1493, %v1209
      %v1527 = vsel %vm1515, %v1494, %v1211
      %v1528 = vsel %vm1515, %v1495, %v1213
      %v1529 = vsel %vm1515, %v1496, %v1215
      %v1530 = vsel %vm1515, %v1497, %v1217
      %v1531 = vsel %vm1515, %v1498, %v1219
      %v1532 = vsel %vm1515, %v1499, %v1221
      %v1533 = vsel %vm1515, %v1500, %v1223
      %v1534 = vsel %vm1515, %v1501, %v1225
      %v1535 = vsel %vm1515, %v1502, %v1227
      %v1536 = vsel %vm1515, %v1503, %v1229
      %v1537 = vsel %vm1515, %v1504, %v1231
      %v1538 = vsel %vm1515, %v1505, %v1233
      %v1539 = vsel %vm1515, %v1506, %v1235
      %v1540 = vsel %vm1515, %v1507, %v1237
      %v1541 = vsel %vm1515, %v1508, %v1239
      %v1542 = vsel %vm1515, %v1509, %v1241
      %v1543 = vsel %vm1515, %v1510, %v1243
      %v1544 = vsel %vm1515, %v1511, %v1245
      %v1545 = vsel %vm1515, %v1512, %v1247
      %v1546 = vsel %vm1515, %v1513, %v1249
      %v1547 = vsel %vm1515, %v1514, %v1251
      %v1548 = vpack.c.bf16 %v1517, %v1516
      %v1549 = vpack.c.bf16 %v1519, %v1518
      %v1550 = vpack.c.bf16 %v1521, %v1520
      %v1551 = vpack.c.bf16 %v1523, %v1522
      %v1552 = vpack.c.bf16 %v1525, %v1524
      %v1553 = vpack.c.bf16 %v1527, %v1526
      %v1554 = vpack.c.bf16 %v1529, %v1528
      %v1555 = vpack.c.bf16 %v1531, %v1530
      %v1556 = vpack.c.bf16 %v1533, %v1532
      %v1557 = vpack.c.bf16 %v1535, %v1534
      %v1558 = vpack.c.bf16 %v1537, %v1536
      %v1559 = vpack.c.bf16 %v1539, %v1538
      %v1560 = vpack.c.bf16 %v1541, %v1540
      %v1561 = vpack.c.bf16 %v1543, %v1542
      %v1562 = vpack.c.bf16 %v1545, %v1544
      %v1563 = vpack.c.bf16 %v1547, %v1546
      %v1564 = vld [vmem:[%s1] sm:$0xf]
      %v1565 = vld [vmem:[%s1 + $0x4] sm:$0xf]
      %v1566 = vld [vmem:[%s1 + $0x8] sm:$0xf]
      %v1567 = vld [vmem:[%s1 + $0xc] sm:$0xf]
      %v1568 = vld [vmem:[%s1 + $0x10] sm:$0x3]
      %v1569 = vld [vmem:[%s2] sm:$0x1]
      %v1571 = vlaneseq
      %v1572 = vshrl.u32 %v1571, 7
      %v1573 = vsub.s32 0, %v1572
      %v1574 = vrot.slane %v1569, %v1573
      %v1581 = vunpack.c.l.b16 %v1564
      %v1582 = vunpack.c.l.b16 %v1565
      %v1583 = vunpack.c.l.b16 %v1566
      %v1584 = vunpack.c.l.b16 %v1567
      %v1585 = vunpack.c.l.b16 %v1568
      %v1586 = vpack.c.b16 %v1582, %v1581
      %v1587 = vpack.c.b16 %v1584, %v1583
      %v1588 = vpack.c.b16 %v1585, %v1585
      %vm1591 = vcmask 293888
      %v1593 = vsel %vm1591, %v1548, 0
      %v1596 = vsel %vm1591, %v1549, 0
      %v1599 = vsel %vm1591, %v1550, 0
      %v1602 = vsel %vm1591, %v1551, 0
      %v1605 = vsel %vm1591, %v1552, 0
      %v1608 = vsel %vm1591, %v1553, 0
      %v1611 = vsel %vm1591, %v1554, 0
      %v1614 = vsel %vm1591, %v1555, 0
      %v1617 = vsel %vm1591, %v1556, 0
      %v1620 = vsel %vm1591, %v1557, 0
      %v1623 = vsel %vm1591, %v1558, 0
      %v1626 = vsel %vm1591, %v1559, 0
      %v1629 = vsel %vm1591, %v1560, 0
      %v1632 = vsel %vm1591, %v1561, 0
      %v1635 = vsel %vm1591, %v1562, 0
      %v1638 = vsel %vm1591, %v1563, 0
      %vm1640 = vcmask 1041408
      %v1642 = vsel %vm1640, %v1588, 0
      %1644 = vmatprep.subr.bf16.mxu0 0
      %1645 = vmatpush1.bf16.msra.mxu0 0
      %1646 = vmatprep.subr.bf16.mxu0 0
      %1647 = vmatpush1.bf16.msra.mxu0 0
      %1648 = vmatprep.subr.bf16.mxu0 0
      %1649 = vmatpush1.bf16.msra.mxu0 0
      %1650 = vmatprep.subr.bf16.mxu0 0
      %1651 = vmatpush1.bf16.msra.mxu0 0
      %1652 = vmatprep.subr.bf16.mxu0 0
      %1653 = vmatpush1.bf16.msra.mxu0 0
      %1654 = vmatprep.subr.bf16.mxu0 0
      %1655 = vmatpush1.bf16.msra.mxu0 %v1642
      %1656 = vmatprep.subr.bf16.mxu0 0
      %1657 = vmatpush1.bf16.msra.mxu0 %v1587
      %1658 = vmatprep.subr.bf16.mxu0 0
      %1659 = vmatpush1.bf16.msra.mxu0 %v1586
      %1660 = vmatprep.subr.bf16.mxu0 0
      %1661 = vmatpush2.bf16.msra.mxu0 0
      %1662 = vmatprep.subr.bf16.mxu0 0
      %1663 = vmatpush2.bf16.msra.mxu0 0
      %1664 = vmatprep.subr.bf16.mxu0 0
      %1665 = vmatpush2.bf16.msra.mxu0 0
      %1666 = vmatprep.subr.bf16.mxu0 0
      %1667 = vmatpush2.bf16.msra.mxu0 0
      %1668 = vmatprep.subr.bf16.mxu0 0
      %1669 = vmatpush2.bf16.msra.mxu0 0
      %1670 = vmatprep.subr.bf16.mxu0 0
      %1671 = vmatpush2.bf16.msra.mxu0 0
      %1672 = vmatprep.subr.bf16.mxu0 0
      %1673 = vmatpush2.bf16.msra.mxu0 0
      %1674 = vmatprep.subr.bf16.mxu0 0
      %1675 = vmatpush2.bf16.msra.mxu0 0
      %1676 = vmatprep.mubr.bf16.mxu0 0
      %1677 = vmatmul.mubr.bf16.gmra.mxu0 %v1593
      %v1678 = vpop.f32.mrf.mxu0
      %v1679 = vadd.f32 %v1574, %v1678
      %v1680 = vpop.f32.mrf.mxu0
      %v1681 = vpop.f32.mrf.mxu0
      %v1682 = vadd.f32 %v1574, %v1681
      %v1683 = vpop.f32.mrf.mxu0
      %1684 = vmatprep.mubr.bf16.mxu0 0
      %1685 = vmatmul.mubr.bf16.gmra.mxu0 %v1596
      %v1686 = vpop.f32.mrf.mxu0
      %v1687 = vadd.f32 %v1574, %v1686
      %v1688 = vpop.f32.mrf.mxu0
      %v1689 = vpop.f32.mrf.mxu0
      %v1690 = vadd.f32 %v1574, %v1689
      %v1691 = vpop.f32.mrf.mxu0
      %1692 = vmatprep.mubr.bf16.mxu0 0
      %1693 = vmatmul.mubr.bf16.gmra.mxu0 %v1599
      %v1694 = vpop.f32.mrf.mxu0
      %v1695 = vadd.f32 %v1574, %v1694
      %v1696 = vpop.f32.mrf.mxu0
      %v1697 = vpop.f32.mrf.mxu0
      %v1698 = vadd.f32 %v1574, %v1697
      %v1699 = vpop.f32.mrf.mxu0
      %1700 = vmatprep.mubr.bf16.mxu0 0
      %1701 = vmatmul.mubr.bf16.gmra.mxu0 %v1602
      %v1702 = vpop.f32.mrf.mxu0
      %v1703 = vadd.f32 %v1574, %v1702
      %v1704 = vpop.f32.mrf.mxu0
      %v1705 = vpop.f32.mrf.mxu0
      %v1706 = vadd.f32 %v1574, %v1705
      %v1707 = vpop.f32.mrf.mxu0
      %1708 = vmatprep.mubr.bf16.mxu0 0
      %1709 = vmatmul.mubr.bf16.gmra.mxu0 %v1605
      %v1710 = vpop.f32.mrf.mxu0
      %v1711 = vadd.f32 %v1574, %v1710
      %v1712 = vpop.f32.mrf.mxu0
      %v1713 = vpop.f32.mrf.mxu0
      %v1714 = vadd.f32 %v1574, %v1713
      %v1715 = vpop.f32.mrf.mxu0
      %1716 = vmatprep.mubr.bf16.mxu0 0
      %1717 = vmatmul.mubr.bf16.gmra.mxu0 %v1608
      %v1718 = vpop.f32.mrf.mxu0
      %v1719 = vadd.f32 %v1574, %v1718
      %v1720 = vpop.f32.mrf.mxu0
      %v1721 = vpop.f32.mrf.mxu0
      %v1722 = vadd.f32 %v1574, %v1721
      %v1723 = vpop.f32.mrf.mxu0
      %1724 = vmatprep.mubr.bf16.mxu0 0
      %1725 = vmatmul.mubr.bf16.gmra.mxu0 %v1611
      %v1726 = vpop.f32.mrf.mxu0
      %v1727 = vadd.f32 %v1574, %v1726
      %v1728 = vpop.f32.mrf.mxu0
      %v1729 = vpop.f32.mrf.mxu0
      %v1730 = vadd.f32 %v1574, %v1729
      %v1731 = vpop.f32.mrf.mxu0
      %1732 = vmatprep.mubr.bf16.mxu0 0
      %1733 = vmatmul.mubr.bf16.gmra.mxu0 %v1614
      %v1734 = vpop.f32.mrf.mxu0
      %v1735 = vadd.f32 %v1574, %v1734
      %v1736 = vpop.f32.mrf.mxu0
      %v1737 = vpop.f32.mrf.mxu0
      %v1738 = vadd.f32 %v1574, %v1737
      %v1739 = vpop.f32.mrf.mxu0
      %1740 = vmatprep.mubr.bf16.mxu0 0
      %1741 = vmatmul.mubr.bf16.gmra.mxu0 %v1617
      %v1742 = vpop.f32.mrf.mxu0
      %v1743 = vadd.f32 %v1574, %v1742
      %v1744 = vpop.f32.mrf.mxu0
      %v1745 = vpop.f32.mrf.mxu0
      %v1746 = vadd.f32 %v1574, %v1745
      %v1747 = vpop.f32.mrf.mxu0
      %1748 = vmatprep.mubr.bf16.mxu0 0
      %1749 = vmatmul.mubr.bf16.gmra.mxu0 %v1620
      %v1750 = vpop.f32.mrf.mxu0
      %v1751 = vadd.f32 %v1574, %v1750
      %v1752 = vpop.f32.mrf.mxu0
      %v1753 = vpop.f32.mrf.mxu0
      %v1754 = vadd.f32 %v1574, %v1753
      %v1755 = vpop.f32.mrf.mxu0
      %1756 = vmatprep.mubr.bf16.mxu0 0
      %1757 = vmatmul.mubr.bf16.gmra.mxu0 %v1623
      %v1758 = vpop.f32.mrf.mxu0
      %v1759 = vadd.f32 %v1574, %v1758
      %v1760 = vpop.f32.mrf.mxu0
      %v1761 = vpop.f32.mrf.mxu0
      %v1762 = vadd.f32 %v1574, %v1761
      %v1763 = vpop.f32.mrf.mxu0
      %1764 = vmatprep.mubr.bf16.mxu0 0
      %1765 = vmatmul.mubr.bf16.gmra.mxu0 %v1626
      %v1766 = vpop.f32.mrf.mxu0
      %v1767 = vadd.f32 %v1574, %v1766
      %v1768 = vpop.f32.mrf.mxu0
      %v1769 = vpop.f32.mrf.mxu0
      %v1770 = vadd.f32 %v1574, %v1769
      %v1771 = vpop.f32.mrf.mxu0
      %1772 = vmatprep.mubr.bf16.mxu0 0
      %1773 = vmatmul.mubr.bf16.gmra.mxu0 %v1629
      %v1774 = vpop.f32.mrf.mxu0
      %v1775 = vadd.f32 %v1574, %v1774
      %v1776 = vpop.f32.mrf.mxu0
      %v1777 = vpop.f32.mrf.mxu0
      %v1778 = vadd.f32 %v1574, %v1777
      %v1779 = vpop.f32.mrf.mxu0
      %1780 = vmatprep.mubr.bf16.mxu0 0
      %1781 = vmatmul.mubr.bf16.gmra.mxu0 %v1632
      %v1782 = vpop.f32.mrf.mxu0
      %v1783 = vadd.f32 %v1574, %v1782
      %v1784 = vpop.f32.mrf.mxu0
      %v1785 = vpop.f32.mrf.mxu0
      %v1786 = vadd.f32 %v1574, %v1785
      %v1787 = vpop.f32.mrf.mxu0
      %1788 = vmatprep.mubr.bf16.mxu0 0
      %1789 = vmatmul.mubr.bf16.gmra.mxu0 %v1635
      %v1790 = vpop.f32.mrf.mxu0
      %v1791 = vadd.f32 %v1574, %v1790
      %v1792 = vpop.f32.mrf.mxu0
      %v1793 = vpop.f32.mrf.mxu0
      %v1794 = vadd.f32 %v1574, %v1793
      %v1795 = vpop.f32.mrf.mxu0
      %1796 = vmatprep.mubr.bf16.mxu0 0
      %1797 = vmatmul.mubr.bf16.gmra.mxu0 %v1638
      %v1798 = vpop.f32.mrf.mxu0
      %v1799 = vadd.f32 %v1574, %v1798
      %v1800 = vpop.f32.mrf.mxu0
      %v1801 = vpop.f32.mrf.mxu0
      %v1802 = vadd.f32 %v1574, %v1801
      %v1803 = vpop.f32.mrf.mxu0
      %1804 = vdwg.mxu0
      %vm1805 = vcmp.ge.f32.partialorder %v1679, 0.0
      %vm1806 = vcmp.ge.f32.partialorder %v1682, 0.0
      %vm1807 = vcmp.ge.f32.partialorder %v1687, 0.0
      %vm1808 = vcmp.ge.f32.partialorder %v1690, 0.0
      %vm1809 = vcmp.ge.f32.partialorder %v1695, 0.0
      %vm1810 = vcmp.ge.f32.partialorder %v1698, 0.0
      %vm1811 = vcmp.ge.f32.partialorder %v1703, 0.0
      %vm1812 = vcmp.ge.f32.partialorder %v1706, 0.0
      %vm1813 = vcmp.ge.f32.partialorder %v1711, 0.0
      %vm1814 = vcmp.ge.f32.partialorder %v1714, 0.0
      %vm1815 = vcmp.ge.f32.partialorder %v1719, 0.0
      %vm1816 = vcmp.ge.f32.partialorder %v1722, 0.0
      %vm1817 = vcmp.ge.f32.partialorder %v1727, 0.0
      %vm1818 = vcmp.ge.f32.partialorder %v1730, 0.0
      %vm1819 = vcmp.ge.f32.partialorder %v1735, 0.0
      %vm1820 = vcmp.ge.f32.partialorder %v1738, 0.0
      %vm1821 = vcmp.ge.f32.partialorder %v1743, 0.0
      %vm1822 = vcmp.ge.f32.partialorder %v1746, 0.0
      %vm1823 = vcmp.ge.f32.partialorder %v1751, 0.0
      %vm1824 = vcmp.ge.f32.partialorder %v1754, 0.0
      %vm1825 = vcmp.ge.f32.partialorder %v1759, 0.0
      %vm1826 = vcmp.ge.f32.partialorder %v1762, 0.0
      %vm1827 = vcmp.ge.f32.partialorder %v1767, 0.0
      %vm1828 = vcmp.ge.f32.partialorder %v1770, 0.0
      %vm1829 = vcmp.ge.f32.partialorder %v1775, 0.0
      %vm1830 = vcmp.ge.f32.partialorder %v1778, 0.0
      %vm1831 = vcmp.ge.f32.partialorder %v1783, 0.0
      %vm1832 = vcmp.ge.f32.partialorder %v1786, 0.0
      %vm1833 = vcmp.ge.f32.partialorder %v1791, 0.0
      %vm1834 = vcmp.ge.f32.partialorder %v1794, 0.0
      %vm1835 = vcmp.ge.f32.partialorder %v1799, 0.0
      %vm1836 = vcmp.ge.f32.partialorder %v1802, 0.0
      %v1837 = vmul.f32 %v1679, 0.2
      %v1838 = vmul.f32 %v1682, 0.2
      %v1839 = vmul.f32 %v1687, 0.2
      %v1840 = vmul.f32 %v1690, 0.2
      %v1841 = vmul.f32 %v1695, 0.2
      %v1842 = vmul.f32 %v1698, 0.2
      %v1843 = vmul.f32 %v1703, 0.2
      %v1844 = vmul.f32 %v1706, 0.2
      %v1845 = vmul.f32 %v1711, 0.2
      %v1846 = vmul.f32 %v1714, 0.2
      %v1847 = vmul.f32 %v1719, 0.2
      %v1848 = vmul.f32 %v1722, 0.2
      %v1849 = vmul.f32 %v1727, 0.2
      %v1850 = vmul.f32 %v1730, 0.2
      %v1851 = vmul.f32 %v1735, 0.2
      %v1852 = vmul.f32 %v1738, 0.2
      %v1853 = vmul.f32 %v1743, 0.2
      %v1854 = vmul.f32 %v1746, 0.2
      %v1855 = vmul.f32 %v1751, 0.2
      %v1856 = vmul.f32 %v1754, 0.2
      %v1857 = vmul.f32 %v1759, 0.2
      %v1858 = vmul.f32 %v1762, 0.2
      %v1859 = vmul.f32 %v1767, 0.2
      %v1860 = vmul.f32 %v1770, 0.2
      %v1861 = vmul.f32 %v1775, 0.2
      %v1862 = vmul.f32 %v1778, 0.2
      %v1863 = vmul.f32 %v1783, 0.2
      %v1864 = vmul.f32 %v1786, 0.2
      %v1865 = vmul.f32 %v1791, 0.2
      %v1866 = vmul.f32 %v1794, 0.2
      %v1867 = vmul.f32 %v1799, 0.2
      %v1868 = vmul.f32 %v1802, 0.2
      %v1869 = vsel %vm1805, %v1679, %v1837
      %v1870 = vsel %vm1806, %v1682, %v1838
      %v1871 = vsel %vm1807, %v1687, %v1839
      %v1872 = vsel %vm1808, %v1690, %v1840
      %v1873 = vsel %vm1809, %v1695, %v1841
      %v1874 = vsel %vm1810, %v1698, %v1842
      %v1875 = vsel %vm1811, %v1703, %v1843
      %v1876 = vsel %vm1812, %v1706, %v1844
      %v1877 = vsel %vm1813, %v1711, %v1845
      %v1878 = vsel %vm1814, %v1714, %v1846
      %v1879 = vsel %vm1815, %v1719, %v1847
      %v1880 = vsel %vm1816, %v1722, %v1848
      %v1881 = vsel %vm1817, %v1727, %v1849
      %v1882 = vsel %vm1818, %v1730, %v1850
      %v1883 = vsel %vm1819, %v1735, %v1851
      %v1884 = vsel %vm1820, %v1738, %v1852
      %v1885 = vsel %vm1821, %v1743, %v1853
      %v1886 = vsel %vm1822, %v1746, %v1854
      %v1887 = vsel %vm1823, %v1751, %v1855
      %v1888 = vsel %vm1824, %v1754, %v1856
      %v1889 = vsel %vm1825, %v1759, %v1857
      %v1890 = vsel %vm1826, %v1762, %v1858
      %v1891 = vsel %vm1827, %v1767, %v1859
      %v1892 = vsel %vm1828, %v1770, %v1860
      %v1893 = vsel %vm1829, %v1775, %v1861
      %v1894 = vsel %vm1830, %v1778, %v1862
      %v1895 = vsel %vm1831, %v1783, %v1863
      %v1896 = vsel %vm1832, %v1786, %v1864
      %v1897 = vsel %vm1833, %v1791, %v1865
      %v1898 = vsel %vm1834, %v1794, %v1866
      %v1899 = vsel %vm1835, %v1799, %v1867
      %v1900 = vsel %vm1836, %v1802, %v1868
      %1901 = vst.msk [vmem:[%s170] sm:$0xff] %vm1317, %v1869
      %1902 = vst.msk [vmem:[%s170 + $0x8] sm:$0xff] %vm1317, %v1870
      %1903 = vst.msk [vmem:[%s170 + $0x10] sm:$0xff] %vm1317, %v1871
      %1904 = vst.msk [vmem:[%s170 + $0x18] sm:$0xff] %vm1317, %v1872
      %1905 = vst.msk [vmem:[%s170 + $0x20] sm:$0xff] %vm1317, %v1873
      %1906 = vst.msk [vmem:[%s170 + $0x28] sm:$0xff] %vm1317, %v1874
      %1907 = vst.msk [vmem:[%s170 + $0x30] sm:$0xff] %vm1317, %v1875
      %1908 = vst.msk [vmem:[%s170 + $0x38] sm:$0xff] %vm1317, %v1876
      %1909 = vst.msk [vmem:[%s170 + $0x40] sm:$0xff] %vm1317, %v1877
      %1910 = vst.msk [vmem:[%s170 + $0x48] sm:$0xff] %vm1317, %v1878
      %1911 = vst.msk [vmem:[%s170 + $0x50] sm:$0xff] %vm1317, %v1879
      %1912 = vst.msk [vmem:[%s170 + $0x58] sm:$0xff] %vm1317, %v1880
      %1913 = vst.msk [vmem:[%s170 + $0x60] sm:$0xff] %vm1317, %v1881
      %1914 = vst.msk [vmem:[%s170 + $0x68] sm:$0xff] %vm1317, %v1882
      %1915 = vst.msk [vmem:[%s170 + $0x70] sm:$0xff] %vm1317, %v1883
      %1916 = vst.msk [vmem:[%s170 + $0x78] sm:$0xff] %vm1317, %v1884
      %1917 = vst.msk [vmem:[%s170 + $0x80] sm:$0xff] %vm1317, %v1885
      %1918 = vst.msk [vmem:[%s170 + $0x88] sm:$0xff] %vm1317, %v1886
      %1919 = vst.msk [vmem:[%s170 + $0x90] sm:$0xff] %vm1317, %v1887
      %1920 = vst.msk [vmem:[%s170 + $0x98] sm:$0xff] %vm1317, %v1888
      %1921 = vst.msk [vmem:[%s170 + $0xa0] sm:$0xff] %vm1317, %v1889
      %1922 = vst.msk [vmem:[%s170 + $0xa8] sm:$0xff] %vm1317, %v1890
      %1923 = vst.msk [vmem:[%s170 + $0xb0] sm:$0xff] %vm1317, %v1891
      %1924 = vst.msk [vmem:[%s170 + $0xb8] sm:$0xff] %vm1317, %v1892
      %1925 = vst.msk [vmem:[%s170 + $0xc0] sm:$0xff] %vm1317, %v1893
      %1926 = vst.msk [vmem:[%s170 + $0xc8] sm:$0xff] %vm1317, %v1894
      %1927 = vst.msk [vmem:[%s170 + $0xd0] sm:$0xff] %vm1317, %v1895
      %1928 = vst.msk [vmem:[%s170 + $0xd8] sm:$0xff] %vm1317, %v1896
      %1929 = vst.msk [vmem:[%s170 + $0xe0] sm:$0xff] %vm1317, %v1897
      %1930 = vst.msk [vmem:[%s170 + $0xe8] sm:$0xff] %vm1317, %v1898
      %1931 = vst.msk [vmem:[%s170 + $0xf0] sm:$0xff] %vm1317, %v1899
      %1932 = vst.msk [vmem:[%s170 + $0xf8] sm:$0xff] %vm1317, %v1900
      %p1933 = scmp.lt.s32.totalorder %s14, 1
      %s1934 = scalar_select %p1933, %s14, 1
      %s1935 = smul.addr %s1934, 32
      %s1936 = smul.addr %s1935, 8
      %s1937 = scalar_lea.vmem %s3, %s1936
      // Predicated region
      $region33: #{agg_conv_forward.5} parent=31 // pred_check
        %p1938 = pneg %p100
      $region34: #{agg_conv_forward.5} parent=31 // pred_check_branch
        %1940 = sbr.rel (%p1938) target = $region36
      $region35: #{agg_conv_forward.5} parent=31 // pred_region
        _
      $region36: #{agg_conv_forward.5} parent=31 // pred_fallthru
        _
    $region32: #{agg_conv_forward.5} parent=5 // pred_fallthru
      _
    %p1941 = scmp.le.s32.totalorder 2, %s9
    // Predicated region
    $region37: #{agg_conv_forward.5} parent=5 // pred_check
      %p1942 = pneg %p1941
    $region38: #{agg_conv_forward.5} parent=5 // pred_check_branch
      %1944 = sbr.rel (%p1942) target = $region40
    $region39: #{agg_conv_forward.5} parent=5 // pred_region
      %s1945 = ssub.s32 %s9, 2
      // Predicated region
      $region41: #{agg_conv_forward.5} parent=39 // pred_check
        %p1946 = pneg %p106
      $region42: #{agg_conv_forward.5} parent=39 // pred_check_branch
        %1948 = sbr.rel (%p1946) target = $region44
      $region43: #{agg_conv_forward.5} parent=39 // pred_region
        %p1949 = scmp.lt.s32.totalorder %s15, 1
        %s1950 = scalar_select %p1949, %s15, 1
        %s1951 = smul.addr %s1950, 32
        %s1952 = smul.addr %s1951, 8
        %s1953 = scalar_lea.vmem %s3, %s1952
      $region44: #{agg_conv_forward.5} parent=39 // pred_fallthru
        _
    $region40: #{agg_conv_forward.5} parent=5 // pred_fallthru
      _
  $region6: #{agg_conv_forward.5} parent=0 // loop_footer
    %s13 = sadd.s32 1, %s9
  $region7: #{agg_conv_forward.5} parent=0 // loop_footer_branch
    %8 = sbr.rel target = $region3
  $region8: #{agg_conv_forward.5} parent=0 // loop_exit
    _

// kernel: agg_conv_forward.6
$region0: #{agg_conv_forward.6}
  #allocation0 [shape = 'u32[]', space=smem, size = 0x4, offset = 0x4, fixed_abs, tag = 'smem constant byte address 0x4 - core index']
  #allocation1 [shape = 'u32[144,128]{1,0:T(1,128)}', space=vmem, size = 0x12000, scoped, tag = 'internal scratch']
  %s0 = inlined_call_operand.vmem [shape: bf16[2,9,9,32], index: 0, kind: input, shape index: {}]
  %s1 = inlined_call_operand.vmem [shape: bf16[72,8], index: 1, kind: input, shape index: {}]
  %s2 = inlined_call_operand.vmem [shape: f32[1,8], index: 2, kind: input, shape index: {}]
  %s3 = inlined_call_operand.vmem [shape: f32[2,64,8], index: 3, kind: output, shape index: {}]
  %s4 = sld [smem:[#allocation0]]
  $region45: #{agg_conv_forward.6} parent=0
    _
  %s6 = ssub.s32 1, %s4
  %s7 = scalar_select 0, %s6, %s4
  loop: start=0, step=1, limit=4
  $region2: #{agg_conv_forward.6} parent=0 // loop_pre_header
    _
  $region3: #{agg_conv_forward.6} parent=0 // loop_header
    %s9 = sphi 0, %s13
    %p10 = scmp.ge.s32.totalorder %s9, 4
    %s19 = sphi 0, %s21
    %s22 = sphi 0, %s19
    %s23 = sphi 0, %s22
    %s39 = sphi 0, %s23
    %s43 = sphi 0, %s43
    %s45 = sphi 0, %s43
    %s46 = sphi 0, %s45
    %s60 = sphi 0, %s46
    %s64 = sphi 0, %s64
    %s66 = sphi 0, %s64
    %s67 = sphi 0, %s66
    %s81 = sphi 0, %s67
    %s87 = sphi 0, %s89
    %s90 = sphi 0, %s87
    %s91 = sphi 0, %s90
    %s107 = sphi 0, %s91
  $region4: #{agg_conv_forward.6} parent=0 // loop_header_branch
    %12 = sbr.rel (%p10) target = $region8
  $region5: #{agg_conv_forward.6} parent=0 // loop_body
    %s14 = ssub.s32 %s9, 1
    %s15 = ssub.s32 %s9, 2
    %s16 = sadd.s32 %s9, 1
    %s17 = ssub.s32 %s9, %s16
    %p18 = scmp.eq.s32.totalorder %s17, 0
    %s20 = sadd.s32 %s19, 1
    %s21 = scalar_select %p18, %s19, %s20
    %p24 = pneg %p18
    %p25 = scmp.eq.s32.totalorder %s9, 1
    %p26 = por %p24, %p25
    %p27 = scmp.ne.s32.totalorder %s19, %s22
    %p28 = scmp.eq.s32.totalorder %s9, 0
    %p29 = por %p27, %p28
    %p30 = scmp.ne.s32.totalorder %s19, %s22
    %p31 = scmp.eq.s32.totalorder %s14, 1
    %p32 = por %p30, %p31
    %p33 = scmp.ne.s32.totalorder %s22, %s23
    %p34 = scmp.eq.s32.totalorder %s14, 0
    %p35 = por %p33, %p34
    %p36 = scmp.ne.s32.totalorder %s22, %s23
    %p37 = scmp.eq.s32.totalorder %s15, 1
    %p38 = por %p36, %p37
    %p40 = scmp.ne.s32.totalorder %s23, %s39
    %p41 = scmp.eq.s32.totalorder %s15, 0
    %p42 = por %p40, %p41
    %s44 = sadd.s32 %s43, 1
    %p47 = scmp.eq.s32.totalorder %s9, 1
    %p48 = scmp.ne.s32.totalorder %s43, %s45
    %p49 = scmp.eq.s32.totalorder %s9, 0
    %p50 = por %p48, %p49
    %p51 = scmp.ne.s32.totalorder %s43, %s45
    %p52 = scmp.eq.s32.totalorder %s14, 1
    %p53 = por %p51, %p52
    %p54 = scmp.ne.s32.totalorder %s45, %s46
    %p55 = scmp.eq.s32.totalorder %s14, 0
    %p56 = por %p54, %p55
    %p57 = scmp.ne.s32.totalorder %s45, %s46
    %p58 = scmp.eq.s32.totalorder %s15, 1
    %p59 = por %p57, %p58
    %p61 = scmp.ne.s32.totalorder %s46, %s60
    %p62 = scmp.eq.s32.totalorder %s15, 0
    %p63 = por %p61, %p62
    %s65 = sadd.s32 %s64, 1
    %p68 = scmp.eq.s32.totalorder %s9, 1
    %p69 = scmp.ne.s32.totalorder %s64, %s66
    %p70 = scmp.eq.s32.totalorder %s9, 0
    %p71 = por %p69, %p70
    %p72 = scmp.ne.s32.totalorder %s64, %s66
    %p73 = scmp.eq.s32.totalorder %s14, 1
    %p74 = por %p72, %p73
    %p75 = scmp.ne.s32.totalorder %s66, %s67
    %p76 = scmp.eq.s32.totalorder %s14, 0
    %p77 = por %p75, %p76
    %p78 = scmp.ne.s32.totalorder %s66, %s67
    %p79 = scmp.eq.s32.totalorder %s15, 1
    %p80 = por %p78, %p79
    %p82 = scmp.ne.s32.totalorder %s67, %s81
    %p83 = scmp.eq.s32.totalorder %s15, 0
    %p84 = por %p82, %p83
    %s85 = ssub.s32 %s9, %s16
    %p86 = scmp.eq.s32.totalorder %s85, 0
    %s88 = sadd.s32 %s87, 1
    %s89 = scalar_select %p86, %s87, %s88
    %p92 = pneg %p86
    %p93 = scmp.eq.s32.totalorder %s9, 1
    %p94 = por %p92, %p93
    %p95 = scmp.ne.s32.totalorder %s87, %s90
    %p96 = scmp.eq.s32.totalorder %s9, 0
    %p97 = por %p95, %p96
    %p98 = scmp.ne.s32.totalorder %s87, %s90
    %p99 = scmp.eq.s32.totalorder %s14, 1
    %p100 = por %p98, %p99
    %p101 = scmp.ne.s32.totalorder %s90, %s91
    %p102 = scmp.eq.s32.totalorder %s14, 0
    %p103 = por %p101, %p102
    %p104 = scmp.ne.s32.totalorder %s90, %s91
    %p105 = scmp.eq.s32.totalorder %s15, 1
    %p106 = por %p104, %p105
    %p108 = scmp.ne.s32.totalorder %s91, %s107
    %p109 = scmp.eq.s32.totalorder %s15, 0
    %p110 = por %p108, %p109
    %p111 = scmp.le.s32.totalorder 1, %s9
    %p112 = scmp.lt.s32.totalorder %s9, 3
    %p113 = pnand %p111, %p112
    %p114 = pneg %p113
    // Predicated region
    $region9: #{agg_conv_forward.6} parent=5 // pred_check
      _
    $region10: #{agg_conv_forward.6} parent=5 // pred_check_branch
      %116 = sbr.rel (%p113) target = $region12
    $region11: #{agg_conv_forward.6} parent=5 // pred_region
      %s117 = ssub.s32 %s9, 1
      // Predicated region
      $region13: #{agg_conv_forward.6} parent=11 // pred_check
        %p118 = pneg %p56
      $region14: #{agg_conv_forward.6} parent=11 // pred_check_branch
        %120 = sbr.rel (%p118) target = $region16
      $region15: #{agg_conv_forward.6} parent=11 // pred_region
        _
      $region16: #{agg_conv_forward.6} parent=11 // pred_fallthru
        _
      // Predicated region
      $region17: #{agg_conv_forward.6} parent=11 // pred_check
        %p121 = pneg %p77
      $region18: #{agg_conv_forward.6} parent=11 // pred_check_branch
        %123 = sbr.rel (%p121) target = $region20
      $region19: #{agg_conv_forward.6} parent=11 // pred_region
        _
      $region20: #{agg_conv_forward.6} parent=11 // pred_fallthru
        _
    $region12: #{agg_conv_forward.6} parent=5 // pred_fallthru
      _
    %p124 = scmp.lt.s32.totalorder %s9, 2
    // Predicated region
    $region21: #{agg_conv_forward.6} parent=5 // pred_check
      %p125 = pneg %p124
    $region22: #{agg_conv_forward.6} parent=5 // pred_check_branch
      %127 = sbr.rel (%p125) target = $region24
    $region23: #{agg_conv_forward.6} parent=5 // pred_region
      // Predicated region
      $region25: #{agg_conv_forward.6} parent=23 // pred_check
        %p128 = pneg %p29
      $region26: #{agg_conv_forward.6} parent=23 // pred_check_branch
        %130 = sbr.rel (%p128) target = $region28
      $region27: #{agg_conv_forward.6} parent=23 // pred_region
        %p131 = scmp.lt.s32.totalorder %s9, 1
        %s132 = scalar_select %p131, %s9, 1
        %s133 = smul.addr %s132, 18
        %s134 = smul.addr %s133, 4
        %s135 = scalar_lea.vmem %s0, %s134
      $region28: #{agg_conv_forward.6} parent=23 // pred_fallthru
        _
    $region24: #{agg_conv_forward.6} parent=5 // pred_fallthru
      _
    %p136 = scmp.le.s32.totalorder 1, %s9
    %p137 = scmp.lt.s32.totalorder %s9, 3
    %p138 = pnand %p136, %p137
    %p139 = pneg %p138
    // Predicated region
    $region29: #{agg_conv_forward.6} parent=5 // pred_check
      _
    $region30: #{agg_conv_forward.6} parent=5 // pred_check_branch
      %141 = sbr.rel (%p138) target = $region32
    $region31: #{agg_conv_forward.6} parent=5 // pred_region
      %s142 = ssub.s32 %s9, 1
      %p143 = scmp.lt.s32.totalorder %s14, 1
      %s144 = scalar_select %p143, %s14, 1
      %s145 = smul.addr %s144, 18
      %s146 = smul.addr %s145, 4
      %s147 = scalar_lea.vmem %s0, %s146
      %p148 = pneg %p35
      %p149 = pneg %p32
      %p150 = pneg %p56
      %p151 = pneg %p53
      %p152 = pneg %p77
      %p153 = pneg %p74
      %p154 = pneg %p103
      %p155 = pneg %p100
      %p156 = scmp.lt.s32.totalorder %s14, 1
      %s157 = scalar_select %p156, %s14, 1
      %s158 = smul.addr %s157, 8
      %s159 = smul.addr %s158, 8
      %s160 = scalar_lea.vmem %s3, %s159
      %p161 = scmp.lt.s32.totalorder %s14, 1
      %s162 = scalar_select %p161, %s14, 1
      %s163 = smul.addr %s162, 18
      %s164 = smul.addr %s163, 4
      %s165 = scalar_lea.vmem %s0, %s164
      %p166 = scmp.lt.s32.totalorder %s14, 1
      %s167 = scalar_select %p166, %s14, 1
      %s168 = smul.addr %s167, 8
      %s169 = smul.addr %s168, 8
      %s170 = scalar_lea.vmem %s3, %s169
      %v172 = vld [vmem:[%s165] sm:$0xf]
      %v173 = vld [vmem:[%s165 + $0x4] sm:$0x1]
      %v174 = vld [vmem:[%s165 + $0x8] sm:$0xf]
      %v175 = vld [vmem:[%s165 + $0xc] sm:$0x1]
      %v176 = vld [vmem:[%s165 + $0x10] sm:$0xf]
      %v177 = vld [vmem:[%s165 + $0x14] sm:$0x1]
      %v178 = vld [vmem:[%s165 + $0x18] sm:$0xf]
      %v179 = vld [vmem:[%s165 + $0x1c] sm:$0x1]
      %v180 = vld [vmem:[%s165 + $0x20] sm:$0xf]
      %v181 = vld [vmem:[%s165 + $0x24] sm:$0x1]
      %v182 = vld [vmem:[%s165 + $0x28] sm:$0xf]
      %v183 = vld [vmem:[%s165 + $0x2c] sm:$0x1]
      %v184 = vld [vmem:[%s165 + $0x30] sm:$0xf]
      %v185 = vld [vmem:[%s165 + $0x34] sm:$0x1]
      %v186 = vld [vmem:[%s165 + $0x38] sm:$0xf]
      %v187 = vld [vmem:[%s165 + $0x3c] sm:$0x1]
      %v188 = vld [vmem:[%s165 + $0x40] sm:$0xf]
      %v189 = vld [vmem:[%s165 + $0x44] sm:$0x1]
      %v190 = vunpack.c.l.bf16 %v172
      %v191 = vunpack.c.l.bf16 %v173
      %v192 = vunpack.c.l.bf16 %v174
      %v193 = vunpack.c.l.bf16 %v175
      %v194 = vunpack.c.l.bf16 %v176
      %v195 = vunpack.c.l.bf16 %v177
      %v196 = vunpack.c.l.bf16 %v178
      %v197 = vunpack.c.l.bf16 %v179
      %v198 = vunpack.c.l.bf16 %v180
      %v199 = vunpack.c.l.bf16 %v181
      %v200 = vunpack.c.l.bf16 %v182
      %v201 = vunpack.c.l.bf16 %v183
      %v202 = vunpack.c.l.bf16 %v184
      %v203 = vunpack.c.l.bf16 %v185
      %v204 = vunpack.c.l.bf16 %v186
      %v205 = vunpack.c.l.bf16 %v187
      %v206 = vunpack.c.l.bf16 %v188
      %v207 = vunpack.c.l.bf16 %v189
      %vm224 = vcmask 1046528
      %v225 = vrot.slane %v190, 1
      %v226 = vrot.slane %v191, 1
      %v227 = vsel %vm224, %v225, %v226
      %v228 = vrot.slane %v192, 1
      %v229 = vrot.slane %v193, 1
      %v230 = vsel %vm224, %v228, %v229
      %v231 = vrot.slane %v194, 1
      %v232 = vrot.slane %v195, 1
      %v233 = vsel %vm224, %v231, %v232
      %v234 = vrot.slane %v196, 1
      %v235 = vrot.slane %v197, 1
      %v236 = vsel %vm224, %v234, %v235
      %v237 = vrot.slane %v198, 1
      %v238 = vrot.slane %v199, 1
      %v239 = vsel %vm224, %v237, %v238
      %v240 = vrot.slane %v200, 1
      %v241 = vrot.slane %v201, 1
      %v242 = vsel %vm224, %v240, %v241
      %v243 = vrot.slane %v202, 1
      %v244 = vrot.slane %v203, 1
      %v245 = vsel %vm224, %v243, %v244
      %v246 = vrot.slane %v204, 1
      %v247 = vrot.slane %v205, 1
      %v248 = vsel %vm224, %v246, %v247
      %249 = vrot.lane.b32.xlu0 %v227, 16
      %v250 = vpop.permute.xlu0 %249
      %251 = vrot.lane.b32.xlu0 %v230, 16
      %v252 = vpop.permute.xlu0 %251
      %253 = vrot.lane.b32.xlu0 %v233, 16
      %v254 = vpop.permute.xlu0 %253
      %255 = vrot.lane.b32.xlu0 %v236, 16
      %v256 = vpop.permute.xlu0 %255
      %257 = vrot.lane.b32.xlu0 %v239, 16
      %v258 = vpop.permute.xlu0 %257
      %259 = vrot.lane.b32.xlu0 %v242, 16
      %v260 = vpop.permute.xlu0 %259
      %261 = vrot.lane.b32.xlu0 %v245, 16
      %v262 = vpop.permute.xlu0 %261
      %263 = vrot.lane.b32.xlu0 %v248, 16
      %v264 = vpop.permute.xlu0 %263
      %273 = vrot.lane.b32.xlu0 %v190, 8
      %v274 = vpop.permute.xlu0 %273
      %275 = vrot.lane.b32.xlu0 %v192, 8
      %v276 = vpop.permute.xlu0 %275
      %277 = vrot.lane.b32.xlu0 %v194, 8
      %v278 = vpop.permute.xlu0 %277
      %279 = vrot.lane.b32.xlu0 %v196, 8
      %v280 = vpop.permute.xlu0 %279
      %281 = vrot.lane.b32.xlu0 %v198, 8
      %v282 = vpop.permute.xlu0 %281
      %283 = vrot.lane.b32.xlu0 %v200, 8
      %v284 = vpop.permute.xlu0 %283
      %285 = vrot.lane.b32.xlu0 %v202, 8
      %v286 = vpop.permute.xlu0 %285
      %287 = vrot.lane.b32.xlu0 %v204, 8
      %v288 = vpop.permute.xlu0 %287
      %297 = vrot.lane.b32.xlu0 %v227, 24
      %v298 = vpop.permute.xlu0 %297
      %299 = vrot.lane.b32.xlu0 %v230, 24
      %v300 = vpop.permute.xlu0 %299
      %301 = vrot.lane.b32.xlu0 %v233, 24
      %v302 = vpop.permute.xlu0 %301
      %303 = vrot.lane.b32.xlu0 %v236, 24
      %v304 = vpop.permute.xlu0 %303
      %305 = vrot.lane.b32.xlu0 %v239, 24
      %v306 = vpop.permute.xlu0 %305
      %307 = vrot.lane.b32.xlu0 %v242, 24
      %v308 = vpop.permute.xlu0 %307
      %309 = vrot.lane.b32.xlu0 %v245, 24
      %v310 = vpop.permute.xlu0 %309
      %311 = vrot.lane.b32.xlu0 %v248, 24
      %v312 = vpop.permute.xlu0 %311
      %322 = vrot.lane.b32.xlu0 %v192, 48
      %v323 = vpop.permute.xlu0 %322
      %324 = vrot.lane.b32.xlu0 %v194, 48
      %v325 = vpop.permute.xlu0 %324
      %326 = vrot.lane.b32.xlu0 %v196, 48
      %v327 = vpop.permute.xlu0 %326
      %328 = vrot.lane.b32.xlu0 %v198, 48
      %v329 = vpop.permute.xlu0 %328
      %330 = vrot.lane.b32.xlu0 %v200, 48
      %v331 = vpop.permute.xlu0 %330
      %332 = vrot.lane.b32.xlu0 %v202, 48
      %v333 = vpop.permute.xlu0 %332
      %334 = vrot.lane.b32.xlu0 %v204, 48
      %v335 = vpop.permute.xlu0 %334
      %336 = vrot.lane.b32.xlu0 %v206, 48
      %v337 = vpop.permute.xlu0 %336
      %v347 = vrot.slane %v206, 1
      %v348 = vrot.slane %v207, 1
      %v349 = vsel %vm224, %v347, %v348
      %350 = vrot.lane.b32.xlu0 %v230, 64
      %v351 = vpop.permute.xlu0 %350
      %352 = vrot.lane.b32.xlu0 %v233, 64
      %v353 = vpop.permute.xlu0 %352
      %354 = vrot.lane.b32.xlu0 %v236, 64
      %v355 = vpop.permute.xlu0 %354
      %356 = vrot.lane.b32.xlu0 %v239, 64
      %v357 = vpop.permute.xlu0 %356
      %358 = vrot.lane.b32.xlu0 %v242, 64
      %v359 = vpop.permute.xlu0 %358
      %360 = vrot.lane.b32.xlu0 %v245, 64
      %v361 = vpop.permute.xlu0 %360
      %362 = vrot.lane.b32.xlu0 %v248, 64
      %v363 = vpop.permute.xlu0 %362
      %364 = vrot.lane.b32.xlu0 %v349, 64
      %v365 = vpop.permute.xlu0 %364
      %vm374 = vcmask 130048
      %v375 = vsel %vm374, %v190, %v250
      %v376 = vsel %vm374, %v192, %v252
      %v377 = vsel %vm374, %v194, %v254
      %v378 = vsel %vm374, %v196, %v256
      %v379 = vsel %vm374, %v198, %v258
      %v380 = vsel %vm374, %v200, %v260
      %v381 = vsel %vm374, %v202, %v262
      %v382 = vsel %vm374, %v204, %v264
      %vm383 = vcmask 195584
      %v384 = vsel %vm383, %v375, %v274
      %v385 = vsel %vm383, %v376, %v276
      %v386 = vsel %vm383, %v377, %v278
      %v387 = vsel %vm383, %v378, %v280
      %v388 = vsel %vm383, %v379, %v282
      %v389 = vsel %vm383, %v380, %v284
      %v390 = vsel %vm383, %v381, %v286
      %v391 = vsel %vm383, %v382, %v288
      %vm392 = vcmask 261120
      %v393 = vsel %vm392, %v384, %v274
      %v394 = vsel %vm392, %v385, %v276
      %v395 = vsel %vm392, %v386, %v278
      %v396 = vsel %vm392, %v387, %v280
      %v397 = vsel %vm392, %v388, %v282
      %v398 = vsel %vm392, %v389, %v284
      %v399 = vsel %vm392, %v390, %v286
      %v400 = vsel %vm392, %v391, %v288
      %vm401 = vcmask 326656
      %v402 = vsel %vm401, %v393, %v298
      %v403 = vsel %vm401, %v394, %v300
      %v404 = vsel %vm401, %v395, %v302
      %v405 = vsel %vm401, %v396, %v304
      %v406 = vsel %vm401, %v397, %v306
      %v407 = vsel %vm401, %v398, %v308
      %v408 = vsel %vm401, %v399, %v310
      %v409 = vsel %vm401, %v400, %v312
      %vm410 = vcmask 392192
      %v411 = vsel %vm410, %v402, %v323
      %v412 = vsel %vm410, %v403, %v325
      %v413 = vsel %vm410, %v404, %v327
      %v414 = vsel %vm410, %v405, %v329
      %v415 = vsel %vm410, %v406, %v331
      %v416 = vsel %vm410, %v407, %v333
      %v417 = vsel %vm410, %v408, %v335
      %v418 = vsel %vm410, %v409, %v337
      %vm419 = vcmask 457728
      %v420 = vsel %vm419, %v411, %v323
      %v421 = vsel %vm419, %v412, %v325
      %v422 = vsel %vm419, %v413, %v327
      %v423 = vsel %vm419, %v414, %v329
      %v424 = vsel %vm419, %v415, %v331
      %v425 = vsel %vm419, %v416, %v333
      %v426 = vsel %vm419, %v417, %v335
      %v427 = vsel %vm419, %v418, %v337
      %vm428 = vcmask 523264
      %v429 = vsel %vm428, %v420, %v351
      %v430 = vsel %vm428, %v421, %v353
      %v431 = vsel %vm428, %v422, %v355
      %v432 = vsel %vm428, %v423, %v357
      %v433 = vsel %vm428, %v424, %v359
      %v434 = vsel %vm428, %v425, %v361
      %v435 = vsel %vm428, %v426, %v363
      %v436 = vsel %vm428, %v427, %v365
      %v437 = vpack.c.bf16 %v430, %v429
      %v438 = vpack.c.bf16 %v432, %v431
      %v439 = vpack.c.bf16 %v434, %v433
      %v440 = vpack.c.bf16 %v436, %v435
      %v441 = vld [vmem:[%s1] sm:$0xf]
      %v442 = vld [vmem:[%s1 + $0x4] sm:$0xf]
      %v443 = vld [vmem:[%s1 + $0x8] sm:$0xf]
      %v444 = vld [vmem:[%s1 + $0xc] sm:$0xf]
      %v445 = vld [vmem:[%s1 + $0x10] sm:$0xf]
      %v446 = vld [vmem:[%s1 + $0x14] sm:$0xf]
      %v447 = vld [vmem:[%s1 + $0x18] sm:$0xf]
      %v448 = vld [vmem:[%s1 + $0x1c] sm:$0xf]
      %v449 = vld [vmem:[%s1 + $0x20] sm:$0xf]
      %v450 = vld [vmem:[%s2] sm:$0x1]
      %v452 = vlaneseq
      %v453 = vshrl.u32 %v452, 7
      %v454 = vsub.s32 0, %v453
      %v455 = vrot.slane %v450, %v454
      %v466 = vunpack.c.l.b16 %v441
      %v467 = vunpack.c.l.b16 %v442
      %v468 = vunpack.c.l.b16 %v443
      %v469 = vunpack.c.l.b16 %v444
      %v470 = vunpack.c.l.b16 %v445
      %v471 = vunpack.c.l.b16 %v446
      %v472 = vunpack.c.l.b16 %v447
      %v473 = vunpack.c.l.b16 %v448
      %v474 = vunpack.c.l.b16 %v449
      %v475 = vpack.c.b16 %v467, %v466
      %v476 = vpack.c.b16 %v469, %v468
      %v477 = vpack.c.b16 %v471, %v470
      %v478 = vpack.c.b16 %v473, %v472
      %v479 = vpack.c.b16 %v474, %v474
      %vm484 = vcmask 588800
      %v486 = vsel %vm484, %v437, 0
      %v489 = vsel %vm484, %v438, 0
      %v492 = vsel %vm484, %v439, 0
      %v495 = vsel %vm484, %v440, 0
      %vm497 = vcmask 1043456
      %v499 = vsel %vm497, %v479, 0
      %501 = vmatprep.subr.bf16.mxu0 0
      %502 = vmatpush1.bf16.msra.mxu0 0
      %503 = vmatprep.subr.bf16.mxu0 0
      %504 = vmatpush1.bf16.msra.mxu0 0
      %505 = vmatprep.subr.bf16.mxu0 0
      %506 = vmatpush1.bf16.msra.mxu0 0
      %507 = vmatprep.subr.bf16.mxu0 0
      %508 = vmatpush1.bf16.msra.mxu0 %v499
      %509 = vmatprep.subr.bf16.mxu0 0
      %510 = vmatpush1.bf16.msra.mxu0 %v478
      %511 = vmatprep.subr.bf16.mxu0 0
      %512 = vmatpush1.bf16.msra.mxu0 %v477
      %513 = vmatprep.subr.bf16.mxu0 0
      %514 = vmatpush1.bf16.msra.mxu0 %v476
      %515 = vmatprep.subr.bf16.mxu0 0
      %516 = vmatpush1.bf16.msra.mxu0 %v475
      %517 = vmatprep.subr.bf16.mxu0 0
      %518 = vmatpush2.bf16.msra.mxu0 0
      %519 = vmatprep.subr.bf16.mxu0 0
      %520 = vmatpush2.bf16.msra.mxu0 0
      %521 = vmatprep.subr.bf16.mxu0 0
      %522 = vmatpush2.bf16.msra.mxu0 0
      %523 = vmatprep.subr.bf16.mxu0 0
      %524 = vmatpush2.bf16.msra.mxu0 0
      %525 = vmatprep.subr.bf16.mxu0 0
      %526 = vmatpush2.bf16.msra.mxu0 0
      %527 = vmatprep.subr.bf16.mxu0 0
      %528 = vmatpush2.bf16.msra.mxu0 0
      %529 = vmatprep.subr.bf16.mxu0 0
      %530 = vmatpush2.bf16.msra.mxu0 0
      %531 = vmatprep.subr.bf16.mxu0 0
      %532 = vmatpush2.bf16.msra.mxu0 0
      %533 = vmatprep.mubr.bf16.mxu0 0
      %534 = vmatmul.mubr.bf16.gmra.mxu0 %v486
      %v535 = vpop.f32.mrf.mxu0
      %v536 = vadd.f32 %v455, %v535
      %v537 = vpop.f32.mrf.mxu0
      %v538 = vpop.f32.mrf.mxu0
      %v539 = vadd.f32 %v455, %v538
      %v540 = vpop.f32.mrf.mxu0
      %541 = vmatprep.mubr.bf16.mxu0 0
      %542 = vmatmul.mubr.bf16.gmra.mxu0 %v489
      %v543 = vpop.f32.mrf.mxu0
      %v544 = vadd.f32 %v455, %v543
      %v545 = vpop.f32.mrf.mxu0
      %v546 = vpop.f32.mrf.mxu0
      %v547 = vadd.f32 %v455, %v546
      %v548 = vpop.f32.mrf.mxu0
      %549 = vmatprep.mubr.bf16.mxu0 0
      %550 = vmatmul.mubr.bf16.gmra.mxu0 %v492
      %v551 = vpop.f32.mrf.mxu0
      %v552 = vadd.f32 %v455, %v551
      %v553 = vpop.f32.mrf.mxu0
      %v554 = vpop.f32.mrf.mxu0
      %v555 = vadd.f32 %v455, %v554
      %v556 = vpop.f32.mrf.mxu0
      %557 = vmatprep.mubr.bf16.mxu0 0
      %558 = vmatmul.mubr.bf16.gmra.mxu0 %v495
      %v559 = vpop.f32.mrf.mxu0
      %v560 = vadd.f32 %v455, %v559
      %v561 = vpop.f32.mrf.mxu0
      %v562 = vpop.f32.mrf.mxu0
      %v563 = vadd.f32 %v455, %v562
      %v564 = vpop.f32.mrf.mxu0
      %565 = vdwg.mxu0
      %vm566 = vcmp.ge.f32.partialorder %v536, 0.0
      %vm567 = vcmp.ge.f32.partialorder %v539, 0.0
      %vm568 = vcmp.ge.f32.partialorder %v544, 0.0
      %vm569 = vcmp.ge.f32.partialorder %v547, 0.0
      %vm570 = vcmp.ge.f32.partialorder %v552, 0.0
      %vm571 = vcmp.ge.f32.partialorder %v555, 0.0
      %vm572 = vcmp.ge.f32.partialorder %v560, 0.0
      %vm573 = vcmp.ge.f32.partialorder %v563, 0.0
      %v574 = vmul.f32 %v536, 0.2
      %v575 = vmul.f32 %v539, 0.2
      %v576 = vmul.f32 %v544, 0.2
      %v577 = vmul.f32 %v547, 0.2
      %v578 = vmul.f32 %v552, 0.2
      %v579 = vmul.f32 %v555, 0.2
      %v580 = vmul.f32 %v560, 0.2
      %v581 = vmul.f32 %v563, 0.2
      %v582 = vsel %vm566, %v536, %v574
      %v583 = vsel %vm567, %v539, %v575
      %v584 = vsel %vm568, %v544, %v576
      %v585 = vsel %vm569, %v547, %v577
      %v586 = vsel %vm570, %v552, %v578
      %v587 = vsel %vm571, %v555, %v579
      %v588 = vsel %vm572, %v560, %v580
      %v589 = vsel %vm573, %v563, %v581
      %vm590 = vcmask 64512
      %591 = vst.msk [vmem:[%s170] sm:$0xff] %vm590, %v582
      %592 = vst.msk [vmem:[%s170 + $0x8] sm:$0xff] %vm590, %v583
      %593 = vst.msk [vmem:[%s170 + $0x10] sm:$0xff] %vm590, %v584
      %594 = vst.msk [vmem:[%s170 + $0x18] sm:$0xff] %vm590, %v585
      %595 = vst.msk [vmem:[%s170 + $0x20] sm:$0xff] %vm590, %v586
      %596 = vst.msk [vmem:[%s170 + $0x28] sm:$0xff] %vm590, %v587
      %597 = vst.msk [vmem:[%s170 + $0x30] sm:$0xff] %vm590, %v588
      %598 = vst.msk [vmem:[%s170 + $0x38] sm:$0xff] %vm590, %v589
      %p599 = scmp.lt.s32.totalorder %s14, 1
      %s600 = scalar_select %p599, %s14, 1
      %s601 = smul.addr %s600, 8
      %s602 = smul.addr %s601, 8
      %s603 = scalar_lea.vmem %s3, %s602
      // Predicated region
      $region33: #{agg_conv_forward.6} parent=31 // pred_check
        %p604 = pneg %p100
      $region34: #{agg_conv_forward.6} parent=31 // pred_check_branch
        %606 = sbr.rel (%p604) target = $region36
      $region35: #{agg_conv_forward.6} parent=31 // pred_region
        _
      $region36: #{agg_conv_forward.6} parent=31 // pred_fallthru
        _
    $region32: #{agg_conv_forward.6} parent=5 // pred_fallthru
      _
    %p607 = scmp.le.s32.totalorder 2, %s9
    // Predicated region
    $region37: #{agg_conv_forward.6} parent=5 // pred_check
      %p608 = pneg %p607
    $region38: #{agg_conv_forward.6} parent=5 // pred_check_branch
      %610 = sbr.rel (%p608) target = $region40
    $region39: #{agg_conv_forward.6} parent=5 // pred_region
      %s611 = ssub.s32 %s9, 2
      // Predicated region
      $region41: #{agg_conv_forward.6} parent=39 // pred_check
        %p612 = pneg %p106
      $region42: #{agg_conv_forward.6} parent=39 // pred_check_branch
        %614 = sbr.rel (%p612) target = $region44
      $region43: #{agg_conv_forward.6} parent=39 // pred_region
        %p615 = scmp.lt.s32.totalorder %s15, 1
        %s616 = scalar_select %p615, %s15, 1
        %s617 = smul.addr %s616, 8
        %s618 = smul.addr %s617, 8
        %s619 = scalar_lea.vmem %s3, %s618
      $region44: #{agg_conv_forward.6} parent=39 // pred_fallthru
        _
    $region40: #{agg_conv_forward.6} parent=5 // pred_fallthru
      _
  $region6: #{agg_conv_forward.6} parent=0 // loop_footer
    %s13 = sadd.s32 1, %s9
  $region7: #{agg_conv_forward.6} parent=0 // loop_footer_branch
    %8 = sbr.rel target = $region3
  $region8: #{agg_conv_forward.6} parent=0 // loop_exit
    _

// kernel: agg_conv_forward.7
$region0: #{agg_conv_forward.7}
  #allocation0 [shape = 'u32[]', space=smem, size = 0x4, offset = 0x4, fixed_abs, tag = 'smem constant byte address 0x4 - core index']
  #allocation1 [shape = 'u32[144,128]{1,0:T(1,128)}', space=vmem, size = 0x12000, scoped, tag = 'internal scratch']
  %s0 = inlined_call_operand.vmem [shape: bf16[2,10,10,8], index: 0, kind: input, shape index: {}]
  %s1 = inlined_call_operand.vmem [shape: bf16[72,8], index: 1, kind: input, shape index: {}]
  %s2 = inlined_call_operand.vmem [shape: f32[1,8], index: 2, kind: input, shape index: {}]
  %s3 = inlined_call_operand.vmem [shape: f32[2,64,8], index: 3, kind: output, shape index: {}]
  %s4 = sld [smem:[#allocation0]]
  $region45: #{agg_conv_forward.7} parent=0
    _
  %s6 = ssub.s32 1, %s4
  %s7 = scalar_select 0, %s6, %s4
  loop: start=0, step=1, limit=4
  $region2: #{agg_conv_forward.7} parent=0 // loop_pre_header
    _
  $region3: #{agg_conv_forward.7} parent=0 // loop_header
    %s9 = sphi 0, %s13
    %p10 = scmp.ge.s32.totalorder %s9, 4
    %s19 = sphi 0, %s21
    %s22 = sphi 0, %s19
    %s23 = sphi 0, %s22
    %s39 = sphi 0, %s23
    %s43 = sphi 0, %s43
    %s45 = sphi 0, %s43
    %s46 = sphi 0, %s45
    %s60 = sphi 0, %s46
    %s64 = sphi 0, %s64
    %s66 = sphi 0, %s64
    %s67 = sphi 0, %s66
    %s81 = sphi 0, %s67
    %s87 = sphi 0, %s89
    %s90 = sphi 0, %s87
    %s91 = sphi 0, %s90
    %s107 = sphi 0, %s91
  $region4: #{agg_conv_forward.7} parent=0 // loop_header_branch
    %12 = sbr.rel (%p10) target = $region8
  $region5: #{agg_conv_forward.7} parent=0 // loop_body
    %s14 = ssub.s32 %s9, 1
    %s15 = ssub.s32 %s9, 2
    %s16 = sadd.s32 %s9, 1
    %s17 = ssub.s32 %s9, %s16
    %p18 = scmp.eq.s32.totalorder %s17, 0
    %s20 = sadd.s32 %s19, 1
    %s21 = scalar_select %p18, %s19, %s20
    %p24 = pneg %p18
    %p25 = scmp.eq.s32.totalorder %s9, 1
    %p26 = por %p24, %p25
    %p27 = scmp.ne.s32.totalorder %s19, %s22
    %p28 = scmp.eq.s32.totalorder %s9, 0
    %p29 = por %p27, %p28
    %p30 = scmp.ne.s32.totalorder %s19, %s22
    %p31 = scmp.eq.s32.totalorder %s14, 1
    %p32 = por %p30, %p31
    %p33 = scmp.ne.s32.totalorder %s22, %s23
    %p34 = scmp.eq.s32.totalorder %s14, 0
    %p35 = por %p33, %p34
    %p36 = scmp.ne.s32.totalorder %s22, %s23
    %p37 = scmp.eq.s32.totalorder %s15, 1
    %p38 = por %p36, %p37
    %p40 = scmp.ne.s32.totalorder %s23, %s39
    %p41 = scmp.eq.s32.totalorder %s15, 0
    %p42 = por %p40, %p41
    %s44 = sadd.s32 %s43, 1
    %p47 = scmp.eq.s32.totalorder %s9, 1
    %p48 = scmp.ne.s32.totalorder %s43, %s45
    %p49 = scmp.eq.s32.totalorder %s9, 0
    %p50 = por %p48, %p49
    %p51 = scmp.ne.s32.totalorder %s43, %s45
    %p52 = scmp.eq.s32.totalorder %s14, 1
    %p53 = por %p51, %p52
    %p54 = scmp.ne.s32.totalorder %s45, %s46
    %p55 = scmp.eq.s32.totalorder %s14, 0
    %p56 = por %p54, %p55
    %p57 = scmp.ne.s32.totalorder %s45, %s46
    %p58 = scmp.eq.s32.totalorder %s15, 1
    %p59 = por %p57, %p58
    %p61 = scmp.ne.s32.totalorder %s46, %s60
    %p62 = scmp.eq.s32.totalorder %s15, 0
    %p63 = por %p61, %p62
    %s65 = sadd.s32 %s64, 1
    %p68 = scmp.eq.s32.totalorder %s9, 1
    %p69 = scmp.ne.s32.totalorder %s64, %s66
    %p70 = scmp.eq.s32.totalorder %s9, 0
    %p71 = por %p69, %p70
    %p72 = scmp.ne.s32.totalorder %s64, %s66
    %p73 = scmp.eq.s32.totalorder %s14, 1
    %p74 = por %p72, %p73
    %p75 = scmp.ne.s32.totalorder %s66, %s67
    %p76 = scmp.eq.s32.totalorder %s14, 0
    %p77 = por %p75, %p76
    %p78 = scmp.ne.s32.totalorder %s66, %s67
    %p79 = scmp.eq.s32.totalorder %s15, 1
    %p80 = por %p78, %p79
    %p82 = scmp.ne.s32.totalorder %s67, %s81
    %p83 = scmp.eq.s32.totalorder %s15, 0
    %p84 = por %p82, %p83
    %s85 = ssub.s32 %s9, %s16
    %p86 = scmp.eq.s32.totalorder %s85, 0
    %s88 = sadd.s32 %s87, 1
    %s89 = scalar_select %p86, %s87, %s88
    %p92 = pneg %p86
    %p93 = scmp.eq.s32.totalorder %s9, 1
    %p94 = por %p92, %p93
    %p95 = scmp.ne.s32.totalorder %s87, %s90
    %p96 = scmp.eq.s32.totalorder %s9, 0
    %p97 = por %p95, %p96
    %p98 = scmp.ne.s32.totalorder %s87, %s90
    %p99 = scmp.eq.s32.totalorder %s14, 1
    %p100 = por %p98, %p99
    %p101 = scmp.ne.s32.totalorder %s90, %s91
    %p102 = scmp.eq.s32.totalorder %s14, 0
    %p103 = por %p101, %p102
    %p104 = scmp.ne.s32.totalorder %s90, %s91
    %p105 = scmp.eq.s32.totalorder %s15, 1
    %p106 = por %p104, %p105
    %p108 = scmp.ne.s32.totalorder %s91, %s107
    %p109 = scmp.eq.s32.totalorder %s15, 0
    %p110 = por %p108, %p109
    %p111 = scmp.le.s32.totalorder 1, %s9
    %p112 = scmp.lt.s32.totalorder %s9, 3
    %p113 = pnand %p111, %p112
    %p114 = pneg %p113
    // Predicated region
    $region9: #{agg_conv_forward.7} parent=5 // pred_check
      _
    $region10: #{agg_conv_forward.7} parent=5 // pred_check_branch
      %116 = sbr.rel (%p113) target = $region12
    $region11: #{agg_conv_forward.7} parent=5 // pred_region
      %s117 = ssub.s32 %s9, 1
      // Predicated region
      $region13: #{agg_conv_forward.7} parent=11 // pred_check
        %p118 = pneg %p56
      $region14: #{agg_conv_forward.7} parent=11 // pred_check_branch
        %120 = sbr.rel (%p118) target = $region16
      $region15: #{agg_conv_forward.7} parent=11 // pred_region
        _
      $region16: #{agg_conv_forward.7} parent=11 // pred_fallthru
        _
      // Predicated region
      $region17: #{agg_conv_forward.7} parent=11 // pred_check
        %p121 = pneg %p77
      $region18: #{agg_conv_forward.7} parent=11 // pred_check_branch
        %123 = sbr.rel (%p121) target = $region20
      $region19: #{agg_conv_forward.7} parent=11 // pred_region
        _
      $region20: #{agg_conv_forward.7} parent=11 // pred_fallthru
        _
    $region12: #{agg_conv_forward.7} parent=5 // pred_fallthru
      _
    %p124 = scmp.lt.s32.totalorder %s9, 2
    // Predicated region
    $region21: #{agg_conv_forward.7} parent=5 // pred_check
      %p125 = pneg %p124
    $region22: #{agg_conv_forward.7} parent=5 // pred_check_branch
      %127 = sbr.rel (%p125) target = $region24
    $region23: #{agg_conv_forward.7} parent=5 // pred_region
      // Predicated region
      $region25: #{agg_conv_forward.7} parent=23 // pred_check
        %p128 = pneg %p29
      $region26: #{agg_conv_forward.7} parent=23 // pred_check_branch
        %130 = sbr.rel (%p128) target = $region28
      $region27: #{agg_conv_forward.7} parent=23 // pred_region
        %p131 = scmp.lt.s32.totalorder %s9, 1
        %s132 = scalar_select %p131, %s9, 1
        %s133 = smul.addr %s132, 20
        %s134 = smul.addr %s133, 4
        %s135 = scalar_lea.vmem %s0, %s134
      $region28: #{agg_conv_forward.7} parent=23 // pred_fallthru
        _
    $region24: #{agg_conv_forward.7} parent=5 // pred_fallthru
      _
    %p136 = scmp.le.s32.totalorder 1, %s9
    %p137 = scmp.lt.s32.totalorder %s9, 3
    %p138 = pnand %p136, %p137
    %p139 = pneg %p138
    // Predicated region
    $region29: #{agg_conv_forward.7} parent=5 // pred_check
      _
    $region30: #{agg_conv_forward.7} parent=5 // pred_check_branch
      %141 = sbr.rel (%p138) target = $region32
    $region31: #{agg_conv_forward.7} parent=5 // pred_region
      %s142 = ssub.s32 %s9, 1
      %p143 = scmp.lt.s32.totalorder %s14, 1
      %s144 = scalar_select %p143, %s14, 1
      %s145 = smul.addr %s144, 20
      %s146 = smul.addr %s145, 4
      %s147 = scalar_lea.vmem %s0, %s146
      %p148 = pneg %p35
      %p149 = pneg %p32
      %p150 = pneg %p56
      %p151 = pneg %p53
      %p152 = pneg %p77
      %p153 = pneg %p74
      %p154 = pneg %p103
      %p155 = pneg %p100
      %p156 = scmp.lt.s32.totalorder %s14, 1
      %s157 = scalar_select %p156, %s14, 1
      %s158 = smul.addr %s157, 8
      %s159 = smul.addr %s158, 8
      %s160 = scalar_lea.vmem %s3, %s159
      %p161 = scmp.lt.s32.totalorder %s14, 1
      %s162 = scalar_select %p161, %s14, 1
      %s163 = smul.addr %s162, 20
      %s164 = smul.addr %s163, 4
      %s165 = scalar_lea.vmem %s0, %s164
      %p166 = scmp.lt.s32.totalorder %s14, 1
      %s167 = scalar_select %p166, %s14, 1
      %s168 = smul.addr %s167, 8
      %s169 = smul.addr %s168, 8
      %s170 = scalar_lea.vmem %s3, %s169
      %v172 = vld [vmem:[%s165] sm:$0xf]
      %v173 = vld [vmem:[%s165 + $0x4] sm:$0x1]
      %v174 = vld [vmem:[%s165 + $0x8] sm:$0xf]
      %v175 = vld [vmem:[%s165 + $0xc] sm:$0x1]
      %v176 = vld [vmem:[%s165 + $0x10] sm:$0xf]
      %v177 = vld [vmem:[%s165 + $0x14] sm:$0x1]
      %v178 = vld [vmem:[%s165 + $0x18] sm:$0xf]
      %v179 = vld [vmem:[%s165 + $0x1c] sm:$0x1]
      %v180 = vld [vmem:[%s165 + $0x20] sm:$0xf]
      %v181 = vld [vmem:[%s165 + $0x24] sm:$0x1]
      %v182 = vld [vmem:[%s165 + $0x28] sm:$0xf]
      %v183 = vld [vmem:[%s165 + $0x2c] sm:$0x1]
      %v184 = vld [vmem:[%s165 + $0x30] sm:$0xf]
      %v185 = vld [vmem:[%s165 + $0x34] sm:$0x1]
      %v186 = vld [vmem:[%s165 + $0x38] sm:$0xf]
      %v187 = vld [vmem:[%s165 + $0x3c] sm:$0x1]
      %v188 = vld [vmem:[%s165 + $0x40] sm:$0xf]
      %v189 = vld [vmem:[%s165 + $0x44] sm:$0x1]
      %v190 = vld [vmem:[%s165 + $0x48] sm:$0xf]
      %v191 = vld [vmem:[%s165 + $0x4c] sm:$0x1]
      %v192 = vunpack.c.l.bf16 %v172
      %v193 = vunpack.c.l.bf16 %v173
      %v194 = vunpack.c.l.bf16 %v174
      %v195 = vunpack.c.l.bf16 %v175
      %v196 = vunpack.c.l.bf16 %v176
      %v197 = vunpack.c.l.bf16 %v177
      %v198 = vunpack.c.l.bf16 %v178
      %v199 = vunpack.c.l.bf16 %v179
      %v200 = vunpack.c.l.bf16 %v180
      %v201 = vunpack.c.l.bf16 %v181
      %v202 = vunpack.c.l.bf16 %v182
      %v203 = vunpack.c.l.bf16 %v183
      %v204 = vunpack.c.l.bf16 %v184
      %v205 = vunpack.c.l.bf16 %v185
      %v206 = vunpack.c.l.bf16 %v186
      %v207 = vunpack.c.l.bf16 %v187
      %v208 = vunpack.c.l.bf16 %v188
      %v209 = vunpack.c.l.bf16 %v189
      %v210 = vunpack.c.l.bf16 %v190
      %v211 = vunpack.c.l.bf16 %v191
      %vm228 = vcmask 1046528
      %v229 = vrot.slane %v192, 1
      %v230 = vrot.slane %v193, 1
      %v231 = vsel %vm228, %v229, %v230
      %v232 = vrot.slane %v194, 1
      %v233 = vrot.slane %v195, 1
      %v234 = vsel %vm228, %v232, %v233
      %v235 = vrot.slane %v196, 1
      %v236 = vrot.slane %v197, 1
      %v237 = vsel %vm228, %v235, %v236
      %v238 = vrot.slane %v198, 1
      %v239 = vrot.slane %v199, 1
      %v240 = vsel %vm228, %v238, %v239
      %v241 = vrot.slane %v200, 1
      %v242 = vrot.slane %v201, 1
      %v243 = vsel %vm228, %v241, %v242
      %v244 = vrot.slane %v202, 1
      %v245 = vrot.slane %v203, 1
      %v246 = vsel %vm228, %v244, %v245
      %v247 = vrot.slane %v204, 1
      %v248 = vrot.slane %v205, 1
      %v249 = vsel %vm228, %v247, %v248
      %v250 = vrot.slane %v206, 1
      %v251 = vrot.slane %v207, 1
      %v252 = vsel %vm228, %v250, %v251
      %253 = vrot.lane.b32.xlu0 %v231, 8
      %v254 = vpop.permute.xlu0 %253
      %255 = vrot.lane.b32.xlu0 %v234, 8
      %v256 = vpop.permute.xlu0 %255
      %257 = vrot.lane.b32.xlu0 %v237, 8
      %v258 = vpop.permute.xlu0 %257
      %259 = vrot.lane.b32.xlu0 %v240, 8
      %v260 = vpop.permute.xlu0 %259
      %261 = vrot.lane.b32.xlu0 %v243, 8
      %v262 = vpop.permute.xlu0 %261
      %263 = vrot.lane.b32.xlu0 %v246, 8
      %v264 = vpop.permute.xlu0 %263
      %265 = vrot.lane.b32.xlu0 %v249, 8
      %v266 = vpop.permute.xlu0 %265
      %267 = vrot.lane.b32.xlu0 %v252, 8
      %v268 = vpop.permute.xlu0 %267
      %vm277 = vcmask 1045504
      %v278 = vrot.slane %v192, 2
      %v279 = vrot.slane %v193, 2
      %v280 = vsel %vm277, %v278, %v279
      %v281 = vrot.slane %v194, 2
      %v282 = vrot.slane %v195, 2
      %v283 = vsel %vm277, %v281, %v282
      %v284 = vrot.slane %v196, 2
      %v285 = vrot.slane %v197, 2
      %v286 = vsel %vm277, %v284, %v285
      %v287 = vrot.slane %v198, 2
      %v288 = vrot.slane %v199, 2
      %v289 = vsel %vm277, %v287, %v288
      %v290 = vrot.slane %v200, 2
      %v291 = vrot.slane %v201, 2
      %v292 = vsel %vm277, %v290, %v291
      %v293 = vrot.slane %v202, 2
      %v294 = vrot.slane %v203, 2
      %v295 = vsel %vm277, %v293, %v294
      %v296 = vrot.slane %v204, 2
      %v297 = vrot.slane %v205, 2
      %v298 = vsel %vm277, %v296, %v297
      %v299 = vrot.slane %v206, 2
      %v300 = vrot.slane %v207, 2
      %v301 = vsel %vm277, %v299, %v300
      %302 = vrot.lane.b32.xlu0 %v280, 16
      %v303 = vpop.permute.xlu0 %302
      %304 = vrot.lane.b32.xlu0 %v283, 16
      %v305 = vpop.permute.xlu0 %304
      %306 = vrot.lane.b32.xlu0 %v286, 16
      %v307 = vpop.permute.xlu0 %306
      %308 = vrot.lane.b32.xlu0 %v289, 16
      %v309 = vpop.permute.xlu0 %308
      %310 = vrot.lane.b32.xlu0 %v292, 16
      %v311 = vpop.permute.xlu0 %310
      %312 = vrot.lane.b32.xlu0 %v295, 16
      %v313 = vpop.permute.xlu0 %312
      %314 = vrot.lane.b32.xlu0 %v298, 16
      %v315 = vpop.permute.xlu0 %314
      %316 = vrot.lane.b32.xlu0 %v301, 16
      %v317 = vpop.permute.xlu0 %316
      %327 = vrot.lane.b32.xlu0 %v194, 24
      %v328 = vpop.permute.xlu0 %327
      %329 = vrot.lane.b32.xlu0 %v196, 24
      %v330 = vpop.permute.xlu0 %329
      %331 = vrot.lane.b32.xlu0 %v198, 24
      %v332 = vpop.permute.xlu0 %331
      %333 = vrot.lane.b32.xlu0 %v200, 24
      %v334 = vpop.permute.xlu0 %333
      %335 = vrot.lane.b32.xlu0 %v202, 24
      %v336 = vpop.permute.xlu0 %335
      %337 = vrot.lane.b32.xlu0 %v204, 24
      %v338 = vpop.permute.xlu0 %337
      %339 = vrot.lane.b32.xlu0 %v206, 24
      %v340 = vpop.permute.xlu0 %339
      %341 = vrot.lane.b32.xlu0 %v208, 24
      %v342 = vpop.permute.xlu0 %341
      %v352 = vrot.slane %v208, 1
      %v353 = vrot.slane %v209, 1
      %v354 = vsel %vm228, %v352, %v353
      %355 = vrot.lane.b32.xlu0 %v234, 32
      %v356 = vpop.permute.xlu0 %355
      %357 = vrot.lane.b32.xlu0 %v237, 32
      %v358 = vpop.permute.xlu0 %357
      %359 = vrot.lane.b32.xlu0 %v240, 32
      %v360 = vpop.permute.xlu0 %359
      %361 = vrot.lane.b32.xlu0 %v243, 32
      %v362 = vpop.permute.xlu0 %361
      %363 = vrot.lane.b32.xlu0 %v246, 32
      %v364 = vpop.permute.xlu0 %363
      %365 = vrot.lane.b32.xlu0 %v249, 32
      %v366 = vpop.permute.xlu0 %365
      %367 = vrot.lane.b32.xlu0 %v252, 32
      %v368 = vpop.permute.xlu0 %367
      %369 = vrot.lane.b32.xlu0 %v354, 32
      %v370 = vpop.permute.xlu0 %369
      %v379 = vrot.slane %v208, 2
      %v380 = vrot.slane %v209, 2
      %v381 = vsel %vm277, %v379, %v380
      %382 = vrot.lane.b32.xlu0 %v283, 40
      %v383 = vpop.permute.xlu0 %382
      %384 = vrot.lane.b32.xlu0 %v286, 40
      %v385 = vpop.permute.xlu0 %384
      %386 = vrot.lane.b32.xlu0 %v289, 40
      %v387 = vpop.permute.xlu0 %386
      %388 = vrot.lane.b32.xlu0 %v292, 40
      %v389 = vpop.permute.xlu0 %388
      %390 = vrot.lane.b32.xlu0 %v295, 40
      %v391 = vpop.permute.xlu0 %390
      %392 = vrot.lane.b32.xlu0 %v298, 40
      %v393 = vpop.permute.xlu0 %392
      %394 = vrot.lane.b32.xlu0 %v301, 40
      %v395 = vpop.permute.xlu0 %394
      %396 = vrot.lane.b32.xlu0 %v381, 40
      %v397 = vpop.permute.xlu0 %396
      %407 = vrot.lane.b32.xlu0 %v196, 48
      %v408 = vpop.permute.xlu0 %407
      %409 = vrot.lane.b32.xlu0 %v198, 48
      %v410 = vpop.permute.xlu0 %409
      %411 = vrot.lane.b32.xlu0 %v200, 48
      %v412 = vpop.permute.xlu0 %411
      %413 = vrot.lane.b32.xlu0 %v202, 48
      %v414 = vpop.permute.xlu0 %413
      %415 = vrot.lane.b32.xlu0 %v204, 48
      %v416 = vpop.permute.xlu0 %415
      %417 = vrot.lane.b32.xlu0 %v206, 48
      %v418 = vpop.permute.xlu0 %417
      %419 = vrot.lane.b32.xlu0 %v208, 48
      %v420 = vpop.permute.xlu0 %419
      %421 = vrot.lane.b32.xlu0 %v210, 48
      %v422 = vpop.permute.xlu0 %421
      %v432 = vrot.slane %v210, 1
      %v433 = vrot.slane %v211, 1
      %v434 = vsel %vm228, %v432, %v433
      %435 = vrot.lane.b32.xlu0 %v237, 56
      %v436 = vpop.permute.xlu0 %435
      %437 = vrot.lane.b32.xlu0 %v240, 56
      %v438 = vpop.permute.xlu0 %437
      %439 = vrot.lane.b32.xlu0 %v243, 56
      %v440 = vpop.permute.xlu0 %439
      %441 = vrot.lane.b32.xlu0 %v246, 56
      %v442 = vpop.permute.xlu0 %441
      %443 = vrot.lane.b32.xlu0 %v249, 56
      %v444 = vpop.permute.xlu0 %443
      %445 = vrot.lane.b32.xlu0 %v252, 56
      %v446 = vpop.permute.xlu0 %445
      %447 = vrot.lane.b32.xlu0 %v354, 56
      %v448 = vpop.permute.xlu0 %447
      %449 = vrot.lane.b32.xlu0 %v434, 56
      %v450 = vpop.permute.xlu0 %449
      %v459 = vrot.slane %v210, 2
      %v460 = vrot.slane %v211, 2
      %v461 = vsel %vm277, %v459, %v460
      %462 = vrot.lane.b32.xlu0 %v286, 64
      %v463 = vpop.permute.xlu0 %462
      %464 = vrot.lane.b32.xlu0 %v289, 64
      %v465 = vpop.permute.xlu0 %464
      %466 = vrot.lane.b32.xlu0 %v292, 64
      %v467 = vpop.permute.xlu0 %466
      %468 = vrot.lane.b32.xlu0 %v295, 64
      %v469 = vpop.permute.xlu0 %468
      %470 = vrot.lane.b32.xlu0 %v298, 64
      %v471 = vpop.permute.xlu0 %470
      %472 = vrot.lane.b32.xlu0 %v301, 64
      %v473 = vpop.permute.xlu0 %472
      %474 = vrot.lane.b32.xlu0 %v381, 64
      %v475 = vpop.permute.xlu0 %474
      %476 = vrot.lane.b32.xlu0 %v461, 64
      %v477 = vpop.permute.xlu0 %476
      %vm486 = vcmask 64512
      %v487 = vsel %vm486, %v192, %v254
      %v488 = vsel %vm486, %v194, %v256
      %v489 = vsel %vm486, %v196, %v258
      %v490 = vsel %vm486, %v198, %v260
      %v491 = vsel %vm486, %v200, %v262
      %v492 = vsel %vm486, %v202, %v264
      %v493 = vsel %vm486, %v204, %v266
      %v494 = vsel %vm486, %v206, %v268
      %vm495 = vcmask 130048
      %v496 = vsel %vm495, %v487, %v303
      %v497 = vsel %vm495, %v488, %v305
      %v498 = vsel %vm495, %v489, %v307
      %v499 = vsel %vm495, %v490, %v309
      %v500 = vsel %vm495, %v491, %v311
      %v501 = vsel %vm495, %v492, %v313
      %v502 = vsel %vm495, %v493, %v315
      %v503 = vsel %vm495, %v494, %v317
      %vm504 = vcmask 195584
      %v505 = vsel %vm504, %v496, %v328
      %v506 = vsel %vm504, %v497, %v330
      %v507 = vsel %vm504, %v498, %v332
      %v508 = vsel %vm504, %v499, %v334
      %v509 = vsel %vm504, %v500, %v336
      %v510 = vsel %vm504, %v501, %v338
      %v511 = vsel %vm504, %v502, %v340
      %v512 = vsel %vm504, %v503, %v342
      %vm513 = vcmask 261120
      %v514 = vsel %vm513, %v505, %v356
      %v515 = vsel %vm513, %v506, %v358
      %v516 = vsel %vm513, %v507, %v360
      %v517 = vsel %vm513, %v508, %v362
      %v518 = vsel %vm513, %v509, %v364
      %v519 = vsel %vm513, %v510, %v366
      %v520 = vsel %vm513, %v511, %v368
      %v521 = vsel %vm513, %v512, %v370
      %vm522 = vcmask 326656
      %v523 = vsel %vm522, %v514, %v383
      %v524 = vsel %vm522, %v515, %v385
      %v525 = vsel %vm522, %v516, %v387
      %v526 = vsel %vm522, %v517, %v389
      %v527 = vsel %vm522, %v518, %v391
      %v528 = vsel %vm522, %v519, %v393
      %v529 = vsel %vm522, %v520, %v395
      %v530 = vsel %vm522, %v521, %v397
      %vm531 = vcmask 392192
      %v532 = vsel %vm531, %v523, %v408
      %v533 = vsel %vm531, %v524, %v410
      %v534 = vsel %vm531, %v525, %v412
      %v535 = vsel %vm531, %v526, %v414
      %v536 = vsel %vm531, %v527, %v416
      %v537 = vsel %vm531, %v528, %v418
      %v538 = vsel %vm531, %v529, %v420
      %v539 = vsel %vm531, %v530, %v422
      %vm540 = vcmask 457728
      %v541 = vsel %vm540, %v532, %v436
      %v542 = vsel %vm540, %v533, %v438
      %v543 = vsel %vm540, %v534, %v440
      %v544 = vsel %vm540, %v535, %v442
      %v545 = vsel %vm540, %v536, %v444
      %v546 = vsel %vm540, %v537, %v446
      %v547 = vsel %vm540, %v538, %v448
      %v548 = vsel %vm540, %v539, %v450
      %vm549 = vcmask 523264
      %v550 = vsel %vm549, %v541, %v463
      %v551 = vsel %vm549, %v542, %v465
      %v552 = vsel %vm549, %v543, %v467
      %v553 = vsel %vm549, %v544, %v469
      %v554 = vsel %vm549, %v545, %v471
      %v555 = vsel %vm549, %v546, %v473
      %v556 = vsel %vm549, %v547, %v475
      %v557 = vsel %vm549, %v548, %v477
      %v558 = vpack.c.bf16 %v551, %v550
      %v559 = vpack.c.bf16 %v553, %v552
      %v560 = vpack.c.bf16 %v555, %v554
      %v561 = vpack.c.bf16 %v557, %v556
      %v562 = vld [vmem:[%s1] sm:$0xf]
      %v563 = vld [vmem:[%s1 + $0x4] sm:$0xf]
      %v564 = vld [vmem:[%s1 + $0x8] sm:$0xf]
      %v565 = vld [vmem:[%s1 + $0xc] sm:$0xf]
      %v566 = vld [vmem:[%s1 + $0x10] sm:$0xf]
      %v567 = vld [vmem:[%s1 + $0x14] sm:$0xf]
      %v568 = vld [vmem:[%s1 + $0x18] sm:$0xf]
      %v569 = vld [vmem:[%s1 + $0x1c] sm:$0xf]
      %v570 = vld [vmem:[%s1 + $0x20] sm:$0xf]
      %v571 = vld [vmem:[%s2] sm:$0x1]
      %v573 = vlaneseq
      %v574 = vshrl.u32 %v573, 7
      %v575 = vsub.s32 0, %v574
      %v576 = vrot.slane %v571, %v575
      %v587 = vunpack.c.l.b16 %v562
      %v588 = vunpack.c.l.b16 %v563
      %v589 = vunpack.c.l.b16 %v564
      %v590 = vunpack.c.l.b16 %v565
      %v591 = vunpack.c.l.b16 %v566
      %v592 = vunpack.c.l.b16 %v567
      %v593 = vunpack.c.l.b16 %v568
      %v594 = vunpack.c.l.b16 %v569
      %v595 = vunpack.c.l.b16 %v570
      %v596 = vpack.c.b16 %v588, %v587
      %v597 = vpack.c.b16 %v590, %v589
      %v598 = vpack.c.b16 %v592, %v591
      %v599 = vpack.c.b16 %v594, %v593
      %v600 = vpack.c.b16 %v595, %v595
      %vm605 = vcmask 588800
      %v607 = vsel %vm605, %v558, 0
      %v610 = vsel %vm605, %v559, 0
      %v613 = vsel %vm605, %v560, 0
      %v616 = vsel %vm605, %v561, 0
      %vm618 = vcmask 1043456
      %v620 = vsel %vm618, %v600, 0
      %622 = vmatprep.subr.bf16.mxu0 0
      %623 = vmatpush1.bf16.msra.mxu0 0
      %624 = vmatprep.subr.bf16.mxu0 0
      %625 = vmatpush1.bf16.msra.mxu0 0
      %626 = vmatprep.subr.bf16.mxu0 0
      %627 = vmatpush1.bf16.msra.mxu0 0
      %628 = vmatprep.subr.bf16.mxu0 0
      %629 = vmatpush1.bf16.msra.mxu0 %v620
      %630 = vmatprep.subr.bf16.mxu0 0
      %631 = vmatpush1.bf16.msra.mxu0 %v599
      %632 = vmatprep.subr.bf16.mxu0 0
      %633 = vmatpush1.bf16.msra.mxu0 %v598
      %634 = vmatprep.subr.bf16.mxu0 0
      %635 = vmatpush1.bf16.msra.mxu0 %v597
      %636 = vmatprep.subr.bf16.mxu0 0
      %637 = vmatpush1.bf16.msra.mxu0 %v596
      %638 = vmatprep.subr.bf16.mxu0 0
      %639 = vmatpush2.bf16.msra.mxu0 0
      %640 = vmatprep.subr.bf16.mxu0 0
      %641 = vmatpush2.bf16.msra.mxu0 0
      %642 = vmatprep.subr.bf16.mxu0 0
      %643 = vmatpush2.bf16.msra.mxu0 0
      %644 = vmatprep.subr.bf16.mxu0 0
      %645 = vmatpush2.bf16.msra.mxu0 0
      %646 = vmatprep.subr.bf16.mxu0 0
      %647 = vmatpush2.bf16.msra.mxu0 0
      %648 = vmatprep.subr.bf16.mxu0 0
      %649 = vmatpush2.bf16.msra.mxu0 0
      %650 = vmatprep.subr.bf16.mxu0 0
      %651 = vmatpush2.bf16.msra.mxu0 0
      %652 = vmatprep.subr.bf16.mxu0 0
      %653 = vmatpush2.bf16.msra.mxu0 0
      %654 = vmatprep.mubr.bf16.mxu0 0
      %655 = vmatmul.mubr.bf16.gmra.mxu0 %v607
      %v656 = vpop.f32.mrf.mxu0
      %v657 = vadd.f32 %v576, %v656
      %v658 = vpop.f32.mrf.mxu0
      %v659 = vpop.f32.mrf.mxu0
      %v660 = vadd.f32 %v576, %v659
      %v661 = vpop.f32.mrf.mxu0
      %662 = vmatprep.mubr.bf16.mxu0 0
      %663 = vmatmul.mubr.bf16.gmra.mxu0 %v610
      %v664 = vpop.f32.mrf.mxu0
      %v665 = vadd.f32 %v576, %v664
      %v666 = vpop.f32.mrf.mxu0
      %v667 = vpop.f32.mrf.mxu0
      %v668 = vadd.f32 %v576, %v667
      %v669 = vpop.f32.mrf.mxu0
      %670 = vmatprep.mubr.bf16.mxu0 0
      %671 = vmatmul.mubr.bf16.gmra.mxu0 %v613
      %v672 = vpop.f32.mrf.mxu0
      %v673 = vadd.f32 %v576, %v672
      %v674 = vpop.f32.mrf.mxu0
      %v675 = vpop.f32.mrf.mxu0
      %v676 = vadd.f32 %v576, %v675
      %v677 = vpop.f32.mrf.mxu0
      %678 = vmatprep.mubr.bf16.mxu0 0
      %679 = vmatmul.mubr.bf16.gmra.mxu0 %v616
      %v680 = vpop.f32.mrf.mxu0
      %v681 = vadd.f32 %v576, %v680
      %v682 = vpop.f32.mrf.mxu0
      %v683 = vpop.f32.mrf.mxu0
      %v684 = vadd.f32 %v576, %v683
      %v685 = vpop.f32.mrf.mxu0
      %686 = vdwg.mxu0
      %vm687 = vcmp.ge.f32.partialorder %v657, 0.0
      %vm688 = vcmp.ge.f32.partialorder %v660, 0.0
      %vm689 = vcmp.ge.f32.partialorder %v665, 0.0
      %vm690 = vcmp.ge.f32.partialorder %v668, 0.0
      %vm691 = vcmp.ge.f32.partialorder %v673, 0.0
      %vm692 = vcmp.ge.f32.partialorder %v676, 0.0
      %vm693 = vcmp.ge.f32.partialorder %v681, 0.0
      %vm694 = vcmp.ge.f32.partialorder %v684, 0.0
      %v695 = vmul.f32 %v657, 0.2
      %v696 = vmul.f32 %v660, 0.2
      %v697 = vmul.f32 %v665, 0.2
      %v698 = vmul.f32 %v668, 0.2
      %v699 = vmul.f32 %v673, 0.2
      %v700 = vmul.f32 %v676, 0.2
      %v701 = vmul.f32 %v681, 0.2
      %v702 = vmul.f32 %v684, 0.2
      %v703 = vsel %vm687, %v657, %v695
      %v704 = vsel %vm688, %v660, %v696
      %v705 = vsel %vm689, %v665, %v697
      %v706 = vsel %vm690, %v668, %v698
      %v707 = vsel %vm691, %v673, %v699
      %v708 = vsel %vm692, %v676, %v700
      %v709 = vsel %vm693, %v681, %v701
      %v710 = vsel %vm694, %v684, %v702
      %711 = vst.msk [vmem:[%s170] sm:$0xff] %vm486, %v703
      %712 = vst.msk [vmem:[%s170 + $0x8] sm:$0xff] %vm486, %v704
      %713 = vst.msk [vmem:[%s170 + $0x10] sm:$0xff] %vm486, %v705
      %714 = vst.msk [vmem:[%s170 + $0x18] sm:$0xff] %vm486, %v706
      %715 = vst.msk [vmem:[%s170 + $0x20] sm:$0xff] %vm486, %v707
      %716 = vst.msk [vmem:[%s170 + $0x28] sm:$0xff] %vm486, %v708
      %717 = vst.msk [vmem:[%s170 + $0x30] sm:$0xff] %vm486, %v709
      %718 = vst.msk [vmem:[%s170 + $0x38] sm:$0xff] %vm486, %v710
      %p719 = scmp.lt.s32.totalorder %s14, 1
      %s720 = scalar_select %p719, %s14, 1
      %s721 = smul.addr %s720, 8
      %s722 = smul.addr %s721, 8
      %s723 = scalar_lea.vmem %s3, %s722
      // Predicated region
      $region33: #{agg_conv_forward.7} parent=31 // pred_check
        %p724 = pneg %p100
      $region34: #{agg_conv_forward.7} parent=31 // pred_check_branch
        %726 = sbr.rel (%p724) target = $region36
      $region35: #{agg_conv_forward.7} parent=31 // pred_region
        _
      $region36: #{agg_conv_forward.7} parent=31 // pred_fallthru
        _
    $region32: #{agg_conv_forward.7} parent=5 // pred_fallthru
      _
    %p727 = scmp.le.s32.totalorder 2, %s9
    // Predicated region
    $region37: #{agg_conv_forward.7} parent=5 // pred_check
      %p728 = pneg %p727
    $region38: #{agg_conv_forward.7} parent=5 // pred_check_branch
      %730 = sbr.rel (%p728) target = $region40
    $region39: #{agg_conv_forward.7} parent=5 // pred_region
      %s731 = ssub.s32 %s9, 2
      // Predicated region
      $region41: #{agg_conv_forward.7} parent=39 // pred_check
        %p732 = pneg %p106
      $region42: #{agg_conv_forward.7} parent=39 // pred_check_branch
        %734 = sbr.rel (%p732) target = $region44
      $region43: #{agg_conv_forward.7} parent=39 // pred_region
        %p735 = scmp.lt.s32.totalorder %s15, 1
        %s736 = scalar_select %p735, %s15, 1
        %s737 = smul.addr %s736, 8
        %s738 = smul.addr %s737, 8
        %s739 = scalar_lea.vmem %s3, %s738
      $region44: #{agg_conv_forward.7} parent=39 // pred_fallthru
        _
    $region40: #{agg_conv_forward.7} parent=5 // pred_fallthru
      _
  $region6: #{agg_conv_forward.7} parent=0 // loop_footer
    %s13 = sadd.s32 1, %s9
  $region7: #{agg_conv_forward.7} parent=0 // loop_footer_branch
    %8 = sbr.rel target = $region3
  $region8: #{agg_conv_forward.7} parent=0 // loop_exit
    _

// kernel: agg_conv_forward.9
$region0: #{agg_conv_forward.9}
  #allocation0 [shape = 'u32[]', space=smem, size = 0x4, offset = 0x4, fixed_abs, tag = 'smem constant byte address 0x4 - core index']
  #allocation1 [shape = 'u32[144,128]{1,0:T(1,128)}', space=vmem, size = 0x12000, scoped, tag = 'internal scratch']
  %s0 = inlined_call_operand.vmem [shape: bf16[2,64,8], index: 0, kind: input, shape index: {}]
  %s1 = inlined_call_operand.vmem [shape: bf16[64,64], index: 1, kind: input, shape index: {}]
  %s2 = inlined_call_operand.vmem [shape: bf16[64,64], index: 2, kind: input, shape index: {}]
  %s3 = inlined_call_operand.vmem [shape: f32[2,64,8], index: 3, kind: input, shape index: {}]
  %s4 = inlined_call_operand.vmem [shape: f32[2,64,8], index: 4, kind: output, shape index: {}]
  %s5 = sld [smem:[#allocation0]]
  $region49: #{agg_conv_forward.9} parent=0
    _
  %s7 = ssub.s32 1, %s5
  %s8 = scalar_select 0, %s7, %s5
  loop: start=0, step=1, limit=4
  $region2: #{agg_conv_forward.9} parent=0 // loop_pre_header
    _
  $region3: #{agg_conv_forward.9} parent=0 // loop_header
    %s10 = sphi 0, %s14
    %p11 = scmp.ge.s32.totalorder %s10, 4
    %s20 = sphi 0, %s22
    %s23 = sphi 0, %s20
    %s24 = sphi 0, %s23
    %s40 = sphi 0, %s24
    %s44 = sphi 0, %s44
    %s46 = sphi 0, %s44
    %s47 = sphi 0, %s46
    %s61 = sphi 0, %s47
    %s65 = sphi 0, %s65
    %s67 = sphi 0, %s65
    %s68 = sphi 0, %s67
    %s82 = sphi 0, %s68
    %s88 = sphi 0, %s90
    %s91 = sphi 0, %s88
    %s92 = sphi 0, %s91
    %s108 = sphi 0, %s92
    %s114 = sphi 0, %s116
    %s117 = sphi 0, %s114
    %s118 = sphi 0, %s117
    %s134 = sphi 0, %s118
  $region4: #{agg_conv_forward.9} parent=0 // loop_header_branch
    %13 = sbr.rel (%p11) target = $region8
  $region5: #{agg_conv_forward.9} parent=0 // loop_body
    %s15 = ssub.s32 %s10, 1
    %s16 = ssub.s32 %s10, 2
    %s17 = sadd.s32 %s10, 1
    %s18 = ssub.s32 %s10, %s17
    %p19 = scmp.eq.s32.totalorder %s18, 0
    %s21 = sadd.s32 %s20, 1
    %s22 = scalar_select %p19, %s20, %s21
    %p25 = pneg %p19
    %p26 = scmp.eq.s32.totalorder %s10, 1
    %p27 = por %p25, %p26
    %p28 = scmp.ne.s32.totalorder %s20, %s23
    %p29 = scmp.eq.s32.totalorder %s10, 0
    %p30 = por %p28, %p29
    %p31 = scmp.ne.s32.totalorder %s20, %s23
    %p32 = scmp.eq.s32.totalorder %s15, 1
    %p33 = por %p31, %p32
    %p34 = scmp.ne.s32.totalorder %s23, %s24
    %p35 = scmp.eq.s32.totalorder %s15, 0
    %p36 = por %p34, %p35
    %p37 = scmp.ne.s32.totalorder %s23, %s24
    %p38 = scmp.eq.s32.totalorder %s16, 1
    %p39 = por %p37, %p38
    %p41 = scmp.ne.s32.totalorder %s24, %s40
    %p42 = scmp.eq.s32.totalorder %s16, 0
    %p43 = por %p41, %p42
    %s45 = sadd.s32 %s44, 1
    %p48 = scmp.eq.s32.totalorder %s10, 1
    %p49 = scmp.ne.s32.totalorder %s44, %s46
    %p50 = scmp.eq.s32.totalorder %s10, 0
    %p51 = por %p49, %p50
    %p52 = scmp.ne.s32.totalorder %s44, %s46
    %p53 = scmp.eq.s32.totalorder %s15, 1
    %p54 = por %p52, %p53
    %p55 = scmp.ne.s32.totalorder %s46, %s47
    %p56 = scmp.eq.s32.totalorder %s15, 0
    %p57 = por %p55, %p56
    %p58 = scmp.ne.s32.totalorder %s46, %s47
    %p59 = scmp.eq.s32.totalorder %s16, 1
    %p60 = por %p58, %p59
    %p62 = scmp.ne.s32.totalorder %s47, %s61
    %p63 = scmp.eq.s32.totalorder %s16, 0
    %p64 = por %p62, %p63
    %s66 = sadd.s32 %s65, 1
    %p69 = scmp.eq.s32.totalorder %s10, 1
    %p70 = scmp.ne.s32.totalorder %s65, %s67
    %p71 = scmp.eq.s32.totalorder %s10, 0
    %p72 = por %p70, %p71
    %p73 = scmp.ne.s32.totalorder %s65, %s67
    %p74 = scmp.eq.s32.totalorder %s15, 1
    %p75 = por %p73, %p74
    %p76 = scmp.ne.s32.totalorder %s67, %s68
    %p77 = scmp.eq.s32.totalorder %s15, 0
    %p78 = por %p76, %p77
    %p79 = scmp.ne.s32.totalorder %s67, %s68
    %p80 = scmp.eq.s32.totalorder %s16, 1
    %p81 = por %p79, %p80
    %p83 = scmp.ne.s32.totalorder %s68, %s82
    %p84 = scmp.eq.s32.totalorder %s16, 0
    %p85 = por %p83, %p84
    %s86 = ssub.s32 %s10, %s17
    %p87 = scmp.eq.s32.totalorder %s86, 0
    %s89 = sadd.s32 %s88, 1
    %s90 = scalar_select %p87, %s88, %s89
    %p93 = pneg %p87
    %p94 = scmp.eq.s32.totalorder %s10, 1
    %p95 = por %p93, %p94
    %p96 = scmp.ne.s32.totalorder %s88, %s91
    %p97 = scmp.eq.s32.totalorder %s10, 0
    %p98 = por %p96, %p97
    %p99 = scmp.ne.s32.totalorder %s88, %s91
    %p100 = scmp.eq.s32.totalorder %s15, 1
    %p101 = por %p99, %p100
    %p102 = scmp.ne.s32.totalorder %s91, %s92
    %p103 = scmp.eq.s32.totalorder %s15, 0
    %p104 = por %p102, %p103
    %p105 = scmp.ne.s32.totalorder %s91, %s92
    %p106 = scmp.eq.s32.totalorder %s16, 1
    %p107 = por %p105, %p106
    %p109 = scmp.ne.s32.totalorder %s92, %s108
    %p110 = scmp.eq.s32.totalorder %s16, 0
    %p111 = por %p109, %p110
    %s112 = ssub.s32 %s10, %s17
    %p113 = scmp.eq.s32.totalorder %s112, 0
    %s115 = sadd.s32 %s114, 1
    %s116 = scalar_select %p113, %s114, %s115
    %p119 = pneg %p113
    %p120 = scmp.eq.s32.totalorder %s10, 1
    %p121 = por %p119, %p120
    %p122 = scmp.ne.s32.totalorder %s114, %s117
    %p123 = scmp.eq.s32.totalorder %s10, 0
    %p124 = por %p122, %p123
    %p125 = scmp.ne.s32.totalorder %s114, %s117
    %p126 = scmp.eq.s32.totalorder %s15, 1
    %p127 = por %p125, %p126
    %p128 = scmp.ne.s32.totalorder %s117, %s118
    %p129 = scmp.eq.s32.totalorder %s15, 0
    %p130 = por %p128, %p129
    %p131 = scmp.ne.s32.totalorder %s117, %s118
    %p132 = scmp.eq.s32.totalorder %s16, 1
    %p133 = por %p131, %p132
    %p135 = scmp.ne.s32.totalorder %s118, %s134
    %p136 = scmp.eq.s32.totalorder %s16, 0
    %p137 = por %p135, %p136
    %p138 = scmp.le.s32.totalorder 1, %s10
    %p139 = scmp.lt.s32.totalorder %s10, 3
    %p140 = pnand %p138, %p139
    %p141 = pneg %p140
    // Predicated region
    $region9: #{agg_conv_forward.9} parent=5 // pred_check
      _
    $region10: #{agg_conv_forward.9} parent=5 // pred_check_branch
      %143 = sbr.rel (%p140) target = $region12
    $region11: #{agg_conv_forward.9} parent=5 // pred_region
      %s144 = ssub.s32 %s10, 1
      // Predicated region
      $region13: #{agg_conv_forward.9} parent=11 // pred_check
        %p145 = pneg %p57
      $region14: #{agg_conv_forward.9} parent=11 // pred_check_branch
        %147 = sbr.rel (%p145) target = $region16
      $region15: #{agg_conv_forward.9} parent=11 // pred_region
        _
      $region16: #{agg_conv_forward.9} parent=11 // pred_fallthru
        _
      // Predicated region
      $region17: #{agg_conv_forward.9} parent=11 // pred_check
        %p148 = pneg %p78
      $region18: #{agg_conv_forward.9} parent=11 // pred_check_branch
        %150 = sbr.rel (%p148) target = $region20
      $region19: #{agg_conv_forward.9} parent=11 // pred_region
        _
      $region20: #{agg_conv_forward.9} parent=11 // pred_fallthru
        _
    $region12: #{agg_conv_forward.9} parent=5 // pred_fallthru
      _
    %p151 = scmp.lt.s32.totalorder %s10, 2
    // Predicated region
    $region21: #{agg_conv_forward.9} parent=5 // pred_check
      %p152 = pneg %p151
    $region22: #{agg_conv_forward.9} parent=5 // pred_check_branch
      %154 = sbr.rel (%p152) target = $region24
    $region23: #{agg_conv_forward.9} parent=5 // pred_region
      // Predicated region
      $region25: #{agg_conv_forward.9} parent=23 // pred_check
        %p155 = pneg %p30
      $region26: #{agg_conv_forward.9} parent=23 // pred_check_branch
        %157 = sbr.rel (%p155) target = $region28
      $region27: #{agg_conv_forward.9} parent=23 // pred_region
        %p158 = scmp.lt.s32.totalorder %s10, 1
        %s159 = scalar_select %p158, %s10, 1
        %s160 = smul.addr %s159, 8
        %s161 = smul.addr %s160, 4
        %s162 = scalar_lea.vmem %s0, %s161
      $region28: #{agg_conv_forward.9} parent=23 // pred_fallthru
        _
      // Predicated region
      $region29: #{agg_conv_forward.9} parent=23 // pred_check
        %p163 = pneg %p98
      $region30: #{agg_conv_forward.9} parent=23 // pred_check_branch
        %165 = sbr.rel (%p163) target = $region32
      $region31: #{agg_conv_forward.9} parent=23 // pred_region
        %p166 = scmp.lt.s32.totalorder %s10, 1
        %s167 = scalar_select %p166, %s10, 1
        %s168 = smul.addr %s167, 8
        %s169 = smul.addr %s168, 8
        %s170 = scalar_lea.vmem %s3, %s169
      $region32: #{agg_conv_forward.9} parent=23 // pred_fallthru
        _
    $region24: #{agg_conv_forward.9} parent=5 // pred_fallthru
      _
    %p171 = scmp.le.s32.totalorder 1, %s10
    %p172 = scmp.lt.s32.totalorder %s10, 3
    %p173 = pnand %p171, %p172
    %p174 = pneg %p173
    // Predicated region
    $region33: #{agg_conv_forward.9} parent=5 // pred_check
      _
    $region34: #{agg_conv_forward.9} parent=5 // pred_check_branch
      %176 = sbr.rel (%p173) target = $region36
    $region35: #{agg_conv_forward.9} parent=5 // pred_region
      %s177 = ssub.s32 %s10, 1
      %p178 = scmp.lt.s32.totalorder %s15, 1
      %s179 = scalar_select %p178, %s15, 1
      %s180 = smul.addr %s179, 8
      %s181 = smul.addr %s180, 4
      %s182 = scalar_lea.vmem %s0, %s181
      %p183 = pneg %p36
      %p184 = pneg %p33
      %p185 = pneg %p57
      %p186 = pneg %p54
      %p187 = pneg %p78
      %p188 = pneg %p75
      %p189 = scmp.lt.s32.totalorder %s15, 1
      %s190 = scalar_select %p189, %s15, 1
      %s191 = smul.addr %s190, 8
      %s192 = smul.addr %s191, 8
      %s193 = scalar_lea.vmem %s3, %s192
      %p194 = pneg %p104
      %p195 = pneg %p101
      %p196 = pneg %p130
      %p197 = pneg %p127
      %p198 = scmp.lt.s32.totalorder %s15, 1
      %s199 = scalar_select %p198, %s15, 1
      %s200 = smul.addr %s199, 8
      %s201 = smul.addr %s200, 8
      %s202 = scalar_lea.vmem %s4, %s201
      %p203 = scmp.lt.s32.totalorder %s15, 1
      %s204 = scalar_select %p203, %s15, 1
      %s205 = smul.addr %s204, 8
      %s206 = smul.addr %s205, 4
      %s207 = scalar_lea.vmem %s0, %s206
      %p208 = scmp.lt.s32.totalorder %s15, 1
      %s209 = scalar_select %p208, %s15, 1
      %s210 = smul.addr %s209, 8
      %s211 = smul.addr %s210, 8
      %s212 = scalar_lea.vmem %s3, %s211
      %p213 = scmp.lt.s32.totalorder %s15, 1
      %s214 = scalar_select %p213, %s15, 1
      %s215 = smul.addr %s214, 8
      %s216 = smul.addr %s215, 8
      %s217 = scalar_lea.vmem %s4, %s216
      %v219 = vld [vmem:[%s1] sm:$0xf]
      %v220 = vld [vmem:[%s1 + $0x4] sm:$0xf]
      %v221 = vld [vmem:[%s1 + $0x8] sm:$0xf]
      %v222 = vld [vmem:[%s1 + $0xc] sm:$0xf]
      %v223 = vld [vmem:[%s1 + $0x10] sm:$0xf]
      %v224 = vld [vmem:[%s1 + $0x14] sm:$0xf]
      %v225 = vld [vmem:[%s1 + $0x18] sm:$0xf]
      %v226 = vld [vmem:[%s1 + $0x1c] sm:$0xf]
      %v227 = vld [vmem:[%s207] sm:$0xf]
      %v228 = vld [vmem:[%s207 + $0x4] sm:$0xf]
      %v229 = vld [vmem:[%s207 + $0x8] sm:$0xf]
      %v230 = vld [vmem:[%s207 + $0xc] sm:$0xf]
      %v231 = vld [vmem:[%s207 + $0x10] sm:$0xf]
      %v232 = vld [vmem:[%s207 + $0x14] sm:$0xf]
      %v233 = vld [vmem:[%s207 + $0x18] sm:$0xf]
      %v234 = vld [vmem:[%s207 + $0x1c] sm:$0xf]
      %v243 = vunpack.c.l.b16 %v219
      %v244 = vunpack.c.l.b16 %v220
      %v245 = vunpack.c.l.b16 %v221
      %v246 = vunpack.c.l.b16 %v222
      %v247 = vunpack.c.l.b16 %v223
      %v248 = vunpack.c.l.b16 %v224
      %v249 = vunpack.c.l.b16 %v225
      %v250 = vunpack.c.l.b16 %v226
      %v251 = vpack.c.b16 %v244, %v243
      %v252 = vpack.c.b16 %v246, %v245
      %v253 = vpack.c.b16 %v248, %v247
      %v254 = vpack.c.b16 %v250, %v249
      %v263 = vunpack.c.l.b16 %v227
      %v264 = vunpack.c.l.b16 %v228
      %v265 = vunpack.c.l.b16 %v229
      %v266 = vunpack.c.l.b16 %v230
      %v267 = vunpack.c.l.b16 %v231
      %v268 = vunpack.c.l.b16 %v232
      %v269 = vunpack.c.l.b16 %v233
      %v270 = vunpack.c.l.b16 %v234
      %v271 = vpack.c.b16 %v264, %v263
      %v272 = vpack.c.b16 %v266, %v265
      %v273 = vpack.c.b16 %v268, %v267
      %v274 = vpack.c.b16 %v270, %v269
      %vm279 = vcmask 523264
      %v281 = vsel %vm279, %v251, 0
      %v284 = vsel %vm279, %v252, 0
      %v287 = vsel %vm279, %v253, 0
      %v290 = vsel %vm279, %v254, 0
      %292 = vmatprep.subr.bf16.mxu0 0
      %293 = vmatpush1.bf16.msra.mxu0 0
      %294 = vmatprep.subr.bf16.mxu0 0
      %295 = vmatpush1.bf16.msra.mxu0 0
      %296 = vmatprep.subr.bf16.mxu0 0
      %297 = vmatpush1.bf16.msra.mxu0 0
      %298 = vmatprep.subr.bf16.mxu0 0
      %299 = vmatpush1.bf16.msra.mxu0 0
      %300 = vmatprep.subr.bf16.mxu0 0
      %301 = vmatpush1.bf16.msra.mxu0 %v274
      %302 = vmatprep.subr.bf16.mxu0 0
      %303 = vmatpush1.bf16.msra.mxu0 %v273
      %304 = vmatprep.subr.bf16.mxu0 0
      %305 = vmatpush1.bf16.msra.mxu0 %v272
      %306 = vmatprep.subr.bf16.mxu0 0
      %307 = vmatpush1.bf16.msra.mxu0 %v271
      %308 = vmatprep.subr.bf16.mxu0 0
      %309 = vmatpush2.bf16.msra.mxu0 0
      %310 = vmatprep.subr.bf16.mxu0 0
      %311 = vmatpush2.bf16.msra.mxu0 0
      %312 = vmatprep.subr.bf16.mxu0 0
      %313 = vmatpush2.bf16.msra.mxu0 0
      %314 = vmatprep.subr.bf16.mxu0 0
      %315 = vmatpush2.bf16.msra.mxu0 0
      %316 = vmatprep.subr.bf16.mxu0 0
      %317 = vmatpush2.bf16.msra.mxu0 0
      %318 = vmatprep.subr.bf16.mxu0 0
      %319 = vmatpush2.bf16.msra.mxu0 0
      %320 = vmatprep.subr.bf16.mxu0 0
      %321 = vmatpush2.bf16.msra.mxu0 0
      %322 = vmatprep.subr.bf16.mxu0 0
      %323 = vmatpush2.bf16.msra.mxu0 0
      %324 = vmatprep.mubr.bf16.mxu0 0
      %325 = vmatmul.mubr.bf16.gmra.mxu0 %v281
      %v326 = vpop.f32.mrf.mxu0
      %v327 = vadd.f32 0.0, %v326
      %v328 = vpop.f32.mrf.mxu0
      %v329 = vpop.f32.mrf.mxu0
      %v330 = vadd.f32 0.0, %v329
      %v331 = vpop.f32.mrf.mxu0
      %332 = vmatprep.mubr.bf16.mxu0 0
      %333 = vmatmul.mubr.bf16.gmra.mxu0 %v284
      %v334 = vpop.f32.mrf.mxu0
      %v335 = vadd.f32 0.0, %v334
      %v336 = vpop.f32.mrf.mxu0
      %v337 = vpop.f32.mrf.mxu0
      %v338 = vadd.f32 0.0, %v337
      %v339 = vpop.f32.mrf.mxu0
      %340 = vmatprep.mubr.bf16.mxu0 0
      %341 = vmatmul.mubr.bf16.gmra.mxu0 %v287
      %v342 = vpop.f32.mrf.mxu0
      %v343 = vadd.f32 0.0, %v342
      %v344 = vpop.f32.mrf.mxu0
      %v345 = vpop.f32.mrf.mxu0
      %v346 = vadd.f32 0.0, %v345
      %v347 = vpop.f32.mrf.mxu0
      %348 = vmatprep.mubr.bf16.mxu0 0
      %349 = vmatmul.mubr.bf16.gmra.mxu0 %v290
      %v350 = vpop.f32.mrf.mxu0
      %v351 = vadd.f32 0.0, %v350
      %v352 = vpop.f32.mrf.mxu0
      %v353 = vpop.f32.mrf.mxu0
      %v354 = vadd.f32 0.0, %v353
      %v355 = vpop.f32.mrf.mxu0
      %356 = vdwg.mxu0
      %v357 = vmax.f32 %v327, 0.0
      %v358 = vmax.f32 %v330, 0.0
      %v359 = vmax.f32 %v335, 0.0
      %v360 = vmax.f32 %v338, 0.0
      %v361 = vmax.f32 %v343, 0.0
      %v362 = vmax.f32 %v346, 0.0
      %v363 = vmax.f32 %v351, 0.0
      %v364 = vmax.f32 %v354, 0.0
      %v365 = vpack.c.bf16 %v358, %v357
      %v366 = vpack.c.bf16 %v360, %v359
      %v367 = vpack.c.bf16 %v362, %v361
      %v368 = vpack.c.bf16 %v364, %v363
      %v369 = vld [vmem:[%s2] sm:$0xf]
      %v370 = vld [vmem:[%s2 + $0x4] sm:$0xf]
      %v371 = vld [vmem:[%s2 + $0x8] sm:$0xf]
      %v372 = vld [vmem:[%s2 + $0xc] sm:$0xf]
      %v373 = vld [vmem:[%s2 + $0x10] sm:$0xf]
      %v374 = vld [vmem:[%s2 + $0x14] sm:$0xf]
      %v375 = vld [vmem:[%s2 + $0x18] sm:$0xf]
      %v376 = vld [vmem:[%s2 + $0x1c] sm:$0xf]
      %v385 = vunpack.c.l.b16 %v369
      %v386 = vunpack.c.l.b16 %v370
      %v387 = vunpack.c.l.b16 %v371
      %v388 = vunpack.c.l.b16 %v372
      %v389 = vunpack.c.l.b16 %v373
      %v390 = vunpack.c.l.b16 %v374
      %v391 = vunpack.c.l.b16 %v375
      %v392 = vunpack.c.l.b16 %v376
      %v393 = vpack.c.b16 %v386, %v385
      %v394 = vpack.c.b16 %v388, %v387
      %v395 = vpack.c.b16 %v390, %v389
      %v396 = vpack.c.b16 %v392, %v391
      %v398 = vsel %vm279, %v393, 0
      %v401 = vsel %vm279, %v394, 0
      %v404 = vsel %vm279, %v395, 0
      %v407 = vsel %vm279, %v396, 0
      %409 = vmatprep.subr.bf16.mxu0 0
      %410 = vmatpush1.bf16.msra.mxu0 0
      %411 = vmatprep.subr.bf16.mxu0 0
      %412 = vmatpush1.bf16.msra.mxu0 0
      %413 = vmatprep.subr.bf16.mxu0 0
      %414 = vmatpush1.bf16.msra.mxu0 0
      %415 = vmatprep.subr.bf16.mxu0 0
      %416 = vmatpush1.bf16.msra.mxu0 0
      %417 = vmatprep.subr.bf16.mxu0 0
      %418 = vmatpush1.bf16.msra.mxu0 %v368
      %419 = vmatprep.subr.bf16.mxu0 0
      %420 = vmatpush1.bf16.msra.mxu0 %v367
      %421 = vmatprep.subr.bf16.mxu0 0
      %422 = vmatpush1.bf16.msra.mxu0 %v366
      %423 = vmatprep.subr.bf16.mxu0 0
      %424 = vmatpush1.bf16.msra.mxu0 %v365
      %425 = vmatprep.subr.bf16.mxu0 0
      %426 = vmatpush2.bf16.msra.mxu0 0
      %427 = vmatprep.subr.bf16.mxu0 0
      %428 = vmatpush2.bf16.msra.mxu0 0
      %429 = vmatprep.subr.bf16.mxu0 0
      %430 = vmatpush2.bf16.msra.mxu0 0
      %431 = vmatprep.subr.bf16.mxu0 0
      %432 = vmatpush2.bf16.msra.mxu0 0
      %433 = vmatprep.subr.bf16.mxu0 0
      %434 = vmatpush2.bf16.msra.mxu0 0
      %435 = vmatprep.subr.bf16.mxu0 0
      %436 = vmatpush2.bf16.msra.mxu0 0
      %437 = vmatprep.subr.bf16.mxu0 0
      %438 = vmatpush2.bf16.msra.mxu0 0
      %439 = vmatprep.subr.bf16.mxu0 0
      %440 = vmatpush2.bf16.msra.mxu0 0
      %441 = vmatprep.mubr.bf16.mxu0 0
      %442 = vmatmul.mubr.bf16.gmra.mxu0 %v398
      %v443 = vpop.f32.mrf.mxu0
      %v444 = vadd.f32 0.0, %v443
      %v445 = vpop.f32.mrf.mxu0
      %v446 = vpop.f32.mrf.mxu0
      %v447 = vadd.f32 0.0, %v446
      %v448 = vpop.f32.mrf.mxu0
      %449 = vmatprep.mubr.bf16.mxu0 0
      %450 = vmatmul.mubr.bf16.gmra.mxu0 %v401
      %v451 = vpop.f32.mrf.mxu0
      %v452 = vadd.f32 0.0, %v451
      %v453 = vpop.f32.mrf.mxu0
      %v454 = vpop.f32.mrf.mxu0
      %v455 = vadd.f32 0.0, %v454
      %v456 = vpop.f32.mrf.mxu0
      %457 = vmatprep.mubr.bf16.mxu0 0
      %458 = vmatmul.mubr.bf16.gmra.mxu0 %v404
      %v459 = vpop.f32.mrf.mxu0
      %v460 = vadd.f32 0.0, %v459
      %v461 = vpop.f32.mrf.mxu0
      %v462 = vpop.f32.mrf.mxu0
      %v463 = vadd.f32 0.0, %v462
      %v464 = vpop.f32.mrf.mxu0
      %465 = vmatprep.mubr.bf16.mxu0 0
      %466 = vmatmul.mubr.bf16.gmra.mxu0 %v407
      %v467 = vpop.f32.mrf.mxu0
      %v468 = vadd.f32 0.0, %v467
      %v469 = vpop.f32.mrf.mxu0
      %v470 = vpop.f32.mrf.mxu0
      %v471 = vadd.f32 0.0, %v470
      %v472 = vpop.f32.mrf.mxu0
      %473 = vdwg.mxu0
      %v474 = vsub.f32 0.0, %v444
      %v475 = vsub.f32 0.0, %v447
      %v476 = vsub.f32 0.0, %v452
      %v477 = vsub.f32 0.0, %v455
      %v478 = vsub.f32 0.0, %v460
      %v479 = vsub.f32 0.0, %v463
      %v480 = vsub.f32 0.0, %v468
      %v481 = vsub.f32 0.0, %v471
      %v482 = vmul.f32 %v474, 1.442695
      %v483 = vpow.pop %v482
      %v484 = vmul.f32 %v475, 1.442695
      %v485 = vpow.pop %v484
      %v486 = vmul.f32 %v476, 1.442695
      %v487 = vpow.pop %v486
      %v488 = vmul.f32 %v477, 1.442695
      %v489 = vpow.pop %v488
      %v490 = vmul.f32 %v478, 1.442695
      %v491 = vpow.pop %v490
      %v492 = vmul.f32 %v479, 1.442695
      %v493 = vpow.pop %v492
      %v494 = vmul.f32 %v480, 1.442695
      %v495 = vpow.pop %v494
      %v496 = vmul.f32 %v481, 1.442695
      %v497 = vpow.pop %v496
      %v498 = vadd.f32 %v483, 1.0
      %v499 = vadd.f32 %v485, 1.0
      %v500 = vadd.f32 %v487, 1.0
      %v501 = vadd.f32 %v489, 1.0
      %v502 = vadd.f32 %v491, 1.0
      %v503 = vadd.f32 %v493, 1.0
      %v504 = vadd.f32 %v495, 1.0
      %v505 = vadd.f32 %v497, 1.0
      %v506 = vrcp.pop %v498
      %v507 = vrcp.pop %v499
      %v508 = vrcp.pop %v500
      %v509 = vrcp.pop %v501
      %v510 = vrcp.pop %v502
      %v511 = vrcp.pop %v503
      %v512 = vrcp.pop %v504
      %v513 = vrcp.pop %v505
      %v514 = vld [vmem:[%s212] sm:$0xff]
      %v515 = vld [vmem:[%s212 + $0x8] sm:$0xff]
      %v516 = vld [vmem:[%s212 + $0x10] sm:$0xff]
      %v517 = vld [vmem:[%s212 + $0x18] sm:$0xff]
      %v518 = vld [vmem:[%s212 + $0x20] sm:$0xff]
      %v519 = vld [vmem:[%s212 + $0x28] sm:$0xff]
      %v520 = vld [vmem:[%s212 + $0x30] sm:$0xff]
      %v521 = vld [vmem:[%s212 + $0x38] sm:$0xff]
      %v522 = vmul.f32 %v514, %v506
      %v523 = vmul.f32 %v515, %v507
      %v524 = vmul.f32 %v516, %v508
      %v525 = vmul.f32 %v517, %v509
      %v526 = vmul.f32 %v518, %v510
      %v527 = vmul.f32 %v519, %v511
      %v528 = vmul.f32 %v520, %v512
      %v529 = vmul.f32 %v521, %v513
      %vm530 = vcmask 64512
      %531 = vst.msk [vmem:[%s217] sm:$0xff] %vm530, %v522
      %532 = vst.msk [vmem:[%s217 + $0x8] sm:$0xff] %vm530, %v523
      %533 = vst.msk [vmem:[%s217 + $0x10] sm:$0xff] %vm530, %v524
      %534 = vst.msk [vmem:[%s217 + $0x18] sm:$0xff] %vm530, %v525
      %535 = vst.msk [vmem:[%s217 + $0x20] sm:$0xff] %vm530, %v526
      %536 = vst.msk [vmem:[%s217 + $0x28] sm:$0xff] %vm530, %v527
      %537 = vst.msk [vmem:[%s217 + $0x30] sm:$0xff] %vm530, %v528
      %538 = vst.msk [vmem:[%s217 + $0x38] sm:$0xff] %vm530, %v529
      %p539 = scmp.lt.s32.totalorder %s15, 1
      %s540 = scalar_select %p539, %s15, 1
      %s541 = smul.addr %s540, 8
      %s542 = smul.addr %s541, 8
      %s543 = scalar_lea.vmem %s4, %s542
      // Predicated region
      $region37: #{agg_conv_forward.9} parent=35 // pred_check
        %p544 = pneg %p127
      $region38: #{agg_conv_forward.9} parent=35 // pred_check_branch
        %546 = sbr.rel (%p544) target = $region40
      $region39: #{agg_conv_forward.9} parent=35 // pred_region
        _
      $region40: #{agg_conv_forward.9} parent=35 // pred_fallthru
        _
    $region36: #{agg_conv_forward.9} parent=5 // pred_fallthru
      _
    %p547 = scmp.le.s32.totalorder 2, %s10
    // Predicated region
    $region41: #{agg_conv_forward.9} parent=5 // pred_check
      %p548 = pneg %p547
    $region42: #{agg_conv_forward.9} parent=5 // pred_check_branch
      %550 = sbr.rel (%p548) target = $region44
    $region43: #{agg_conv_forward.9} parent=5 // pred_region
      %s551 = ssub.s32 %s10, 2
      // Predicated region
      $region45: #{agg_conv_forward.9} parent=43 // pred_check
        %p552 = pneg %p133
      $region46: #{agg_conv_forward.9} parent=43 // pred_check_branch
        %554 = sbr.rel (%p552) target = $region48
      $region47: #{agg_conv_forward.9} parent=43 // pred_region
        %p555 = scmp.lt.s32.totalorder %s16, 1
        %s556 = scalar_select %p555, %s16, 1
        %s557 = smul.addr %s556, 8
        %s558 = smul.addr %s557, 8
        %s559 = scalar_lea.vmem %s4, %s558
      $region48: #{agg_conv_forward.9} parent=43 // pred_fallthru
        _
    $region44: #{agg_conv_forward.9} parent=5 // pred_fallthru
      _
  $region6: #{agg_conv_forward.9} parent=0 // loop_footer
    %s14 = sadd.s32 1, %s10
  $region7: #{agg_conv_forward.9} parent=0 // loop_footer_branch
    %9 = sbr.rel target = $region3
  $region8: #{agg_conv_forward.9} parent=0 // loop_exit
    _

</llo_original>
